<compile_context>
chip_gen: v6e
topology: v6e:2x2x1
jax: 0.10.0
libtpu: 0.0.40
codegen_flags: <defaults>
</compile_context>

<pallas_src>
import math
import functools

import jax
import jax.numpy as jnp
from jax import lax
from jax.experimental import pallas as pl
from jax.experimental.pallas import tpu as pltpu


def _round_up(x, m):
    return (x + m - 1) // m * m


# --------------------------------------------------------------------------
# Fused BiLSTM (+FC) kernel factory.
# Ref order passed by pallas_call:
#   x (S*B, E) bf16,
#   per layer: wih_cat (D, 8H) bf16, whh_blockdiag (2H, 8H) bf16, b_cat (1, 8H) f32,
#   fc_w_pad (2H, Cpad) f32, fc_b_pad (1, Cpad) f32,
#   out (B, Cpad) f32.
# Gate lane layout of the fused 8H axis: [i_f f_f g_f o_f | i_b f_b g_b o_b].
# --------------------------------------------------------------------------
def _make_bilstm_kernel(seq_len, batch, hidden_dim, num_layers):
    S, B, H = seq_len, batch, hidden_dim
    H4, H8 = 4 * H, 8 * H

    def kernel(*refs):
        x_ref = refs[0]
        layer_refs = refs[1:1 + 3 * num_layers]
        fc_w_ref = refs[1 + 3 * num_layers]
        fc_b_ref = refs[2 + 3 * num_layers]
        out_ref = refs[3 + 3 * num_layers]

        h_prev = None          # previous layer: list of S per-step [h_f(t) | h_b(S-1-t)] values
        h_cat = None           # current layer final [h_f | h_b]

        for layer in range(num_layers):
            wih_ref, whh_ref, b_ref = layer_refs[3 * layer:3 * layer + 3]
            is_last = layer == num_layers - 1

            wih = wih_ref[...]                    # (D, 8H) bf16
            whh = whh_ref[...]                    # (2H, 8H) bf16 block-diagonal
            bias = b_ref[...]                     # (1, 8H) f32

            # ---- per-time input projections, hoisted OFF the recurrence's serial
            # ---- dependence chain (they never depend on the carry).  Both
            # ---- directions share one (., D)@(D, 8H) dot per time step.
            # TODO(synk): for large S*B switch back to a single (S*B, D)@(D, 8H)
            # matmul feeding a time-chunked pltpu.emit_pipeline to bound VMEM.
            xp = []
            if layer == 0:
                for t in range(S):
                    x_t = x_ref[t * B:(t + 1) * B, :]        # (B, E) bf16 ref load
                    xp.append(jnp.dot(x_t, wih,
                                      preferred_element_type=jnp.float32) + bias)
            else:
                for t in range(S):
                    # time-aligned input for time t: [h_f^{l-1}(t) | h_b^{l-1}(t)]
                    in_t = jnp.concatenate(
                        [h_prev[t][:, 0:H], h_prev[S - 1 - t][:, H:2 * H]], axis=1)
                    xp.append(jnp.dot(in_t.astype(jnp.bfloat16), wih,
                                      preferred_element_type=jnp.float32) + bias)

            # ---- time recurrence, fully unrolled at trace time (S small).
            # ---- Per step: ONE (B,2H)@(2H,8H) MXU push on the critical path.
            # TODO(synk): partial unroll (lax.fori_loop, unroll=4/8) once S grows.
            h_cat = jnp.zeros((B, 2 * H), jnp.float32)       # [h_f | h_b]
            c_cat = jnp.zeros((B, 2 * H), jnp.float32)       # [c_f | c_b]
            h_steps = []

            for t in range(S):
                # forward processes time t, backward processes time S-1-t
                # (reverse-time indexing, no HBM/VMEM flips anywhere).
                g_in = jnp.concatenate(
                    [xp[t][:, 0:H4], xp[S - 1 - t][:, H4:H8]], axis=1)      # (B, 8H)
                g_all = g_in + jnp.dot(h_cat.astype(jnp.bfloat16), whh,
                                       preferred_element_type=jnp.float32)  # (B, 8H)

                # one sigmoid over all i/f/o gates of both directions, one tanh
                # over the gathered cell gates, one tanh(c): 4 EUP pushes/step.
                sig = jax.nn.sigmoid(g_all)
                i_cat = jnp.concatenate([sig[:, 0:H], sig[:, H4:H4 + H]], axis=1)
                f_cat = jnp.concatenate([sig[:, H:2 * H], sig[:, H4 + H:H4 + 2 * H]], axis=1)
                o_cat = jnp.concatenate([sig[:, 3 * H:4 * H], sig[:, H4 + 3 * H:H8]], axis=1)
                g_cat = jnp.tanh(jnp.concatenate(
                    [g_all[:, 2 * H:3 * H], g_all[:, H4 + 2 * H:H4 + 3 * H]], axis=1))

                c_cat = f_cat * c_cat + i_cat * g_cat
                h_cat = o_cat * jnp.tanh(c_cat)
                if not is_last:
                    h_steps.append(h_cat)        # vreg-resident, no VMEM round-trip

            h_prev = h_steps

        # ---- fused final FC on [h_fwd_final | h_bwd_final] (== hidden[-2] | hidden[-1]).
        # nn.Dropout is identity in eval mode.  Class dim padded to 128 lanes
        # (dense store); wrapper strips the padding.
        out_ref[...] = (jnp.dot(h_cat, fc_w_ref[...],
                                preferred_element_type=jnp.float32) + fc_b_ref[...])

    return kernel


def bilstm_pallas(x_rows, layer_args, fc_w_pad, fc_b_pad, *, seq_len, batch,
                  hidden_dim, num_layers, out_pad):
    """x_rows: (S*B, E) bf16 time-major rows.  Returns (B, out_pad) f32."""
    kernel = _make_bilstm_kernel(seq_len, batch, hidden_dim, num_layers)
    # TODO(synk): on v7x with long sequences, split fwd/bwd across the two
    # TensorCores (create_tensorcore_mesh + core_map); at these tiny shapes the
    # per-layer sync would dominate, so keep single-core fused.
    return pl.pallas_call(
        kernel,
        out_shape=jax.ShapeDtypeStruct((batch, out_pad), jnp.float32),
    )(x_rows, *layer_args, fc_w_pad, fc_b_pad)


# --------------------------------------------------------------------------
# Parameter init (deterministic, PyTorch-style uniform(-1/sqrt(H), 1/sqrt(H))).
# NOTE: weights are stored as (in_dim, 4H); real PyTorch checkpoints store
# weight_ih/hh as (4H, in_dim) and separate b_ih/b_hh — transpose + pre-sum
# biases before loading, or results will be wrong.
# --------------------------------------------------------------------------
def init_params(key, vocab_size, embedding_dim, hidden_dim, num_layers, num_classes):
    params = {}
    k_emb, k_lstm, k_fc = jax.random.split(key, 3)

    params["embedding"] = jax.random.normal(
        k_emb, (vocab_size, embedding_dim), jnp.float32)

    bound = 1.0 / math.sqrt(hidden_dim)
    lstm_params = []
    keys = jax.random.split(k_lstm, num_layers * 2)
    for layer in range(num_layers):
        in_dim = embedding_dim if layer == 0 else 2 * hidden_dim
        layer_p = {}
        for d, name in enumerate(("fwd", "bwd")):
            kk = jax.random.split(keys[layer * 2 + d], 4)
            w_ih = jax.random.uniform(kk[0], (in_dim, 4 * hidden_dim),
                                      jnp.float32, -bound, bound)
            w_hh = jax.random.uniform(kk[1], (hidden_dim, 4 * hidden_dim),
                                      jnp.float32, -bound, bound)
            b_ih = jax.random.uniform(kk[2], (1, 4 * hidden_dim),
                                      jnp.float32, -bound, bound)
            b_hh = jax.random.uniform(kk[3], (1, 4 * hidden_dim),
                                      jnp.float32, -bound, bound)
            layer_p[name] = (w_ih, w_hh, b_ih + b_hh)
        lstm_params.append(layer_p)
    params["lstm"] = lstm_params

    fc_bound = 1.0 / math.sqrt(2 * hidden_dim)
    kw, kb = jax.random.split(k_fc)
    params["fc_w"] = jax.random.uniform(
        kw, (2 * hidden_dim, num_classes), jnp.float32, -fc_bound, fc_bound)
    params["fc_b"] = jax.random.uniform(
        kb, (1, num_classes), jnp.float32, -fc_bound, fc_bound)
    return params


# --------------------------------------------------------------------------
# Full forward pass (matches BiLSTMModel.forward, eval mode)
# --------------------------------------------------------------------------
def bilstm_forward(params, tokens, *, hidden_dim, num_layers, num_classes):
    B, S = tokens.shape
    H = hidden_dim

    # embedding lookup (gather) + time-major layout — plain-JAX glue, not the hot path
    emb = jnp.take(params["embedding"], tokens, axis=0)            # (B, S, E)
    x_rows = jnp.transpose(emb, (1, 0, 2)).reshape(S * B, -1)      # (S*B, E), row = t*B + b
    x_rows = x_rows.astype(jnp.bfloat16)                           # bf16 MXU operand

    # host-side weight fusion: both directions concatenated along the gate axis
    # (input proj), block-diagonal recurrence weight, pre-summed fused bias.
    layer_args = []
    for layer in range(num_layers):
        wih_f, whh_f, b_f = params["lstm"][layer]["fwd"]
        wih_b, whh_b, b_b = params["lstm"][layer]["bwd"]
        wih_cat = jnp.concatenate([wih_f, wih_b], axis=1).astype(jnp.bfloat16)   # (D, 8H)
        zero_hh = jnp.zeros_like(whh_f)
        whh_cat = jnp.concatenate(
            [jnp.concatenate([whh_f, zero_hh], axis=1),
             jnp.concatenate([zero_hh, whh_b], axis=1)], axis=0).astype(jnp.bfloat16)  # (2H, 8H)
        b_cat = jnp.concatenate([b_f, b_b], axis=1).astype(jnp.float32)          # (1, 8H)
        layer_args += [wih_cat, whh_cat, b_cat]

    out_pad = _round_up(num_classes, 128)
    fc_w_pad = jnp.zeros((2 * H, out_pad), jnp.float32).at[:, :num_classes].set(
        params["fc_w"])
    fc_b_pad = jnp.zeros((1, out_pad), jnp.float32).at[:, :num_classes].set(
        params["fc_b"])

    # TODO(synk): training-mode dropout (inter-layer + pre-FC) omitted; identity in eval.
    out = bilstm_pallas(
        x_rows, layer_args, fc_w_pad, fc_b_pad,
        seq_len=S, batch=B, hidden_dim=hidden_dim,
        num_layers=num_layers, out_pad=out_pad)
    return out[:, :num_classes]


if __name__ == "__main__":
    vocab_size = 50
    embedding_dim = 16
    hidden_dim = 32
    num_layers = 2
    num_classes = 5
    batch = 2
    seq = 8

    key = jax.random.PRNGKey(0)
    k_params, k_tokens = jax.random.split(key)

    params = init_params(
        k_params, vocab_size, embedding_dim, hidden_dim, num_layers, num_classes)
    tokens = jax.random.randint(k_tokens, (batch, seq), 0, vocab_size, jnp.int32)

    fwd = jax.jit(functools.partial(
        bilstm_forward, hidden_dim=hidden_dim, num_layers=num_layers,
        num_classes=num_classes))
    out = fwd(params, tokens)
    jax.block_until_ready(out)

    assert out.shape == (batch, num_classes), out.shape
    assert bool(jnp.all(jnp.isfinite(out)))
    print("KERNEL_OK")
</pallas_src>

<mosaic_0001>
module attributes {stable_mosaic.version = 11 : i64} {
  func.func @kernel(%arg0: memref<16x16xbf16, #tpu.memory_space<vmem>>, %arg1: memref<16x256xbf16, #tpu.memory_space<vmem>>, %arg2: memref<64x256xbf16, #tpu.memory_space<vmem>>, %arg3: memref<1x256xf32, #tpu.memory_space<vmem>>, %arg4: memref<64x256xbf16, #tpu.memory_space<vmem>>, %arg5: memref<64x256xbf16, #tpu.memory_space<vmem>>, %arg6: memref<1x256xf32, #tpu.memory_space<vmem>>, %arg7: memref<64x128xf32, #tpu.memory_space<vmem>>, %arg8: memref<1x128xf32, #tpu.memory_space<vmem>>, %arg9: memref<2x128xf32, #tpu.memory_space<vmem>>) attributes {dimension_semantics = [], scalar_prefetch = 0 : i64, scratch_operands = 0 : i64, tpu.core_type = #tpu.core_type<tc>} {
    %c0 = arith.constant 0 : index
    %c0_0 = arith.constant 0 : index
    %0 = vector.load %arg1[%c0, %c0_0] : memref<16x256xbf16, #tpu.memory_space<vmem>>, vector<16x256xbf16>
    %c0_1 = arith.constant 0 : index
    %c0_2 = arith.constant 0 : index
    %1 = vector.load %arg2[%c0_1, %c0_2] : memref<64x256xbf16, #tpu.memory_space<vmem>>, vector<64x256xbf16>
    %c0_3 = arith.constant 0 : index
    %c0_4 = arith.constant 0 : index
    %2 = vector.load %arg3[%c0_3, %c0_4] : memref<1x256xf32, #tpu.memory_space<vmem>>, vector<1x256xf32>
    %c0_5 = arith.constant 0 : index
    %c0_6 = arith.constant 0 : index
    %3 = vector.load %arg0[%c0_5, %c0_6] : memref<16x16xbf16, #tpu.memory_space<vmem>>, vector<2x16xbf16>
    %cst = arith.constant dense<0.000000e+00> : vector<2x256xf32>
    %4 = tpu.matmul %3, %0, %cst {dimension_numbers = #tpu.dot_dimension_numbers<[1], [0], [0], [1], [0, 0, 1, 1], [], []>} : vector<2x16xbf16>, vector<16x256xbf16>, vector<2x256xf32> -> vector<2x256xf32>
    %5 = vector.broadcast %2 : vector<1x256xf32> to vector<2x256xf32>
    %6 = arith.addf %4, %5 : vector<2x256xf32>
    %c2 = arith.constant 2 : index
    %c0_7 = arith.constant 0 : index
    %7 = vector.load %arg0[%c2, %c0_7] : memref<16x16xbf16, #tpu.memory_space<vmem>>, vector<2x16xbf16>
    %cst_8 = arith.constant dense<0.000000e+00> : vector<2x256xf32>
    %8 = tpu.matmul %7, %0, %cst_8 {dimension_numbers = #tpu.dot_dimension_numbers<[1], [0], [0], [1], [0, 0, 1, 1], [], []>} : vector<2x16xbf16>, vector<16x256xbf16>, vector<2x256xf32> -> vector<2x256xf32>
    %9 = vector.broadcast %2 : vector<1x256xf32> to vector<2x256xf32>
    %10 = arith.addf %8, %9 : vector<2x256xf32>
    %c4 = arith.constant 4 : index
    %c0_9 = arith.constant 0 : index
    %11 = vector.load %arg0[%c4, %c0_9] : memref<16x16xbf16, #tpu.memory_space<vmem>>, vector<2x16xbf16>
    %cst_10 = arith.constant dense<0.000000e+00> : vector<2x256xf32>
    %12 = tpu.matmul %11, %0, %cst_10 {dimension_numbers = #tpu.dot_dimension_numbers<[1], [0], [0], [1], [0, 0, 1, 1], [], []>} : vector<2x16xbf16>, vector<16x256xbf16>, vector<2x256xf32> -> vector<2x256xf32>
    %13 = vector.broadcast %2 : vector<1x256xf32> to vector<2x256xf32>
    %14 = arith.addf %12, %13 : vector<2x256xf32>
    %c6 = arith.constant 6 : index
    %c0_11 = arith.constant 0 : index
    %15 = vector.load %arg0[%c6, %c0_11] : memref<16x16xbf16, #tpu.memory_space<vmem>>, vector<2x16xbf16>
    %cst_12 = arith.constant dense<0.000000e+00> : vector<2x256xf32>
    %16 = tpu.matmul %15, %0, %cst_12 {dimension_numbers = #tpu.dot_dimension_numbers<[1], [0], [0], [1], [0, 0, 1, 1], [], []>} : vector<2x16xbf16>, vector<16x256xbf16>, vector<2x256xf32> -> vector<2x256xf32>
    %17 = vector.broadcast %2 : vector<1x256xf32> to vector<2x256xf32>
    %18 = arith.addf %16, %17 : vector<2x256xf32>
    %c8 = arith.constant 8 : index
    %c0_13 = arith.constant 0 : index
    %19 = vector.load %arg0[%c8, %c0_13] : memref<16x16xbf16, #tpu.memory_space<vmem>>, vector<2x16xbf16>
    %cst_14 = arith.constant dense<0.000000e+00> : vector<2x256xf32>
    %20 = tpu.matmul %19, %0, %cst_14 {dimension_numbers = #tpu.dot_dimension_numbers<[1], [0], [0], [1], [0, 0, 1, 1], [], []>} : vector<2x16xbf16>, vector<16x256xbf16>, vector<2x256xf32> -> vector<2x256xf32>
    %21 = vector.broadcast %2 : vector<1x256xf32> to vector<2x256xf32>
    %22 = arith.addf %20, %21 : vector<2x256xf32>
    %c10 = arith.constant 10 : index
    %c0_15 = arith.constant 0 : index
    %23 = vector.load %arg0[%c10, %c0_15] : memref<16x16xbf16, #tpu.memory_space<vmem>>, vector<2x16xbf16>
    %cst_16 = arith.constant dense<0.000000e+00> : vector<2x256xf32>
    %24 = tpu.matmul %23, %0, %cst_16 {dimension_numbers = #tpu.dot_dimension_numbers<[1], [0], [0], [1], [0, 0, 1, 1], [], []>} : vector<2x16xbf16>, vector<16x256xbf16>, vector<2x256xf32> -> vector<2x256xf32>
    %25 = vector.broadcast %2 : vector<1x256xf32> to vector<2x256xf32>
    %26 = arith.addf %24, %25 : vector<2x256xf32>
    %c12 = arith.constant 12 : index
    %c0_17 = arith.constant 0 : index
    %27 = vector.load %arg0[%c12, %c0_17] : memref<16x16xbf16, #tpu.memory_space<vmem>>, vector<2x16xbf16>
    %cst_18 = arith.constant dense<0.000000e+00> : vector<2x256xf32>
    %28 = tpu.matmul %27, %0, %cst_18 {dimension_numbers = #tpu.dot_dimension_numbers<[1], [0], [0], [1], [0, 0, 1, 1], [], []>} : vector<2x16xbf16>, vector<16x256xbf16>, vector<2x256xf32> -> vector<2x256xf32>
    %29 = vector.broadcast %2 : vector<1x256xf32> to vector<2x256xf32>
    %30 = arith.addf %28, %29 : vector<2x256xf32>
    %c14 = arith.constant 14 : index
    %c0_19 = arith.constant 0 : index
    %31 = vector.load %arg0[%c14, %c0_19] : memref<16x16xbf16, #tpu.memory_space<vmem>>, vector<2x16xbf16>
    %cst_20 = arith.constant dense<0.000000e+00> : vector<2x256xf32>
    %32 = tpu.matmul %31, %0, %cst_20 {dimension_numbers = #tpu.dot_dimension_numbers<[1], [0], [0], [1], [0, 0, 1, 1], [], []>} : vector<2x16xbf16>, vector<16x256xbf16>, vector<2x256xf32> -> vector<2x256xf32>
    %33 = vector.broadcast %2 : vector<1x256xf32> to vector<2x256xf32>
    %34 = arith.addf %32, %33 : vector<2x256xf32>
    %cst_21 = arith.constant 0.000000e+00 : f32
    %35 = vector.broadcast %cst_21 : f32 to vector<2x64xf32>
    %cst_22 = arith.constant 0.000000e+00 : f32
    %36 = vector.broadcast %cst_22 : f32 to vector<2x64xf32>
    %37 = vector.extract_strided_slice %6 {offsets = [0, 0], sizes = [2, 128], strides = [1, 1]} : vector<2x256xf32> to vector<2x128xf32>
    %38 = vector.extract_strided_slice %34 {offsets = [0, 128], sizes = [2, 128], strides = [1, 1]} : vector<2x256xf32> to vector<2x128xf32>
    %39 = tpu.concatenate %37, %38 in 1 : vector<2x128xf32>, vector<2x128xf32> -> vector<2x256xf32>
    %40 = arith.truncf %35 : vector<2x64xf32> to vector<2x64xbf16>
    %cst_23 = arith.constant dense<0.000000e+00> : vector<2x256xf32>
    %41 = tpu.matmul %40, %1, %cst_23 {dimension_numbers = #tpu.dot_dimension_numbers<[1], [0], [0], [1], [0, 0, 1, 1], [], []>} : vector<2x64xbf16>, vector<64x256xbf16>, vector<2x256xf32> -> vector<2x256xf32>
    %42 = arith.addf %39, %41 : vector<2x256xf32>
    %43 = arith.negf %42 : vector<2x256xf32>
    %44 = math.exp %43 : vector<2x256xf32>
    %cst_24 = arith.constant 1.000000e+00 : f32
    %45 = vector.broadcast %cst_24 : f32 to vector<2x256xf32>
    %46 = arith.addf %45, %44 : vector<2x256xf32>
    %47 = arith.divf %45, %46 : vector<2x256xf32>
    %48 = vector.extract_strided_slice %47 {offsets = [0, 0], sizes = [2, 32], strides = [1, 1]} : vector<2x256xf32> to vector<2x32xf32>
    %49 = vector.extract_strided_slice %47 {offsets = [0, 128], sizes = [2, 32], strides = [1, 1]} : vector<2x256xf32> to vector<2x32xf32>
    %50 = tpu.concatenate %48, %49 in 1 : vector<2x32xf32>, vector<2x32xf32> -> vector<2x64xf32>
    %51 = vector.extract_strided_slice %47 {offsets = [0, 32], sizes = [2, 32], strides = [1, 1]} : vector<2x256xf32> to vector<2x32xf32>
    %52 = vector.extract_strided_slice %47 {offsets = [0, 160], sizes = [2, 32], strides = [1, 1]} : vector<2x256xf32> to vector<2x32xf32>
    %53 = tpu.concatenate %51, %52 in 1 : vector<2x32xf32>, vector<2x32xf32> -> vector<2x64xf32>
    %54 = vector.extract_strided_slice %47 {offsets = [0, 96], sizes = [2, 32], strides = [1, 1]} : vector<2x256xf32> to vector<2x32xf32>
    %55 = vector.extract_strided_slice %47 {offsets = [0, 224], sizes = [2, 32], strides = [1, 1]} : vector<2x256xf32> to vector<2x32xf32>
    %56 = tpu.concatenate %54, %55 in 1 : vector<2x32xf32>, vector<2x32xf32> -> vector<2x64xf32>
    %57 = vector.extract_strided_slice %42 {offsets = [0, 64], sizes = [2, 32], strides = [1, 1]} : vector<2x256xf32> to vector<2x32xf32>
    %58 = vector.extract_strided_slice %42 {offsets = [0, 192], sizes = [2, 32], strides = [1, 1]} : vector<2x256xf32> to vector<2x32xf32>
    %59 = tpu.concatenate %57, %58 in 1 : vector<2x32xf32>, vector<2x32xf32> -> vector<2x64xf32>
    %60 = math.tanh %59 : vector<2x64xf32>
    %61 = arith.mulf %53, %36 : vector<2x64xf32>
    %62 = arith.mulf %50, %60 : vector<2x64xf32>
    %63 = arith.addf %61, %62 : vector<2x64xf32>
    %64 = math.tanh %63 : vector<2x64xf32>
    %65 = arith.mulf %56, %64 : vector<2x64xf32>
    %66 = vector.extract_strided_slice %10 {offsets = [0, 0], sizes = [2, 128], strides = [1, 1]} : vector<2x256xf32> to vector<2x128xf32>
    %67 = vector.extract_strided_slice %30 {offsets = [0, 128], sizes = [2, 128], strides = [1, 1]} : vector<2x256xf32> to vector<2x128xf32>
    %68 = tpu.concatenate %66, %67 in 1 : vector<2x128xf32>, vector<2x128xf32> -> vector<2x256xf32>
    %69 = arith.truncf %65 : vector<2x64xf32> to vector<2x64xbf16>
    %cst_25 = arith.constant dense<0.000000e+00> : vector<2x256xf32>
    %70 = tpu.matmul %69, %1, %cst_25 {dimension_numbers = #tpu.dot_dimension_numbers<[1], [0], [0], [1], [0, 0, 1, 1], [], []>} : vector<2x64xbf16>, vector<64x256xbf16>, vector<2x256xf32> -> vector<2x256xf32>
    %71 = arith.addf %68, %70 : vector<2x256xf32>
    %72 = arith.negf %71 : vector<2x256xf32>
    %73 = math.exp %72 : vector<2x256xf32>
    %cst_26 = arith.constant 1.000000e+00 : f32
    %74 = vector.broadcast %cst_26 : f32 to vector<2x256xf32>
    %75 = arith.addf %74, %73 : vector<2x256xf32>
    %76 = arith.divf %74, %75 : vector<2x256xf32>
    %77 = vector.extract_strided_slice %76 {offsets = [0, 0], sizes = [2, 32], strides = [1, 1]} : vector<2x256xf32> to vector<2x32xf32>
    %78 = vector.extract_strided_slice %76 {offsets = [0, 128], sizes = [2, 32], strides = [1, 1]} : vector<2x256xf32> to vector<2x32xf32>
    %79 = tpu.concatenate %77, %78 in 1 : vector<2x32xf32>, vector<2x32xf32> -> vector<2x64xf32>
    %80 = vector.extract_strided_slice %76 {offsets = [0, 32], sizes = [2, 32], strides = [1, 1]} : vector<2x256xf32> to vector<2x32xf32>
    %81 = vector.extract_strided_slice %76 {offsets = [0, 160], sizes = [2, 32], strides = [1, 1]} : vector<2x256xf32> to vector<2x32xf32>
    %82 = tpu.concatenate %80, %81 in 1 : vector<2x32xf32>, vector<2x32xf32> -> vector<2x64xf32>
    %83 = vector.extract_strided_slice %76 {offsets = [0, 96], sizes = [2, 32], strides = [1, 1]} : vector<2x256xf32> to vector<2x32xf32>
    %84 = vector.extract_strided_slice %76 {offsets = [0, 224], sizes = [2, 32], strides = [1, 1]} : vector<2x256xf32> to vector<2x32xf32>
    %85 = tpu.concatenate %83, %84 in 1 : vector<2x32xf32>, vector<2x32xf32> -> vector<2x64xf32>
    %86 = vector.extract_strided_slice %71 {offsets = [0, 64], sizes = [2, 32], strides = [1, 1]} : vector<2x256xf32> to vector<2x32xf32>
    %87 = vector.extract_strided_slice %71 {offsets = [0, 192], sizes = [2, 32], strides = [1, 1]} : vector<2x256xf32> to vector<2x32xf32>
    %88 = tpu.concatenate %86, %87 in 1 : vector<2x32xf32>, vector<2x32xf32> -> vector<2x64xf32>
    %89 = math.tanh %88 : vector<2x64xf32>
    %90 = arith.mulf %82, %63 : vector<2x64xf32>
    %91 = arith.mulf %79, %89 : vector<2x64xf32>
    %92 = arith.addf %90, %91 : vector<2x64xf32>
    %93 = math.tanh %92 : vector<2x64xf32>
    %94 = arith.mulf %85, %93 : vector<2x64xf32>
    %95 = vector.extract_strided_slice %14 {offsets = [0, 0], sizes = [2, 128], strides = [1, 1]} : vector<2x256xf32> to vector<2x128xf32>
    %96 = vector.extract_strided_slice %26 {offsets = [0, 128], sizes = [2, 128], strides = [1, 1]} : vector<2x256xf32> to vector<2x128xf32>
    %97 = tpu.concatenate %95, %96 in 1 : vector<2x128xf32>, vector<2x128xf32> -> vector<2x256xf32>
    %98 = arith.truncf %94 : vector<2x64xf32> to vector<2x64xbf16>
    %cst_27 = arith.constant dense<0.000000e+00> : vector<2x256xf32>
    %99 = tpu.matmul %98, %1, %cst_27 {dimension_numbers = #tpu.dot_dimension_numbers<[1], [0], [0], [1], [0, 0, 1, 1], [], []>} : vector<2x64xbf16>, vector<64x256xbf16>, vector<2x256xf32> -> vector<2x256xf32>
    %100 = arith.addf %97, %99 : vector<2x256xf32>
    %101 = arith.negf %100 : vector<2x256xf32>
    %102 = math.exp %101 : vector<2x256xf32>
    %cst_28 = arith.constant 1.000000e+00 : f32
    %103 = vector.broadcast %cst_28 : f32 to vector<2x256xf32>
    %104 = arith.addf %103, %102 : vector<2x256xf32>
    %105 = arith.divf %103, %104 : vector<2x256xf32>
    %106 = vector.extract_strided_slice %105 {offsets = [0, 0], sizes = [2, 32], strides = [1, 1]} : vector<2x256xf32> to vector<2x32xf32>
    %107 = vector.extract_strided_slice %105 {offsets = [0, 128], sizes = [2, 32], strides = [1, 1]} : vector<2x256xf32> to vector<2x32xf32>
    %108 = tpu.concatenate %106, %107 in 1 : vector<2x32xf32>, vector<2x32xf32> -> vector<2x64xf32>
    %109 = vector.extract_strided_slice %105 {offsets = [0, 32], sizes = [2, 32], strides = [1, 1]} : vector<2x256xf32> to vector<2x32xf32>
    %110 = vector.extract_strided_slice %105 {offsets = [0, 160], sizes = [2, 32], strides = [1, 1]} : vector<2x256xf32> to vector<2x32xf32>
    %111 = tpu.concatenate %109, %110 in 1 : vector<2x32xf32>, vector<2x32xf32> -> vector<2x64xf32>
    %112 = vector.extract_strided_slice %105 {offsets = [0, 96], sizes = [2, 32], strides = [1, 1]} : vector<2x256xf32> to vector<2x32xf32>
    %113 = vector.extract_strided_slice %105 {offsets = [0, 224], sizes = [2, 32], strides = [1, 1]} : vector<2x256xf32> to vector<2x32xf32>
    %114 = tpu.concatenate %112, %113 in 1 : vector<2x32xf32>, vector<2x32xf32> -> vector<2x64xf32>
    %115 = vector.extract_strided_slice %100 {offsets = [0, 64], sizes = [2, 32], strides = [1, 1]} : vector<2x256xf32> to vector<2x32xf32>
    %116 = vector.extract_strided_slice %100 {offsets = [0, 192], sizes = [2, 32], strides = [1, 1]} : vector<2x256xf32> to vector<2x32xf32>
    %117 = tpu.concatenate %115, %116 in 1 : vector<2x32xf32>, vector<2x32xf32> -> vector<2x64xf32>
    %118 = math.tanh %117 : vector<2x64xf32>
    %119 = arith.mulf %111, %92 : vector<2x64xf32>
    %120 = arith.mulf %108, %118 : vector<2x64xf32>
    %121 = arith.addf %119, %120 : vector<2x64xf32>
    %122 = math.tanh %121 : vector<2x64xf32>
    %123 = arith.mulf %114, %122 : vector<2x64xf32>
    %124 = vector.extract_strided_slice %18 {offsets = [0, 0], sizes = [2, 128], strides = [1, 1]} : vector<2x256xf32> to vector<2x128xf32>
    %125 = vector.extract_strided_slice %22 {offsets = [0, 128], sizes = [2, 128], strides = [1, 1]} : vector<2x256xf32> to vector<2x128xf32>
    %126 = tpu.concatenate %124, %125 in 1 : vector<2x128xf32>, vector<2x128xf32> -> vector<2x256xf32>
    %127 = arith.truncf %123 : vector<2x64xf32> to vector<2x64xbf16>
    %cst_29 = arith.constant dense<0.000000e+00> : vector<2x256xf32>
    %128 = tpu.matmul %127, %1, %cst_29 {dimension_numbers = #tpu.dot_dimension_numbers<[1], [0], [0], [1], [0, 0, 1, 1], [], []>} : vector<2x64xbf16>, vector<64x256xbf16>, vector<2x256xf32> -> vector<2x256xf32>
    %129 = arith.addf %126, %128 : vector<2x256xf32>
    %130 = arith.negf %129 : vector<2x256xf32>
    %131 = math.exp %130 : vector<2x256xf32>
    %cst_30 = arith.constant 1.000000e+00 : f32
    %132 = vector.broadcast %cst_30 : f32 to vector<2x256xf32>
    %133 = arith.addf %132, %131 : vector<2x256xf32>
    %134 = arith.divf %132, %133 : vector<2x256xf32>
    %135 = vector.extract_strided_slice %134 {offsets = [0, 0], sizes = [2, 32], strides = [1, 1]} : vector<2x256xf32> to vector<2x32xf32>
    %136 = vector.extract_strided_slice %134 {offsets = [0, 128], sizes = [2, 32], strides = [1, 1]} : vector<2x256xf32> to vector<2x32xf32>
    %137 = tpu.concatenate %135, %136 in 1 : vector<2x32xf32>, vector<2x32xf32> -> vector<2x64xf32>
    %138 = vector.extract_strided_slice %134 {offsets = [0, 32], sizes = [2, 32], strides = [1, 1]} : vector<2x256xf32> to vector<2x32xf32>
    %139 = vector.extract_strided_slice %134 {offsets = [0, 160], sizes = [2, 32], strides = [1, 1]} : vector<2x256xf32> to vector<2x32xf32>
    %140 = tpu.concatenate %138, %139 in 1 : vector<2x32xf32>, vector<2x32xf32> -> vector<2x64xf32>
    %141 = vector.extract_strided_slice %134 {offsets = [0, 96], sizes = [2, 32], strides = [1, 1]} : vector<2x256xf32> to vector<2x32xf32>
    %142 = vector.extract_strided_slice %134 {offsets = [0, 224], sizes = [2, 32], strides = [1, 1]} : vector<2x256xf32> to vector<2x32xf32>
    %143 = tpu.concatenate %141, %142 in 1 : vector<2x32xf32>, vector<2x32xf32> -> vector<2x64xf32>
    %144 = vector.extract_strided_slice %129 {offsets = [0, 64], sizes = [2, 32], strides = [1, 1]} : vector<2x256xf32> to vector<2x32xf32>
    %145 = vector.extract_strided_slice %129 {offsets = [0, 192], sizes = [2, 32], strides = [1, 1]} : vector<2x256xf32> to vector<2x32xf32>
    %146 = tpu.concatenate %144, %145 in 1 : vector<2x32xf32>, vector<2x32xf32> -> vector<2x64xf32>
    %147 = math.tanh %146 : vector<2x64xf32>
    %148 = arith.mulf %140, %121 : vector<2x64xf32>
    %149 = arith.mulf %137, %147 : vector<2x64xf32>
    %150 = arith.addf %148, %149 : vector<2x64xf32>
    %151 = math.tanh %150 : vector<2x64xf32>
    %152 = arith.mulf %143, %151 : vector<2x64xf32>
    %153 = vector.extract_strided_slice %22 {offsets = [0, 0], sizes = [2, 128], strides = [1, 1]} : vector<2x256xf32> to vector<2x128xf32>
    %154 = vector.extract_strided_slice %18 {offsets = [0, 128], sizes = [2, 128], strides = [1, 1]} : vector<2x256xf32> to vector<2x128xf32>
    %155 = tpu.concatenate %153, %154 in 1 : vector<2x128xf32>, vector<2x128xf32> -> vector<2x256xf32>
    %156 = arith.truncf %152 : vector<2x64xf32> to vector<2x64xbf16>
    %cst_31 = arith.constant dense<0.000000e+00> : vector<2x256xf32>
    %157 = tpu.matmul %156, %1, %cst_31 {dimension_numbers = #tpu.dot_dimension_numbers<[1], [0], [0], [1], [0, 0, 1, 1], [], []>} : vector<2x64xbf16>, vector<64x256xbf16>, vector<2x256xf32> -> vector<2x256xf32>
    %158 = arith.addf %155, %157 : vector<2x256xf32>
    %159 = arith.negf %158 : vector<2x256xf32>
    %160 = math.exp %159 : vector<2x256xf32>
    %cst_32 = arith.constant 1.000000e+00 : f32
    %161 = vector.broadcast %cst_32 : f32 to vector<2x256xf32>
    %162 = arith.addf %161, %160 : vector<2x256xf32>
    %163 = arith.divf %161, %162 : vector<2x256xf32>
    %164 = vector.extract_strided_slice %163 {offsets = [0, 0], sizes = [2, 32], strides = [1, 1]} : vector<2x256xf32> to vector<2x32xf32>
    %165 = vector.extract_strided_slice %163 {offsets = [0, 128], sizes = [2, 32], strides = [1, 1]} : vector<2x256xf32> to vector<2x32xf32>
    %166 = tpu.concatenate %164, %165 in 1 : vector<2x32xf32>, vector<2x32xf32> -> vector<2x64xf32>
    %167 = vector.extract_strided_slice %163 {offsets = [0, 32], sizes = [2, 32], strides = [1, 1]} : vector<2x256xf32> to vector<2x32xf32>
    %168 = vector.extract_strided_slice %163 {offsets = [0, 160], sizes = [2, 32], strides = [1, 1]} : vector<2x256xf32> to vector<2x32xf32>
    %169 = tpu.concatenate %167, %168 in 1 : vector<2x32xf32>, vector<2x32xf32> -> vector<2x64xf32>
    %170 = vector.extract_strided_slice %163 {offsets = [0, 96], sizes = [2, 32], strides = [1, 1]} : vector<2x256xf32> to vector<2x32xf32>
    %171 = vector.extract_strided_slice %163 {offsets = [0, 224], sizes = [2, 32], strides = [1, 1]} : vector<2x256xf32> to vector<2x32xf32>
    %172 = tpu.concatenate %170, %171 in 1 : vector<2x32xf32>, vector<2x32xf32> -> vector<2x64xf32>
    %173 = vector.extract_strided_slice %158 {offsets = [0, 64], sizes = [2, 32], strides = [1, 1]} : vector<2x256xf32> to vector<2x32xf32>
    %174 = vector.extract_strided_slice %158 {offsets = [0, 192], sizes = [2, 32], strides = [1, 1]} : vector<2x256xf32> to vector<2x32xf32>
    %175 = tpu.concatenate %173, %174 in 1 : vector<2x32xf32>, vector<2x32xf32> -> vector<2x64xf32>
    %176 = math.tanh %175 : vector<2x64xf32>
    %177 = arith.mulf %169, %150 : vector<2x64xf32>
    %178 = arith.mulf %166, %176 : vector<2x64xf32>
    %179 = arith.addf %177, %178 : vector<2x64xf32>
    %180 = math.tanh %179 : vector<2x64xf32>
    %181 = arith.mulf %172, %180 : vector<2x64xf32>
    %182 = vector.extract_strided_slice %26 {offsets = [0, 0], sizes = [2, 128], strides = [1, 1]} : vector<2x256xf32> to vector<2x128xf32>
    %183 = vector.extract_strided_slice %14 {offsets = [0, 128], sizes = [2, 128], strides = [1, 1]} : vector<2x256xf32> to vector<2x128xf32>
    %184 = tpu.concatenate %182, %183 in 1 : vector<2x128xf32>, vector<2x128xf32> -> vector<2x256xf32>
    %185 = arith.truncf %181 : vector<2x64xf32> to vector<2x64xbf16>
    %cst_33 = arith.constant dense<0.000000e+00> : vector<2x256xf32>
    %186 = tpu.matmul %185, %1, %cst_33 {dimension_numbers = #tpu.dot_dimension_numbers<[1], [0], [0], [1], [0, 0, 1, 1], [], []>} : vector<2x64xbf16>, vector<64x256xbf16>, vector<2x256xf32> -> vector<2x256xf32>
    %187 = arith.addf %184, %186 : vector<2x256xf32>
    %188 = arith.negf %187 : vector<2x256xf32>
    %189 = math.exp %188 : vector<2x256xf32>
    %cst_34 = arith.constant 1.000000e+00 : f32
    %190 = vector.broadcast %cst_34 : f32 to vector<2x256xf32>
    %191 = arith.addf %190, %189 : vector<2x256xf32>
    %192 = arith.divf %190, %191 : vector<2x256xf32>
    %193 = vector.extract_strided_slice %192 {offsets = [0, 0], sizes = [2, 32], strides = [1, 1]} : vector<2x256xf32> to vector<2x32xf32>
    %194 = vector.extract_strided_slice %192 {offsets = [0, 128], sizes = [2, 32], strides = [1, 1]} : vector<2x256xf32> to vector<2x32xf32>
    %195 = tpu.concatenate %193, %194 in 1 : vector<2x32xf32>, vector<2x32xf32> -> vector<2x64xf32>
    %196 = vector.extract_strided_slice %192 {offsets = [0, 32], sizes = [2, 32], strides = [1, 1]} : vector<2x256xf32> to vector<2x32xf32>
    %197 = vector.extract_strided_slice %192 {offsets = [0, 160], sizes = [2, 32], strides = [1, 1]} : vector<2x256xf32> to vector<2x32xf32>
    %198 = tpu.concatenate %196, %197 in 1 : vector<2x32xf32>, vector<2x32xf32> -> vector<2x64xf32>
    %199 = vector.extract_strided_slice %192 {offsets = [0, 96], sizes = [2, 32], strides = [1, 1]} : vector<2x256xf32> to vector<2x32xf32>
    %200 = vector.extract_strided_slice %192 {offsets = [0, 224], sizes = [2, 32], strides = [1, 1]} : vector<2x256xf32> to vector<2x32xf32>
    %201 = tpu.concatenate %199, %200 in 1 : vector<2x32xf32>, vector<2x32xf32> -> vector<2x64xf32>
    %202 = vector.extract_strided_slice %187 {offsets = [0, 64], sizes = [2, 32], strides = [1, 1]} : vector<2x256xf32> to vector<2x32xf32>
    %203 = vector.extract_strided_slice %187 {offsets = [0, 192], sizes = [2, 32], strides = [1, 1]} : vector<2x256xf32> to vector<2x32xf32>
    %204 = tpu.concatenate %202, %203 in 1 : vector<2x32xf32>, vector<2x32xf32> -> vector<2x64xf32>
    %205 = math.tanh %204 : vector<2x64xf32>
    %206 = arith.mulf %198, %179 : vector<2x64xf32>
    %207 = arith.mulf %195, %205 : vector<2x64xf32>
    %208 = arith.addf %206, %207 : vector<2x64xf32>
    %209 = math.tanh %208 : vector<2x64xf32>
    %210 = arith.mulf %201, %209 : vector<2x64xf32>
    %211 = vector.extract_strided_slice %30 {offsets = [0, 0], sizes = [2, 128], strides = [1, 1]} : vector<2x256xf32> to vector<2x128xf32>
    %212 = vector.extract_strided_slice %10 {offsets = [0, 128], sizes = [2, 128], strides = [1, 1]} : vector<2x256xf32> to vector<2x128xf32>
    %213 = tpu.concatenate %211, %212 in 1 : vector<2x128xf32>, vector<2x128xf32> -> vector<2x256xf32>
    %214 = arith.truncf %210 : vector<2x64xf32> to vector<2x64xbf16>
    %cst_35 = arith.constant dense<0.000000e+00> : vector<2x256xf32>
    %215 = tpu.matmul %214, %1, %cst_35 {dimension_numbers = #tpu.dot_dimension_numbers<[1], [0], [0], [1], [0, 0, 1, 1], [], []>} : vector<2x64xbf16>, vector<64x256xbf16>, vector<2x256xf32> -> vector<2x256xf32>
    %216 = arith.addf %213, %215 : vector<2x256xf32>
    %217 = arith.negf %216 : vector<2x256xf32>
    %218 = math.exp %217 : vector<2x256xf32>
    %cst_36 = arith.constant 1.000000e+00 : f32
    %219 = vector.broadcast %cst_36 : f32 to vector<2x256xf32>
    %220 = arith.addf %219, %218 : vector<2x256xf32>
    %221 = arith.divf %219, %220 : vector<2x256xf32>
    %222 = vector.extract_strided_slice %221 {offsets = [0, 0], sizes = [2, 32], strides = [1, 1]} : vector<2x256xf32> to vector<2x32xf32>
    %223 = vector.extract_strided_slice %221 {offsets = [0, 128], sizes = [2, 32], strides = [1, 1]} : vector<2x256xf32> to vector<2x32xf32>
    %224 = tpu.concatenate %222, %223 in 1 : vector<2x32xf32>, vector<2x32xf32> -> vector<2x64xf32>
    %225 = vector.extract_strided_slice %221 {offsets = [0, 32], sizes = [2, 32], strides = [1, 1]} : vector<2x256xf32> to vector<2x32xf32>
    %226 = vector.extract_strided_slice %221 {offsets = [0, 160], sizes = [2, 32], strides = [1, 1]} : vector<2x256xf32> to vector<2x32xf32>
    %227 = tpu.concatenate %225, %226 in 1 : vector<2x32xf32>, vector<2x32xf32> -> vector<2x64xf32>
    %228 = vector.extract_strided_slice %221 {offsets = [0, 96], sizes = [2, 32], strides = [1, 1]} : vector<2x256xf32> to vector<2x32xf32>
    %229 = vector.extract_strided_slice %221 {offsets = [0, 224], sizes = [2, 32], strides = [1, 1]} : vector<2x256xf32> to vector<2x32xf32>
    %230 = tpu.concatenate %228, %229 in 1 : vector<2x32xf32>, vector<2x32xf32> -> vector<2x64xf32>
    %231 = vector.extract_strided_slice %216 {offsets = [0, 64], sizes = [2, 32], strides = [1, 1]} : vector<2x256xf32> to vector<2x32xf32>
    %232 = vector.extract_strided_slice %216 {offsets = [0, 192], sizes = [2, 32], strides = [1, 1]} : vector<2x256xf32> to vector<2x32xf32>
    %233 = tpu.concatenate %231, %232 in 1 : vector<2x32xf32>, vector<2x32xf32> -> vector<2x64xf32>
    %234 = math.tanh %233 : vector<2x64xf32>
    %235 = arith.mulf %227, %208 : vector<2x64xf32>
    %236 = arith.mulf %224, %234 : vector<2x64xf32>
    %237 = arith.addf %235, %236 : vector<2x64xf32>
    %238 = math.tanh %237 : vector<2x64xf32>
    %239 = arith.mulf %230, %238 : vector<2x64xf32>
    %240 = vector.extract_strided_slice %34 {offsets = [0, 0], sizes = [2, 128], strides = [1, 1]} : vector<2x256xf32> to vector<2x128xf32>
    %241 = vector.extract_strided_slice %6 {offsets = [0, 128], sizes = [2, 128], strides = [1, 1]} : vector<2x256xf32> to vector<2x128xf32>
    %242 = tpu.concatenate %240, %241 in 1 : vector<2x128xf32>, vector<2x128xf32> -> vector<2x256xf32>
    %243 = arith.truncf %239 : vector<2x64xf32> to vector<2x64xbf16>
    %cst_37 = arith.constant dense<0.000000e+00> : vector<2x256xf32>
    %244 = tpu.matmul %243, %1, %cst_37 {dimension_numbers = #tpu.dot_dimension_numbers<[1], [0], [0], [1], [0, 0, 1, 1], [], []>} : vector<2x64xbf16>, vector<64x256xbf16>, vector<2x256xf32> -> vector<2x256xf32>
    %245 = arith.addf %242, %244 : vector<2x256xf32>
    %246 = arith.negf %245 : vector<2x256xf32>
    %247 = math.exp %246 : vector<2x256xf32>
    %cst_38 = arith.constant 1.000000e+00 : f32
    %248 = vector.broadcast %cst_38 : f32 to vector<2x256xf32>
    %249 = arith.addf %248, %247 : vector<2x256xf32>
    %250 = arith.divf %248, %249 : vector<2x256xf32>
    %251 = vector.extract_strided_slice %250 {offsets = [0, 0], sizes = [2, 32], strides = [1, 1]} : vector<2x256xf32> to vector<2x32xf32>
    %252 = vector.extract_strided_slice %250 {offsets = [0, 128], sizes = [2, 32], strides = [1, 1]} : vector<2x256xf32> to vector<2x32xf32>
    %253 = tpu.concatenate %251, %252 in 1 : vector<2x32xf32>, vector<2x32xf32> -> vector<2x64xf32>
    %254 = vector.extract_strided_slice %250 {offsets = [0, 32], sizes = [2, 32], strides = [1, 1]} : vector<2x256xf32> to vector<2x32xf32>
    %255 = vector.extract_strided_slice %250 {offsets = [0, 160], sizes = [2, 32], strides = [1, 1]} : vector<2x256xf32> to vector<2x32xf32>
    %256 = tpu.concatenate %254, %255 in 1 : vector<2x32xf32>, vector<2x32xf32> -> vector<2x64xf32>
    %257 = vector.extract_strided_slice %250 {offsets = [0, 96], sizes = [2, 32], strides = [1, 1]} : vector<2x256xf32> to vector<2x32xf32>
    %258 = vector.extract_strided_slice %250 {offsets = [0, 224], sizes = [2, 32], strides = [1, 1]} : vector<2x256xf32> to vector<2x32xf32>
    %259 = tpu.concatenate %257, %258 in 1 : vector<2x32xf32>, vector<2x32xf32> -> vector<2x64xf32>
    %260 = vector.extract_strided_slice %245 {offsets = [0, 64], sizes = [2, 32], strides = [1, 1]} : vector<2x256xf32> to vector<2x32xf32>
    %261 = vector.extract_strided_slice %245 {offsets = [0, 192], sizes = [2, 32], strides = [1, 1]} : vector<2x256xf32> to vector<2x32xf32>
    %262 = tpu.concatenate %260, %261 in 1 : vector<2x32xf32>, vector<2x32xf32> -> vector<2x64xf32>
    %263 = math.tanh %262 : vector<2x64xf32>
    %264 = arith.mulf %256, %237 : vector<2x64xf32>
    %265 = arith.mulf %253, %263 : vector<2x64xf32>
    %266 = arith.addf %264, %265 : vector<2x64xf32>
    %267 = math.tanh %266 : vector<2x64xf32>
    %268 = arith.mulf %259, %267 : vector<2x64xf32>
    %c0_39 = arith.constant 0 : index
    %c0_40 = arith.constant 0 : index
    %269 = vector.load %arg4[%c0_39, %c0_40] : memref<64x256xbf16, #tpu.memory_space<vmem>>, vector<64x256xbf16>
    %c0_41 = arith.constant 0 : index
    %c0_42 = arith.constant 0 : index
    %270 = vector.load %arg5[%c0_41, %c0_42] : memref<64x256xbf16, #tpu.memory_space<vmem>>, vector<64x256xbf16>
    %c0_43 = arith.constant 0 : index
    %c0_44 = arith.constant 0 : index
    %271 = vector.load %arg6[%c0_43, %c0_44] : memref<1x256xf32, #tpu.memory_space<vmem>>, vector<1x256xf32>
    %272 = vector.extract_strided_slice %65 {offsets = [0, 0], sizes = [2, 32], strides = [1, 1]} : vector<2x64xf32> to vector<2x32xf32>
    %273 = vector.extract_strided_slice %268 {offsets = [0, 32], sizes = [2, 32], strides = [1, 1]} : vector<2x64xf32> to vector<2x32xf32>
    %274 = tpu.concatenate %272, %273 in 1 : vector<2x32xf32>, vector<2x32xf32> -> vector<2x64xf32>
    %275 = arith.truncf %274 : vector<2x64xf32> to vector<2x64xbf16>
    %cst_45 = arith.constant dense<0.000000e+00> : vector<2x256xf32>
    %276 = tpu.matmul %275, %269, %cst_45 {dimension_numbers = #tpu.dot_dimension_numbers<[1], [0], [0], [1], [0, 0, 1, 1], [], []>} : vector<2x64xbf16>, vector<64x256xbf16>, vector<2x256xf32> -> vector<2x256xf32>
    %277 = vector.broadcast %271 : vector<1x256xf32> to vector<2x256xf32>
    %278 = arith.addf %276, %277 : vector<2x256xf32>
    %279 = vector.extract_strided_slice %94 {offsets = [0, 0], sizes = [2, 32], strides = [1, 1]} : vector<2x64xf32> to vector<2x32xf32>
    %280 = vector.extract_strided_slice %239 {offsets = [0, 32], sizes = [2, 32], strides = [1, 1]} : vector<2x64xf32> to vector<2x32xf32>
    %281 = tpu.concatenate %279, %280 in 1 : vector<2x32xf32>, vector<2x32xf32> -> vector<2x64xf32>
    %282 = arith.truncf %281 : vector<2x64xf32> to vector<2x64xbf16>
    %cst_46 = arith.constant dense<0.000000e+00> : vector<2x256xf32>
    %283 = tpu.matmul %282, %269, %cst_46 {dimension_numbers = #tpu.dot_dimension_numbers<[1], [0], [0], [1], [0, 0, 1, 1], [], []>} : vector<2x64xbf16>, vector<64x256xbf16>, vector<2x256xf32> -> vector<2x256xf32>
    %284 = vector.broadcast %271 : vector<1x256xf32> to vector<2x256xf32>
    %285 = arith.addf %283, %284 : vector<2x256xf32>
    %286 = vector.extract_strided_slice %123 {offsets = [0, 0], sizes = [2, 32], strides = [1, 1]} : vector<2x64xf32> to vector<2x32xf32>
    %287 = vector.extract_strided_slice %210 {offsets = [0, 32], sizes = [2, 32], strides = [1, 1]} : vector<2x64xf32> to vector<2x32xf32>
    %288 = tpu.concatenate %286, %287 in 1 : vector<2x32xf32>, vector<2x32xf32> -> vector<2x64xf32>
    %289 = arith.truncf %288 : vector<2x64xf32> to vector<2x64xbf16>
    %cst_47 = arith.constant dense<0.000000e+00> : vector<2x256xf32>
    %290 = tpu.matmul %289, %269, %cst_47 {dimension_numbers = #tpu.dot_dimension_numbers<[1], [0], [0], [1], [0, 0, 1, 1], [], []>} : vector<2x64xbf16>, vector<64x256xbf16>, vector<2x256xf32> -> vector<2x256xf32>
    %291 = vector.broadcast %271 : vector<1x256xf32> to vector<2x256xf32>
    %292 = arith.addf %290, %291 : vector<2x256xf32>
    %293 = vector.extract_strided_slice %152 {offsets = [0, 0], sizes = [2, 32], strides = [1, 1]} : vector<2x64xf32> to vector<2x32xf32>
    %294 = vector.extract_strided_slice %181 {offsets = [0, 32], sizes = [2, 32], strides = [1, 1]} : vector<2x64xf32> to vector<2x32xf32>
    %295 = tpu.concatenate %293, %294 in 1 : vector<2x32xf32>, vector<2x32xf32> -> vector<2x64xf32>
    %296 = arith.truncf %295 : vector<2x64xf32> to vector<2x64xbf16>
    %cst_48 = arith.constant dense<0.000000e+00> : vector<2x256xf32>
    %297 = tpu.matmul %296, %269, %cst_48 {dimension_numbers = #tpu.dot_dimension_numbers<[1], [0], [0], [1], [0, 0, 1, 1], [], []>} : vector<2x64xbf16>, vector<64x256xbf16>, vector<2x256xf32> -> vector<2x256xf32>
    %298 = vector.broadcast %271 : vector<1x256xf32> to vector<2x256xf32>
    %299 = arith.addf %297, %298 : vector<2x256xf32>
    %300 = vector.extract_strided_slice %181 {offsets = [0, 0], sizes = [2, 32], strides = [1, 1]} : vector<2x64xf32> to vector<2x32xf32>
    %301 = vector.extract_strided_slice %152 {offsets = [0, 32], sizes = [2, 32], strides = [1, 1]} : vector<2x64xf32> to vector<2x32xf32>
    %302 = tpu.concatenate %300, %301 in 1 : vector<2x32xf32>, vector<2x32xf32> -> vector<2x64xf32>
    %303 = arith.truncf %302 : vector<2x64xf32> to vector<2x64xbf16>
    %cst_49 = arith.constant dense<0.000000e+00> : vector<2x256xf32>
    %304 = tpu.matmul %303, %269, %cst_49 {dimension_numbers = #tpu.dot_dimension_numbers<[1], [0], [0], [1], [0, 0, 1, 1], [], []>} : vector<2x64xbf16>, vector<64x256xbf16>, vector<2x256xf32> -> vector<2x256xf32>
    %305 = vector.broadcast %271 : vector<1x256xf32> to vector<2x256xf32>
    %306 = arith.addf %304, %305 : vector<2x256xf32>
    %307 = vector.extract_strided_slice %210 {offsets = [0, 0], sizes = [2, 32], strides = [1, 1]} : vector<2x64xf32> to vector<2x32xf32>
    %308 = vector.extract_strided_slice %123 {offsets = [0, 32], sizes = [2, 32], strides = [1, 1]} : vector<2x64xf32> to vector<2x32xf32>
    %309 = tpu.concatenate %307, %308 in 1 : vector<2x32xf32>, vector<2x32xf32> -> vector<2x64xf32>
    %310 = arith.truncf %309 : vector<2x64xf32> to vector<2x64xbf16>
    %cst_50 = arith.constant dense<0.000000e+00> : vector<2x256xf32>
    %311 = tpu.matmul %310, %269, %cst_50 {dimension_numbers = #tpu.dot_dimension_numbers<[1], [0], [0], [1], [0, 0, 1, 1], [], []>} : vector<2x64xbf16>, vector<64x256xbf16>, vector<2x256xf32> -> vector<2x256xf32>
    %312 = vector.broadcast %271 : vector<1x256xf32> to vector<2x256xf32>
    %313 = arith.addf %311, %312 : vector<2x256xf32>
    %314 = vector.extract_strided_slice %239 {offsets = [0, 0], sizes = [2, 32], strides = [1, 1]} : vector<2x64xf32> to vector<2x32xf32>
    %315 = vector.extract_strided_slice %94 {offsets = [0, 32], sizes = [2, 32], strides = [1, 1]} : vector<2x64xf32> to vector<2x32xf32>
    %316 = tpu.concatenate %314, %315 in 1 : vector<2x32xf32>, vector<2x32xf32> -> vector<2x64xf32>
    %317 = arith.truncf %316 : vector<2x64xf32> to vector<2x64xbf16>
    %cst_51 = arith.constant dense<0.000000e+00> : vector<2x256xf32>
    %318 = tpu.matmul %317, %269, %cst_51 {dimension_numbers = #tpu.dot_dimension_numbers<[1], [0], [0], [1], [0, 0, 1, 1], [], []>} : vector<2x64xbf16>, vector<64x256xbf16>, vector<2x256xf32> -> vector<2x256xf32>
    %319 = vector.broadcast %271 : vector<1x256xf32> to vector<2x256xf32>
    %320 = arith.addf %318, %319 : vector<2x256xf32>
    %321 = vector.extract_strided_slice %268 {offsets = [0, 0], sizes = [2, 32], strides = [1, 1]} : vector<2x64xf32> to vector<2x32xf32>
    %322 = vector.extract_strided_slice %65 {offsets = [0, 32], sizes = [2, 32], strides = [1, 1]} : vector<2x64xf32> to vector<2x32xf32>
    %323 = tpu.concatenate %321, %322 in 1 : vector<2x32xf32>, vector<2x32xf32> -> vector<2x64xf32>
    %324 = arith.truncf %323 : vector<2x64xf32> to vector<2x64xbf16>
    %cst_52 = arith.constant dense<0.000000e+00> : vector<2x256xf32>
    %325 = tpu.matmul %324, %269, %cst_52 {dimension_numbers = #tpu.dot_dimension_numbers<[1], [0], [0], [1], [0, 0, 1, 1], [], []>} : vector<2x64xbf16>, vector<64x256xbf16>, vector<2x256xf32> -> vector<2x256xf32>
    %326 = vector.broadcast %271 : vector<1x256xf32> to vector<2x256xf32>
    %327 = arith.addf %325, %326 : vector<2x256xf32>
    %cst_53 = arith.constant 0.000000e+00 : f32
    %328 = vector.broadcast %cst_53 : f32 to vector<2x64xf32>
    %cst_54 = arith.constant 0.000000e+00 : f32
    %329 = vector.broadcast %cst_54 : f32 to vector<2x64xf32>
    %330 = vector.extract_strided_slice %278 {offsets = [0, 0], sizes = [2, 128], strides = [1, 1]} : vector<2x256xf32> to vector<2x128xf32>
    %331 = vector.extract_strided_slice %327 {offsets = [0, 128], sizes = [2, 128], strides = [1, 1]} : vector<2x256xf32> to vector<2x128xf32>
    %332 = tpu.concatenate %330, %331 in 1 : vector<2x128xf32>, vector<2x128xf32> -> vector<2x256xf32>
    %333 = arith.truncf %328 : vector<2x64xf32> to vector<2x64xbf16>
    %cst_55 = arith.constant dense<0.000000e+00> : vector<2x256xf32>
    %334 = tpu.matmul %333, %270, %cst_55 {dimension_numbers = #tpu.dot_dimension_numbers<[1], [0], [0], [1], [0, 0, 1, 1], [], []>} : vector<2x64xbf16>, vector<64x256xbf16>, vector<2x256xf32> -> vector<2x256xf32>
    %335 = arith.addf %332, %334 : vector<2x256xf32>
    %336 = arith.negf %335 : vector<2x256xf32>
    %337 = math.exp %336 : vector<2x256xf32>
    %cst_56 = arith.constant 1.000000e+00 : f32
    %338 = vector.broadcast %cst_56 : f32 to vector<2x256xf32>
    %339 = arith.addf %338, %337 : vector<2x256xf32>
    %340 = arith.divf %338, %339 : vector<2x256xf32>
    %341 = vector.extract_strided_slice %340 {offsets = [0, 0], sizes = [2, 32], strides = [1, 1]} : vector<2x256xf32> to vector<2x32xf32>
    %342 = vector.extract_strided_slice %340 {offsets = [0, 128], sizes = [2, 32], strides = [1, 1]} : vector<2x256xf32> to vector<2x32xf32>
    %343 = tpu.concatenate %341, %342 in 1 : vector<2x32xf32>, vector<2x32xf32> -> vector<2x64xf32>
    %344 = vector.extract_strided_slice %340 {offsets = [0, 32], sizes = [2, 32], strides = [1, 1]} : vector<2x256xf32> to vector<2x32xf32>
    %345 = vector.extract_strided_slice %340 {offsets = [0, 160], sizes = [2, 32], strides = [1, 1]} : vector<2x256xf32> to vector<2x32xf32>
    %346 = tpu.concatenate %344, %345 in 1 : vector<2x32xf32>, vector<2x32xf32> -> vector<2x64xf32>
    %347 = vector.extract_strided_slice %340 {offsets = [0, 96], sizes = [2, 32], strides = [1, 1]} : vector<2x256xf32> to vector<2x32xf32>
    %348 = vector.extract_strided_slice %340 {offsets = [0, 224], sizes = [2, 32], strides = [1, 1]} : vector<2x256xf32> to vector<2x32xf32>
    %349 = tpu.concatenate %347, %348 in 1 : vector<2x32xf32>, vector<2x32xf32> -> vector<2x64xf32>
    %350 = vector.extract_strided_slice %335 {offsets = [0, 64], sizes = [2, 32], strides = [1, 1]} : vector<2x256xf32> to vector<2x32xf32>
    %351 = vector.extract_strided_slice %335 {offsets = [0, 192], sizes = [2, 32], strides = [1, 1]} : vector<2x256xf32> to vector<2x32xf32>
    %352 = tpu.concatenate %350, %351 in 1 : vector<2x32xf32>, vector<2x32xf32> -> vector<2x64xf32>
    %353 = math.tanh %352 : vector<2x64xf32>
    %354 = arith.mulf %346, %329 : vector<2x64xf32>
    %355 = arith.mulf %343, %353 : vector<2x64xf32>
    %356 = arith.addf %354, %355 : vector<2x64xf32>
    %357 = math.tanh %356 : vector<2x64xf32>
    %358 = arith.mulf %349, %357 : vector<2x64xf32>
    %359 = vector.extract_strided_slice %285 {offsets = [0, 0], sizes = [2, 128], strides = [1, 1]} : vector<2x256xf32> to vector<2x128xf32>
    %360 = vector.extract_strided_slice %320 {offsets = [0, 128], sizes = [2, 128], strides = [1, 1]} : vector<2x256xf32> to vector<2x128xf32>
    %361 = tpu.concatenate %359, %360 in 1 : vector<2x128xf32>, vector<2x128xf32> -> vector<2x256xf32>
    %362 = arith.truncf %358 : vector<2x64xf32> to vector<2x64xbf16>
    %cst_57 = arith.constant dense<0.000000e+00> : vector<2x256xf32>
    %363 = tpu.matmul %362, %270, %cst_57 {dimension_numbers = #tpu.dot_dimension_numbers<[1], [0], [0], [1], [0, 0, 1, 1], [], []>} : vector<2x64xbf16>, vector<64x256xbf16>, vector<2x256xf32> -> vector<2x256xf32>
    %364 = arith.addf %361, %363 : vector<2x256xf32>
    %365 = arith.negf %364 : vector<2x256xf32>
    %366 = math.exp %365 : vector<2x256xf32>
    %cst_58 = arith.constant 1.000000e+00 : f32
    %367 = vector.broadcast %cst_58 : f32 to vector<2x256xf32>
    %368 = arith.addf %367, %366 : vector<2x256xf32>
    %369 = arith.divf %367, %368 : vector<2x256xf32>
    %370 = vector.extract_strided_slice %369 {offsets = [0, 0], sizes = [2, 32], strides = [1, 1]} : vector<2x256xf32> to vector<2x32xf32>
    %371 = vector.extract_strided_slice %369 {offsets = [0, 128], sizes = [2, 32], strides = [1, 1]} : vector<2x256xf32> to vector<2x32xf32>
    %372 = tpu.concatenate %370, %371 in 1 : vector<2x32xf32>, vector<2x32xf32> -> vector<2x64xf32>
    %373 = vector.extract_strided_slice %369 {offsets = [0, 32], sizes = [2, 32], strides = [1, 1]} : vector<2x256xf32> to vector<2x32xf32>
    %374 = vector.extract_strided_slice %369 {offsets = [0, 160], sizes = [2, 32], strides = [1, 1]} : vector<2x256xf32> to vector<2x32xf32>
    %375 = tpu.concatenate %373, %374 in 1 : vector<2x32xf32>, vector<2x32xf32> -> vector<2x64xf32>
    %376 = vector.extract_strided_slice %369 {offsets = [0, 96], sizes = [2, 32], strides = [1, 1]} : vector<2x256xf32> to vector<2x32xf32>
    %377 = vector.extract_strided_slice %369 {offsets = [0, 224], sizes = [2, 32], strides = [1, 1]} : vector<2x256xf32> to vector<2x32xf32>
    %378 = tpu.concatenate %376, %377 in 1 : vector<2x32xf32>, vector<2x32xf32> -> vector<2x64xf32>
    %379 = vector.extract_strided_slice %364 {offsets = [0, 64], sizes = [2, 32], strides = [1, 1]} : vector<2x256xf32> to vector<2x32xf32>
    %380 = vector.extract_strided_slice %364 {offsets = [0, 192], sizes = [2, 32], strides = [1, 1]} : vector<2x256xf32> to vector<2x32xf32>
    %381 = tpu.concatenate %379, %380 in 1 : vector<2x32xf32>, vector<2x32xf32> -> vector<2x64xf32>
    %382 = math.tanh %381 : vector<2x64xf32>
    %383 = arith.mulf %375, %356 : vector<2x64xf32>
    %384 = arith.mulf %372, %382 : vector<2x64xf32>
    %385 = arith.addf %383, %384 : vector<2x64xf32>
    %386 = math.tanh %385 : vector<2x64xf32>
    %387 = arith.mulf %378, %386 : vector<2x64xf32>
    %388 = vector.extract_strided_slice %292 {offsets = [0, 0], sizes = [2, 128], strides = [1, 1]} : vector<2x256xf32> to vector<2x128xf32>
    %389 = vector.extract_strided_slice %313 {offsets = [0, 128], sizes = [2, 128], strides = [1, 1]} : vector<2x256xf32> to vector<2x128xf32>
    %390 = tpu.concatenate %388, %389 in 1 : vector<2x128xf32>, vector<2x128xf32> -> vector<2x256xf32>
    %391 = arith.truncf %387 : vector<2x64xf32> to vector<2x64xbf16>
    %cst_59 = arith.constant dense<0.000000e+00> : vector<2x256xf32>
    %392 = tpu.matmul %391, %270, %cst_59 {dimension_numbers = #tpu.dot_dimension_numbers<[1], [0], [0], [1], [0, 0, 1, 1], [], []>} : vector<2x64xbf16>, vector<64x256xbf16>, vector<2x256xf32> -> vector<2x256xf32>
    %393 = arith.addf %390, %392 : vector<2x256xf32>
    %394 = arith.negf %393 : vector<2x256xf32>
    %395 = math.exp %394 : vector<2x256xf32>
    %cst_60 = arith.constant 1.000000e+00 : f32
    %396 = vector.broadcast %cst_60 : f32 to vector<2x256xf32>
    %397 = arith.addf %396, %395 : vector<2x256xf32>
    %398 = arith.divf %396, %397 : vector<2x256xf32>
    %399 = vector.extract_strided_slice %398 {offsets = [0, 0], sizes = [2, 32], strides = [1, 1]} : vector<2x256xf32> to vector<2x32xf32>
    %400 = vector.extract_strided_slice %398 {offsets = [0, 128], sizes = [2, 32], strides = [1, 1]} : vector<2x256xf32> to vector<2x32xf32>
    %401 = tpu.concatenate %399, %400 in 1 : vector<2x32xf32>, vector<2x32xf32> -> vector<2x64xf32>
    %402 = vector.extract_strided_slice %398 {offsets = [0, 32], sizes = [2, 32], strides = [1, 1]} : vector<2x256xf32> to vector<2x32xf32>
    %403 = vector.extract_strided_slice %398 {offsets = [0, 160], sizes = [2, 32], strides = [1, 1]} : vector<2x256xf32> to vector<2x32xf32>
    %404 = tpu.concatenate %402, %403 in 1 : vector<2x32xf32>, vector<2x32xf32> -> vector<2x64xf32>
    %405 = vector.extract_strided_slice %398 {offsets = [0, 96], sizes = [2, 32], strides = [1, 1]} : vector<2x256xf32> to vector<2x32xf32>
    %406 = vector.extract_strided_slice %398 {offsets = [0, 224], sizes = [2, 32], strides = [1, 1]} : vector<2x256xf32> to vector<2x32xf32>
    %407 = tpu.concatenate %405, %406 in 1 : vector<2x32xf32>, vector<2x32xf32> -> vector<2x64xf32>
    %408 = vector.extract_strided_slice %393 {offsets = [0, 64], sizes = [2, 32], strides = [1, 1]} : vector<2x256xf32> to vector<2x32xf32>
    %409 = vector.extract_strided_slice %393 {offsets = [0, 192], sizes = [2, 32], strides = [1, 1]} : vector<2x256xf32> to vector<2x32xf32>
    %410 = tpu.concatenate %408, %409 in 1 : vector<2x32xf32>, vector<2x32xf32> -> vector<2x64xf32>
    %411 = math.tanh %410 : vector<2x64xf32>
    %412 = arith.mulf %404, %385 : vector<2x64xf32>
    %413 = arith.mulf %401, %411 : vector<2x64xf32>
    %414 = arith.addf %412, %413 : vector<2x64xf32>
    %415 = math.tanh %414 : vector<2x64xf32>
    %416 = arith.mulf %407, %415 : vector<2x64xf32>
    %417 = vector.extract_strided_slice %299 {offsets = [0, 0], sizes = [2, 128], strides = [1, 1]} : vector<2x256xf32> to vector<2x128xf32>
    %418 = vector.extract_strided_slice %306 {offsets = [0, 128], sizes = [2, 128], strides = [1, 1]} : vector<2x256xf32> to vector<2x128xf32>
    %419 = tpu.concatenate %417, %418 in 1 : vector<2x128xf32>, vector<2x128xf32> -> vector<2x256xf32>
    %420 = arith.truncf %416 : vector<2x64xf32> to vector<2x64xbf16>
    %cst_61 = arith.constant dense<0.000000e+00> : vector<2x256xf32>
    %421 = tpu.matmul %420, %270, %cst_61 {dimension_numbers = #tpu.dot_dimension_numbers<[1], [0], [0], [1], [0, 0, 1, 1], [], []>} : vector<2x64xbf16>, vector<64x256xbf16>, vector<2x256xf32> -> vector<2x256xf32>
    %422 = arith.addf %419, %421 : vector<2x256xf32>
    %423 = arith.negf %422 : vector<2x256xf32>
    %424 = math.exp %423 : vector<2x256xf32>
    %cst_62 = arith.constant 1.000000e+00 : f32
    %425 = vector.broadcast %cst_62 : f32 to vector<2x256xf32>
    %426 = arith.addf %425, %424 : vector<2x256xf32>
    %427 = arith.divf %425, %426 : vector<2x256xf32>
    %428 = vector.extract_strided_slice %427 {offsets = [0, 0], sizes = [2, 32], strides = [1, 1]} : vector<2x256xf32> to vector<2x32xf32>
    %429 = vector.extract_strided_slice %427 {offsets = [0, 128], sizes = [2, 32], strides = [1, 1]} : vector<2x256xf32> to vector<2x32xf32>
    %430 = tpu.concatenate %428, %429 in 1 : vector<2x32xf32>, vector<2x32xf32> -> vector<2x64xf32>
    %431 = vector.extract_strided_slice %427 {offsets = [0, 32], sizes = [2, 32], strides = [1, 1]} : vector<2x256xf32> to vector<2x32xf32>
    %432 = vector.extract_strided_slice %427 {offsets = [0, 160], sizes = [2, 32], strides = [1, 1]} : vector<2x256xf32> to vector<2x32xf32>
    %433 = tpu.concatenate %431, %432 in 1 : vector<2x32xf32>, vector<2x32xf32> -> vector<2x64xf32>
    %434 = vector.extract_strided_slice %427 {offsets = [0, 96], sizes = [2, 32], strides = [1, 1]} : vector<2x256xf32> to vector<2x32xf32>
    %435 = vector.extract_strided_slice %427 {offsets = [0, 224], sizes = [2, 32], strides = [1, 1]} : vector<2x256xf32> to vector<2x32xf32>
    %436 = tpu.concatenate %434, %435 in 1 : vector<2x32xf32>, vector<2x32xf32> -> vector<2x64xf32>
    %437 = vector.extract_strided_slice %422 {offsets = [0, 64], sizes = [2, 32], strides = [1, 1]} : vector<2x256xf32> to vector<2x32xf32>
    %438 = vector.extract_strided_slice %422 {offsets = [0, 192], sizes = [2, 32], strides = [1, 1]} : vector<2x256xf32> to vector<2x32xf32>
    %439 = tpu.concatenate %437, %438 in 1 : vector<2x32xf32>, vector<2x32xf32> -> vector<2x64xf32>
    %440 = math.tanh %439 : vector<2x64xf32>
    %441 = arith.mulf %433, %414 : vector<2x64xf32>
    %442 = arith.mulf %430, %440 : vector<2x64xf32>
    %443 = arith.addf %441, %442 : vector<2x64xf32>
    %444 = math.tanh %443 : vector<2x64xf32>
    %445 = arith.mulf %436, %444 : vector<2x64xf32>
    %446 = vector.extract_strided_slice %306 {offsets = [0, 0], sizes = [2, 128], strides = [1, 1]} : vector<2x256xf32> to vector<2x128xf32>
    %447 = vector.extract_strided_slice %299 {offsets = [0, 128], sizes = [2, 128], strides = [1, 1]} : vector<2x256xf32> to vector<2x128xf32>
    %448 = tpu.concatenate %446, %447 in 1 : vector<2x128xf32>, vector<2x128xf32> -> vector<2x256xf32>
    %449 = arith.truncf %445 : vector<2x64xf32> to vector<2x64xbf16>
    %cst_63 = arith.constant dense<0.000000e+00> : vector<2x256xf32>
    %450 = tpu.matmul %449, %270, %cst_63 {dimension_numbers = #tpu.dot_dimension_numbers<[1], [0], [0], [1], [0, 0, 1, 1], [], []>} : vector<2x64xbf16>, vector<64x256xbf16>, vector<2x256xf32> -> vector<2x256xf32>
    %451 = arith.addf %448, %450 : vector<2x256xf32>
    %452 = arith.negf %451 : vector<2x256xf32>
    %453 = math.exp %452 : vector<2x256xf32>
    %cst_64 = arith.constant 1.000000e+00 : f32
    %454 = vector.broadcast %cst_64 : f32 to vector<2x256xf32>
    %455 = arith.addf %454, %453 : vector<2x256xf32>
    %456 = arith.divf %454, %455 : vector<2x256xf32>
    %457 = vector.extract_strided_slice %456 {offsets = [0, 0], sizes = [2, 32], strides = [1, 1]} : vector<2x256xf32> to vector<2x32xf32>
    %458 = vector.extract_strided_slice %456 {offsets = [0, 128], sizes = [2, 32], strides = [1, 1]} : vector<2x256xf32> to vector<2x32xf32>
    %459 = tpu.concatenate %457, %458 in 1 : vector<2x32xf32>, vector<2x32xf32> -> vector<2x64xf32>
    %460 = vector.extract_strided_slice %456 {offsets = [0, 32], sizes = [2, 32], strides = [1, 1]} : vector<2x256xf32> to vector<2x32xf32>
    %461 = vector.extract_strided_slice %456 {offsets = [0, 160], sizes = [2, 32], strides = [1, 1]} : vector<2x256xf32> to vector<2x32xf32>
    %462 = tpu.concatenate %460, %461 in 1 : vector<2x32xf32>, vector<2x32xf32> -> vector<2x64xf32>
    %463 = vector.extract_strided_slice %456 {offsets = [0, 96], sizes = [2, 32], strides = [1, 1]} : vector<2x256xf32> to vector<2x32xf32>
    %464 = vector.extract_strided_slice %456 {offsets = [0, 224], sizes = [2, 32], strides = [1, 1]} : vector<2x256xf32> to vector<2x32xf32>
    %465 = tpu.concatenate %463, %464 in 1 : vector<2x32xf32>, vector<2x32xf32> -> vector<2x64xf32>
    %466 = vector.extract_strided_slice %451 {offsets = [0, 64], sizes = [2, 32], strides = [1, 1]} : vector<2x256xf32> to vector<2x32xf32>
    %467 = vector.extract_strided_slice %451 {offsets = [0, 192], sizes = [2, 32], strides = [1, 1]} : vector<2x256xf32> to vector<2x32xf32>
    %468 = tpu.concatenate %466, %467 in 1 : vector<2x32xf32>, vector<2x32xf32> -> vector<2x64xf32>
    %469 = math.tanh %468 : vector<2x64xf32>
    %470 = arith.mulf %462, %443 : vector<2x64xf32>
    %471 = arith.mulf %459, %469 : vector<2x64xf32>
    %472 = arith.addf %470, %471 : vector<2x64xf32>
    %473 = math.tanh %472 : vector<2x64xf32>
    %474 = arith.mulf %465, %473 : vector<2x64xf32>
    %475 = vector.extract_strided_slice %313 {offsets = [0, 0], sizes = [2, 128], strides = [1, 1]} : vector<2x256xf32> to vector<2x128xf32>
    %476 = vector.extract_strided_slice %292 {offsets = [0, 128], sizes = [2, 128], strides = [1, 1]} : vector<2x256xf32> to vector<2x128xf32>
    %477 = tpu.concatenate %475, %476 in 1 : vector<2x128xf32>, vector<2x128xf32> -> vector<2x256xf32>
    %478 = arith.truncf %474 : vector<2x64xf32> to vector<2x64xbf16>
    %cst_65 = arith.constant dense<0.000000e+00> : vector<2x256xf32>
    %479 = tpu.matmul %478, %270, %cst_65 {dimension_numbers = #tpu.dot_dimension_numbers<[1], [0], [0], [1], [0, 0, 1, 1], [], []>} : vector<2x64xbf16>, vector<64x256xbf16>, vector<2x256xf32> -> vector<2x256xf32>
    %480 = arith.addf %477, %479 : vector<2x256xf32>
    %481 = arith.negf %480 : vector<2x256xf32>
    %482 = math.exp %481 : vector<2x256xf32>
    %cst_66 = arith.constant 1.000000e+00 : f32
    %483 = vector.broadcast %cst_66 : f32 to vector<2x256xf32>
    %484 = arith.addf %483, %482 : vector<2x256xf32>
    %485 = arith.divf %483, %484 : vector<2x256xf32>
    %486 = vector.extract_strided_slice %485 {offsets = [0, 0], sizes = [2, 32], strides = [1, 1]} : vector<2x256xf32> to vector<2x32xf32>
    %487 = vector.extract_strided_slice %485 {offsets = [0, 128], sizes = [2, 32], strides = [1, 1]} : vector<2x256xf32> to vector<2x32xf32>
    %488 = tpu.concatenate %486, %487 in 1 : vector<2x32xf32>, vector<2x32xf32> -> vector<2x64xf32>
    %489 = vector.extract_strided_slice %485 {offsets = [0, 32], sizes = [2, 32], strides = [1, 1]} : vector<2x256xf32> to vector<2x32xf32>
    %490 = vector.extract_strided_slice %485 {offsets = [0, 160], sizes = [2, 32], strides = [1, 1]} : vector<2x256xf32> to vector<2x32xf32>
    %491 = tpu.concatenate %489, %490 in 1 : vector<2x32xf32>, vector<2x32xf32> -> vector<2x64xf32>
    %492 = vector.extract_strided_slice %485 {offsets = [0, 96], sizes = [2, 32], strides = [1, 1]} : vector<2x256xf32> to vector<2x32xf32>
    %493 = vector.extract_strided_slice %485 {offsets = [0, 224], sizes = [2, 32], strides = [1, 1]} : vector<2x256xf32> to vector<2x32xf32>
    %494 = tpu.concatenate %492, %493 in 1 : vector<2x32xf32>, vector<2x32xf32> -> vector<2x64xf32>
    %495 = vector.extract_strided_slice %480 {offsets = [0, 64], sizes = [2, 32], strides = [1, 1]} : vector<2x256xf32> to vector<2x32xf32>
    %496 = vector.extract_strided_slice %480 {offsets = [0, 192], sizes = [2, 32], strides = [1, 1]} : vector<2x256xf32> to vector<2x32xf32>
    %497 = tpu.concatenate %495, %496 in 1 : vector<2x32xf32>, vector<2x32xf32> -> vector<2x64xf32>
    %498 = math.tanh %497 : vector<2x64xf32>
    %499 = arith.mulf %491, %472 : vector<2x64xf32>
    %500 = arith.mulf %488, %498 : vector<2x64xf32>
    %501 = arith.addf %499, %500 : vector<2x64xf32>
    %502 = math.tanh %501 : vector<2x64xf32>
    %503 = arith.mulf %494, %502 : vector<2x64xf32>
    %504 = vector.extract_strided_slice %320 {offsets = [0, 0], sizes = [2, 128], strides = [1, 1]} : vector<2x256xf32> to vector<2x128xf32>
    %505 = vector.extract_strided_slice %285 {offsets = [0, 128], sizes = [2, 128], strides = [1, 1]} : vector<2x256xf32> to vector<2x128xf32>
    %506 = tpu.concatenate %504, %505 in 1 : vector<2x128xf32>, vector<2x128xf32> -> vector<2x256xf32>
    %507 = arith.truncf %503 : vector<2x64xf32> to vector<2x64xbf16>
    %cst_67 = arith.constant dense<0.000000e+00> : vector<2x256xf32>
    %508 = tpu.matmul %507, %270, %cst_67 {dimension_numbers = #tpu.dot_dimension_numbers<[1], [0], [0], [1], [0, 0, 1, 1], [], []>} : vector<2x64xbf16>, vector<64x256xbf16>, vector<2x256xf32> -> vector<2x256xf32>
    %509 = arith.addf %506, %508 : vector<2x256xf32>
    %510 = arith.negf %509 : vector<2x256xf32>
    %511 = math.exp %510 : vector<2x256xf32>
    %cst_68 = arith.constant 1.000000e+00 : f32
    %512 = vector.broadcast %cst_68 : f32 to vector<2x256xf32>
    %513 = arith.addf %512, %511 : vector<2x256xf32>
    %514 = arith.divf %512, %513 : vector<2x256xf32>
    %515 = vector.extract_strided_slice %514 {offsets = [0, 0], sizes = [2, 32], strides = [1, 1]} : vector<2x256xf32> to vector<2x32xf32>
    %516 = vector.extract_strided_slice %514 {offsets = [0, 128], sizes = [2, 32], strides = [1, 1]} : vector<2x256xf32> to vector<2x32xf32>
    %517 = tpu.concatenate %515, %516 in 1 : vector<2x32xf32>, vector<2x32xf32> -> vector<2x64xf32>
    %518 = vector.extract_strided_slice %514 {offsets = [0, 32], sizes = [2, 32], strides = [1, 1]} : vector<2x256xf32> to vector<2x32xf32>
    %519 = vector.extract_strided_slice %514 {offsets = [0, 160], sizes = [2, 32], strides = [1, 1]} : vector<2x256xf32> to vector<2x32xf32>
    %520 = tpu.concatenate %518, %519 in 1 : vector<2x32xf32>, vector<2x32xf32> -> vector<2x64xf32>
    %521 = vector.extract_strided_slice %514 {offsets = [0, 96], sizes = [2, 32], strides = [1, 1]} : vector<2x256xf32> to vector<2x32xf32>
    %522 = vector.extract_strided_slice %514 {offsets = [0, 224], sizes = [2, 32], strides = [1, 1]} : vector<2x256xf32> to vector<2x32xf32>
    %523 = tpu.concatenate %521, %522 in 1 : vector<2x32xf32>, vector<2x32xf32> -> vector<2x64xf32>
    %524 = vector.extract_strided_slice %509 {offsets = [0, 64], sizes = [2, 32], strides = [1, 1]} : vector<2x256xf32> to vector<2x32xf32>
    %525 = vector.extract_strided_slice %509 {offsets = [0, 192], sizes = [2, 32], strides = [1, 1]} : vector<2x256xf32> to vector<2x32xf32>
    %526 = tpu.concatenate %524, %525 in 1 : vector<2x32xf32>, vector<2x32xf32> -> vector<2x64xf32>
    %527 = math.tanh %526 : vector<2x64xf32>
    %528 = arith.mulf %520, %501 : vector<2x64xf32>
    %529 = arith.mulf %517, %527 : vector<2x64xf32>
    %530 = arith.addf %528, %529 : vector<2x64xf32>
    %531 = math.tanh %530 : vector<2x64xf32>
    %532 = arith.mulf %523, %531 : vector<2x64xf32>
    %533 = vector.extract_strided_slice %327 {offsets = [0, 0], sizes = [2, 128], strides = [1, 1]} : vector<2x256xf32> to vector<2x128xf32>
    %534 = vector.extract_strided_slice %278 {offsets = [0, 128], sizes = [2, 128], strides = [1, 1]} : vector<2x256xf32> to vector<2x128xf32>
    %535 = tpu.concatenate %533, %534 in 1 : vector<2x128xf32>, vector<2x128xf32> -> vector<2x256xf32>
    %536 = arith.truncf %532 : vector<2x64xf32> to vector<2x64xbf16>
    %cst_69 = arith.constant dense<0.000000e+00> : vector<2x256xf32>
    %537 = tpu.matmul %536, %270, %cst_69 {dimension_numbers = #tpu.dot_dimension_numbers<[1], [0], [0], [1], [0, 0, 1, 1], [], []>} : vector<2x64xbf16>, vector<64x256xbf16>, vector<2x256xf32> -> vector<2x256xf32>
    %538 = arith.addf %535, %537 : vector<2x256xf32>
    %539 = arith.negf %538 : vector<2x256xf32>
    %540 = math.exp %539 : vector<2x256xf32>
    %cst_70 = arith.constant 1.000000e+00 : f32
    %541 = vector.broadcast %cst_70 : f32 to vector<2x256xf32>
    %542 = arith.addf %541, %540 : vector<2x256xf32>
    %543 = arith.divf %541, %542 : vector<2x256xf32>
    %544 = vector.extract_strided_slice %543 {offsets = [0, 0], sizes = [2, 32], strides = [1, 1]} : vector<2x256xf32> to vector<2x32xf32>
    %545 = vector.extract_strided_slice %543 {offsets = [0, 128], sizes = [2, 32], strides = [1, 1]} : vector<2x256xf32> to vector<2x32xf32>
    %546 = tpu.concatenate %544, %545 in 1 : vector<2x32xf32>, vector<2x32xf32> -> vector<2x64xf32>
    %547 = vector.extract_strided_slice %543 {offsets = [0, 32], sizes = [2, 32], strides = [1, 1]} : vector<2x256xf32> to vector<2x32xf32>
    %548 = vector.extract_strided_slice %543 {offsets = [0, 160], sizes = [2, 32], strides = [1, 1]} : vector<2x256xf32> to vector<2x32xf32>
    %549 = tpu.concatenate %547, %548 in 1 : vector<2x32xf32>, vector<2x32xf32> -> vector<2x64xf32>
    %550 = vector.extract_strided_slice %543 {offsets = [0, 96], sizes = [2, 32], strides = [1, 1]} : vector<2x256xf32> to vector<2x32xf32>
    %551 = vector.extract_strided_slice %543 {offsets = [0, 224], sizes = [2, 32], strides = [1, 1]} : vector<2x256xf32> to vector<2x32xf32>
    %552 = tpu.concatenate %550, %551 in 1 : vector<2x32xf32>, vector<2x32xf32> -> vector<2x64xf32>
    %553 = vector.extract_strided_slice %538 {offsets = [0, 64], sizes = [2, 32], strides = [1, 1]} : vector<2x256xf32> to vector<2x32xf32>
    %554 = vector.extract_strided_slice %538 {offsets = [0, 192], sizes = [2, 32], strides = [1, 1]} : vector<2x256xf32> to vector<2x32xf32>
    %555 = tpu.concatenate %553, %554 in 1 : vector<2x32xf32>, vector<2x32xf32> -> vector<2x64xf32>
    %556 = math.tanh %555 : vector<2x64xf32>
    %557 = arith.mulf %549, %530 : vector<2x64xf32>
    %558 = arith.mulf %546, %556 : vector<2x64xf32>
    %559 = arith.addf %557, %558 : vector<2x64xf32>
    %560 = math.tanh %559 : vector<2x64xf32>
    %561 = arith.mulf %552, %560 : vector<2x64xf32>
    %c0_71 = arith.constant 0 : index
    %c0_72 = arith.constant 0 : index
    %562 = vector.load %arg7[%c0_71, %c0_72] : memref<64x128xf32, #tpu.memory_space<vmem>>, vector<64x128xf32>
    %cst_73 = arith.constant dense<0.000000e+00> : vector<2x128xf32>
    %563 = tpu.matmul %561, %562, %cst_73 {dimension_numbers = #tpu.dot_dimension_numbers<[1], [0], [0], [1], [0, 0, 1, 1], [], []>} : vector<2x64xf32>, vector<64x128xf32>, vector<2x128xf32> -> vector<2x128xf32>
    %c0_74 = arith.constant 0 : index
    %c0_75 = arith.constant 0 : index
    %564 = vector.load %arg8[%c0_74, %c0_75] : memref<1x128xf32, #tpu.memory_space<vmem>>, vector<1x128xf32>
    %565 = vector.broadcast %564 : vector<1x128xf32> to vector<2x128xf32>
    %566 = arith.addf %563, %565 : vector<2x128xf32>
    %c0_76 = arith.constant 0 : index
    %c0_77 = arith.constant 0 : index
    %567 = vector.load %arg9[%c0_76, %c0_77] : memref<2x128xf32, #tpu.memory_space<vmem>>, vector<2x128xf32>
    tpu.vector_store %arg9[%c0_76, %c0_77], %566 {strides = array<i32>} : memref<2x128xf32, #tpu.memory_space<vmem>>, vector<2x128xf32>,
    return
  }
}

</mosaic_0001>

<llo_original>
// kernel: bilstm_forward.1
$region0: #{bilstm_forward.1}
  #allocation0 [shape = 'u32[]', space=smem, size = 0x4, offset = 0x4, fixed_abs, tag = 'smem constant byte address 0x4 - core index']
  #allocation1 [shape = 'u32[144,128]{1,0:T(1,128)}', space=vmem, size = 0x12000, scoped, tag = 'internal scratch']
  %s0 = inlined_call_operand.vmem [shape: bf16[16,16], index: 0, kind: input, shape index: {}]
  %s1 = inlined_call_operand.vmem [shape: bf16[16,256], index: 1, kind: input, shape index: {}]
  %s2 = inlined_call_operand.vmem [shape: bf16[64,256], index: 2, kind: input, shape index: {}]
  %s3 = inlined_call_operand.vmem [shape: f32[1,256], index: 3, kind: input, shape index: {}]
  %s4 = inlined_call_operand.vmem [shape: bf16[64,256], index: 4, kind: input, shape index: {}]
  %s5 = inlined_call_operand.vmem [shape: bf16[64,256], index: 5, kind: input, shape index: {}]
  %s6 = inlined_call_operand.vmem [shape: f32[1,256], index: 6, kind: input, shape index: {}]
  %s7 = inlined_call_operand.vmem [shape: f32[64,128], index: 7, kind: input, shape index: {}]
  %s8 = inlined_call_operand.vmem [shape: f32[1,128], index: 8, kind: input, shape index: {}]
  %s9 = inlined_call_operand.hbm [shape: f32[2,128], index: 9, kind: output, shape index: {}]
  %s10 = sld [smem:[#allocation0]]
  $region46: #{bilstm_forward.1} parent=0
    _
  %s12 = ssub.s32 1, %s10
  %s13 = scalar_select 0, %s12, %s10
  $region1: #{bilstm_forward.1} parent=0
    #allocation2 [shape = 'u8[1024]{0}', space=vmem, size = 0x400, scoped, tag = 'output window, operand 0, single buffered']
    #allocation3 [shape = 's32[1]{0}', space=sflag, size = 0x4, scoped, tag = 'scoped memory for bilstm_forward.1']
    %14 = vsyncpa [#allocation3], 0
    // Predicated region
    $region2: #{bilstm_forward.1} parent=1 // pred_check
      _
    $region3: #{bilstm_forward.1} parent=1 // pred_check_branch
      %16 = sbr.rel (0) target = $region5
    $region4: #{bilstm_forward.1} parent=1 // pred_region
      _
    $region5: #{bilstm_forward.1} parent=1 // pred_fallthru
      _
    // Predicated region
    $region6: #{bilstm_forward.1} parent=1 // pred_check
      _
    $region7: #{bilstm_forward.1} parent=1 // pred_check_branch
      %18 = sbr.rel (0) target = $region9
    $region8: #{bilstm_forward.1} parent=1 // pred_region
      _
    $region9: #{bilstm_forward.1} parent=1 // pred_fallthru
      _
    // Predicated region
    $region10: #{bilstm_forward.1} parent=1 // pred_check
      _
    $region11: #{bilstm_forward.1} parent=1 // pred_check_branch
      %20 = sbr.rel (0) target = $region13
    $region12: #{bilstm_forward.1} parent=1 // pred_region
      _
    $region13: #{bilstm_forward.1} parent=1 // pred_fallthru
      _
    // Predicated region
    $region14: #{bilstm_forward.1} parent=1 // pred_check
      _
    $region15: #{bilstm_forward.1} parent=1 // pred_check_branch
      %22 = sbr.rel (0) target = $region17
    $region16: #{bilstm_forward.1} parent=1 // pred_region
      _
    $region17: #{bilstm_forward.1} parent=1 // pred_fallthru
      _
    // Predicated region
    $region18: #{bilstm_forward.1} parent=1 // pred_check
      _
    $region19: #{bilstm_forward.1} parent=1 // pred_check_branch
      %24 = sbr.rel (0) target = $region21
    $region20: #{bilstm_forward.1} parent=1 // pred_region
      _
    $region21: #{bilstm_forward.1} parent=1 // pred_fallthru
      _
    // Predicated region
    $region22: #{bilstm_forward.1} parent=1 // pred_check
      _
    $region23: #{bilstm_forward.1} parent=1 // pred_check_branch
      %26 = sbr.rel (0) target = $region25
    $region24: #{bilstm_forward.1} parent=1 // pred_region
      _
    $region25: #{bilstm_forward.1} parent=1 // pred_fallthru
      _
    // Predicated region
    $region26: #{bilstm_forward.1} parent=1 // pred_check
      _
    $region27: #{bilstm_forward.1} parent=1 // pred_check_branch
      %28 = sbr.rel (0) target = $region29
    $region28: #{bilstm_forward.1} parent=1 // pred_region
      _
    $region29: #{bilstm_forward.1} parent=1 // pred_fallthru
      _
    // Predicated region
    $region30: #{bilstm_forward.1} parent=1 // pred_check
      _
    $region31: #{bilstm_forward.1} parent=1 // pred_check_branch
      %30 = sbr.rel (0) target = $region33
    $region32: #{bilstm_forward.1} parent=1 // pred_region
      _
    $region33: #{bilstm_forward.1} parent=1 // pred_fallthru
      _
    // Predicated region
    $region34: #{bilstm_forward.1} parent=1 // pred_check
      _
    $region35: #{bilstm_forward.1} parent=1 // pred_check_branch
      %32 = sbr.rel (0) target = $region37
    $region36: #{bilstm_forward.1} parent=1 // pred_region
      _
    $region37: #{bilstm_forward.1} parent=1 // pred_fallthru
      _
    %v34 = vld [vmem:[%s1] sm:$0xff]
    %v35 = vld [vmem:[%s1 + $0x8] sm:$0xff]
    %v36 = vld [vmem:[%s2] sm:$0xff]
    %v37 = vld [vmem:[%s2 + $0x8] sm:$0xff]
    %v38 = vld [vmem:[%s2 + $0x10] sm:$0xff]
    %v39 = vld [vmem:[%s2 + $0x18] sm:$0xff]
    %v40 = vld [vmem:[%s2 + $0x20] sm:$0xff]
    %v41 = vld [vmem:[%s2 + $0x28] sm:$0xff]
    %v42 = vld [vmem:[%s2 + $0x30] sm:$0xff]
    %v43 = vld [vmem:[%s2 + $0x38] sm:$0xff]
    %v44 = vld [vmem:[%s3] sm:$0x3]
    %v45 = vld [vmem:[%s0] sm:$0x1]
    %v47 = vlaneseq
    %v48 = vshrl.u32 %v47, 7
    %v49 = vsub.s32 0, %v48
    %v50 = vrot.slane %v44, %v49
    %v51 = vlaneseq
    %v52 = vshrl.u32 %v51, 7
    %v53 = vsub.s32 1, %v52
    %v54 = vrot.slane %v44, %v53
    %v59 = vunpack.c.l.b16 %v34
    %v60 = vunpack.c.h.b16 %v34
    %v61 = vunpack.c.l.b16 %v35
    %v62 = vunpack.c.h.b16 %v35
    %v63 = vpack.c.b16 %v61, %v59
    %v64 = vpack.c.b16 %v62, %v60
    %vm67 = vcmask 130048
    %v69 = vsel %vm67, %v45, 0
    %71 = vmatprep.subr.bf16.mxu0 0
    %72 = vmatpush1.bf16.msra.mxu0 0
    %73 = vmatprep.subr.bf16.mxu0 0
    %74 = vmatpush1.bf16.msra.mxu0 0
    %75 = vmatprep.subr.bf16.mxu0 0
    %76 = vmatpush1.bf16.msra.mxu0 0
    %77 = vmatprep.subr.bf16.mxu0 0
    %78 = vmatpush1.bf16.msra.mxu0 0
    %79 = vmatprep.subr.bf16.mxu0 0
    %80 = vmatpush1.bf16.msra.mxu0 0
    %81 = vmatprep.subr.bf16.mxu0 0
    %82 = vmatpush1.bf16.msra.mxu0 0
    %83 = vmatprep.subr.bf16.mxu0 0
    %84 = vmatpush1.bf16.msra.mxu0 0
    %85 = vmatprep.subr.bf16.mxu0 %v64
    %86 = vmatpush1.bf16.msra.mxu0 %v63
    %87 = vmatprep.subr.bf16.mxu0 0
    %88 = vmatpush2.bf16.msra.mxu0 0
    %89 = vmatprep.subr.bf16.mxu0 0
    %90 = vmatpush2.bf16.msra.mxu0 0
    %91 = vmatprep.subr.bf16.mxu0 0
    %92 = vmatpush2.bf16.msra.mxu0 0
    %93 = vmatprep.subr.bf16.mxu0 0
    %94 = vmatpush2.bf16.msra.mxu0 0
    %95 = vmatprep.subr.bf16.mxu0 0
    %96 = vmatpush2.bf16.msra.mxu0 0
    %97 = vmatprep.subr.bf16.mxu0 0
    %98 = vmatpush2.bf16.msra.mxu0 0
    %99 = vmatprep.subr.bf16.mxu0 0
    %100 = vmatpush2.bf16.msra.mxu0 0
    %101 = vmatprep.subr.bf16.mxu0 0
    %102 = vmatpush2.bf16.msra.mxu0 0
    %103 = vmatprep.mubr.bf16.mxu0 0
    %104 = vmatmul.mubr.bf16.gmra.mxu0 %v69
    %v105 = vpop.f32.mrf.mxu0
    %v106 = vadd.f32 %v50, %v105
    %v107 = vpop.f32.mrf.mxu0
    %v108 = vadd.f32 %v54, %v107
    %v109 = vpop.f32.mrf.mxu0
    %v110 = vpop.f32.mrf.mxu0
    %111 = vdwg.mxu0
    %v112 = vld [vmem:[%s0] sm:$0x2]
    %v114 = vunpack.c.l.b16 %v112
    %v115 = vpack.c.b16 %v114, %v114
    %v116 = vrot.slane %v115, 1
    %v118 = vsel %vm67, %v116, 0
    %120 = vmatprep.subr.bf16.mxu0 0
    %121 = vmatpush1.bf16.msra.mxu0 0
    %122 = vmatprep.subr.bf16.mxu0 0
    %123 = vmatpush1.bf16.msra.mxu0 0
    %124 = vmatprep.subr.bf16.mxu0 0
    %125 = vmatpush1.bf16.msra.mxu0 0
    %126 = vmatprep.subr.bf16.mxu0 0
    %127 = vmatpush1.bf16.msra.mxu0 0
    %128 = vmatprep.subr.bf16.mxu0 0
    %129 = vmatpush1.bf16.msra.mxu0 0
    %130 = vmatprep.subr.bf16.mxu0 0
    %131 = vmatpush1.bf16.msra.mxu0 0
    %132 = vmatprep.subr.bf16.mxu0 0
    %133 = vmatpush1.bf16.msra.mxu0 0
    %134 = vmatprep.subr.bf16.mxu0 %v64
    %135 = vmatpush1.bf16.msra.mxu0 %v63
    %136 = vmatprep.subr.bf16.mxu0 0
    %137 = vmatpush2.bf16.msra.mxu0 0
    %138 = vmatprep.subr.bf16.mxu0 0
    %139 = vmatpush2.bf16.msra.mxu0 0
    %140 = vmatprep.subr.bf16.mxu0 0
    %141 = vmatpush2.bf16.msra.mxu0 0
    %142 = vmatprep.subr.bf16.mxu0 0
    %143 = vmatpush2.bf16.msra.mxu0 0
    %144 = vmatprep.subr.bf16.mxu0 0
    %145 = vmatpush2.bf16.msra.mxu0 0
    %146 = vmatprep.subr.bf16.mxu0 0
    %147 = vmatpush2.bf16.msra.mxu0 0
    %148 = vmatprep.subr.bf16.mxu0 0
    %149 = vmatpush2.bf16.msra.mxu0 0
    %150 = vmatprep.subr.bf16.mxu0 0
    %151 = vmatpush2.bf16.msra.mxu0 0
    %152 = vmatprep.mubr.bf16.mxu0 0
    %153 = vmatmul.mubr.bf16.gmra.mxu0 %v118
    %v154 = vpop.f32.mrf.mxu0
    %v155 = vadd.f32 %v50, %v154
    %v156 = vpop.f32.mrf.mxu0
    %v157 = vadd.f32 %v54, %v156
    %v158 = vpop.f32.mrf.mxu0
    %v159 = vpop.f32.mrf.mxu0
    %160 = vdwg.mxu0
    %v161 = vld [vmem:[%s0] sm:$0x4]
    %v163 = vunpack.c.l.b16 %v161
    %v164 = vpack.c.b16 %v163, %v163
    %v165 = vrot.slane %v164, 2
    %v167 = vsel %vm67, %v165, 0
    %169 = vmatprep.subr.bf16.mxu0 0
    %170 = vmatpush1.bf16.msra.mxu0 0
    %171 = vmatprep.subr.bf16.mxu0 0
    %172 = vmatpush1.bf16.msra.mxu0 0
    %173 = vmatprep.subr.bf16.mxu0 0
    %174 = vmatpush1.bf16.msra.mxu0 0
    %175 = vmatprep.subr.bf16.mxu0 0
    %176 = vmatpush1.bf16.msra.mxu0 0
    %177 = vmatprep.subr.bf16.mxu0 0
    %178 = vmatpush1.bf16.msra.mxu0 0
    %179 = vmatprep.subr.bf16.mxu0 0
    %180 = vmatpush1.bf16.msra.mxu0 0
    %181 = vmatprep.subr.bf16.mxu0 0
    %182 = vmatpush1.bf16.msra.mxu0 0
    %183 = vmatprep.subr.bf16.mxu0 %v64
    %184 = vmatpush1.bf16.msra.mxu0 %v63
    %185 = vmatprep.subr.bf16.mxu0 0
    %186 = vmatpush2.bf16.msra.mxu0 0
    %187 = vmatprep.subr.bf16.mxu0 0
    %188 = vmatpush2.bf16.msra.mxu0 0
    %189 = vmatprep.subr.bf16.mxu0 0
    %190 = vmatpush2.bf16.msra.mxu0 0
    %191 = vmatprep.subr.bf16.mxu0 0
    %192 = vmatpush2.bf16.msra.mxu0 0
    %193 = vmatprep.subr.bf16.mxu0 0
    %194 = vmatpush2.bf16.msra.mxu0 0
    %195 = vmatprep.subr.bf16.mxu0 0
    %196 = vmatpush2.bf16.msra.mxu0 0
    %197 = vmatprep.subr.bf16.mxu0 0
    %198 = vmatpush2.bf16.msra.mxu0 0
    %199 = vmatprep.subr.bf16.mxu0 0
    %200 = vmatpush2.bf16.msra.mxu0 0
    %201 = vmatprep.mubr.bf16.mxu0 0
    %202 = vmatmul.mubr.bf16.gmra.mxu0 %v167
    %v203 = vpop.f32.mrf.mxu0
    %v204 = vadd.f32 %v50, %v203
    %v205 = vpop.f32.mrf.mxu0
    %v206 = vadd.f32 %v54, %v205
    %v207 = vpop.f32.mrf.mxu0
    %v208 = vpop.f32.mrf.mxu0
    %209 = vdwg.mxu0
    %v210 = vld [vmem:[%s0] sm:$0x8]
    %v212 = vunpack.c.l.b16 %v210
    %v213 = vpack.c.b16 %v212, %v212
    %v214 = vrot.slane %v213, 3
    %v216 = vsel %vm67, %v214, 0
    %218 = vmatprep.subr.bf16.mxu0 0
    %219 = vmatpush1.bf16.msra.mxu0 0
    %220 = vmatprep.subr.bf16.mxu0 0
    %221 = vmatpush1.bf16.msra.mxu0 0
    %222 = vmatprep.subr.bf16.mxu0 0
    %223 = vmatpush1.bf16.msra.mxu0 0
    %224 = vmatprep.subr.bf16.mxu0 0
    %225 = vmatpush1.bf16.msra.mxu0 0
    %226 = vmatprep.subr.bf16.mxu0 0
    %227 = vmatpush1.bf16.msra.mxu0 0
    %228 = vmatprep.subr.bf16.mxu0 0
    %229 = vmatpush1.bf16.msra.mxu0 0
    %230 = vmatprep.subr.bf16.mxu0 0
    %231 = vmatpush1.bf16.msra.mxu0 0
    %232 = vmatprep.subr.bf16.mxu0 %v64
    %233 = vmatpush1.bf16.msra.mxu0 %v63
    %234 = vmatprep.subr.bf16.mxu0 0
    %235 = vmatpush2.bf16.msra.mxu0 0
    %236 = vmatprep.subr.bf16.mxu0 0
    %237 = vmatpush2.bf16.msra.mxu0 0
    %238 = vmatprep.subr.bf16.mxu0 0
    %239 = vmatpush2.bf16.msra.mxu0 0
    %240 = vmatprep.subr.bf16.mxu0 0
    %241 = vmatpush2.bf16.msra.mxu0 0
    %242 = vmatprep.subr.bf16.mxu0 0
    %243 = vmatpush2.bf16.msra.mxu0 0
    %244 = vmatprep.subr.bf16.mxu0 0
    %245 = vmatpush2.bf16.msra.mxu0 0
    %246 = vmatprep.subr.bf16.mxu0 0
    %247 = vmatpush2.bf16.msra.mxu0 0
    %248 = vmatprep.subr.bf16.mxu0 0
    %249 = vmatpush2.bf16.msra.mxu0 0
    %250 = vmatprep.mubr.bf16.mxu0 0
    %251 = vmatmul.mubr.bf16.gmra.mxu0 %v216
    %v252 = vpop.f32.mrf.mxu0
    %v253 = vadd.f32 %v50, %v252
    %v254 = vpop.f32.mrf.mxu0
    %v255 = vadd.f32 %v54, %v254
    %v256 = vpop.f32.mrf.mxu0
    %v257 = vpop.f32.mrf.mxu0
    %258 = vdwg.mxu0
    %v259 = vld [vmem:[%s0 + $0x4] sm:$0x1]
    %v261 = vsel %vm67, %v259, 0
    %263 = vmatprep.subr.bf16.mxu0 0
    %264 = vmatpush1.bf16.msra.mxu0 0
    %265 = vmatprep.subr.bf16.mxu0 0
    %266 = vmatpush1.bf16.msra.mxu0 0
    %267 = vmatprep.subr.bf16.mxu0 0
    %268 = vmatpush1.bf16.msra.mxu0 0
    %269 = vmatprep.subr.bf16.mxu0 0
    %270 = vmatpush1.bf16.msra.mxu0 0
    %271 = vmatprep.subr.bf16.mxu0 0
    %272 = vmatpush1.bf16.msra.mxu0 0
    %273 = vmatprep.subr.bf16.mxu0 0
    %274 = vmatpush1.bf16.msra.mxu0 0
    %275 = vmatprep.subr.bf16.mxu0 0
    %276 = vmatpush1.bf16.msra.mxu0 0
    %277 = vmatprep.subr.bf16.mxu0 %v64
    %278 = vmatpush1.bf16.msra.mxu0 %v63
    %279 = vmatprep.subr.bf16.mxu0 0
    %280 = vmatpush2.bf16.msra.mxu0 0
    %281 = vmatprep.subr.bf16.mxu0 0
    %282 = vmatpush2.bf16.msra.mxu0 0
    %283 = vmatprep.subr.bf16.mxu0 0
    %284 = vmatpush2.bf16.msra.mxu0 0
    %285 = vmatprep.subr.bf16.mxu0 0
    %286 = vmatpush2.bf16.msra.mxu0 0
    %287 = vmatprep.subr.bf16.mxu0 0
    %288 = vmatpush2.bf16.msra.mxu0 0
    %289 = vmatprep.subr.bf16.mxu0 0
    %290 = vmatpush2.bf16.msra.mxu0 0
    %291 = vmatprep.subr.bf16.mxu0 0
    %292 = vmatpush2.bf16.msra.mxu0 0
    %293 = vmatprep.subr.bf16.mxu0 0
    %294 = vmatpush2.bf16.msra.mxu0 0
    %295 = vmatprep.mubr.bf16.mxu0 0
    %296 = vmatmul.mubr.bf16.gmra.mxu0 %v261
    %v297 = vpop.f32.mrf.mxu0
    %v298 = vadd.f32 %v50, %v297
    %v299 = vpop.f32.mrf.mxu0
    %v300 = vadd.f32 %v54, %v299
    %v301 = vpop.f32.mrf.mxu0
    %v302 = vpop.f32.mrf.mxu0
    %303 = vdwg.mxu0
    %v304 = vld [vmem:[%s0 + $0x4] sm:$0x2]
    %v306 = vunpack.c.l.b16 %v304
    %v307 = vpack.c.b16 %v306, %v306
    %v308 = vrot.slane %v307, 1
    %v310 = vsel %vm67, %v308, 0
    %312 = vmatprep.subr.bf16.mxu0 0
    %313 = vmatpush1.bf16.msra.mxu0 0
    %314 = vmatprep.subr.bf16.mxu0 0
    %315 = vmatpush1.bf16.msra.mxu0 0
    %316 = vmatprep.subr.bf16.mxu0 0
    %317 = vmatpush1.bf16.msra.mxu0 0
    %318 = vmatprep.subr.bf16.mxu0 0
    %319 = vmatpush1.bf16.msra.mxu0 0
    %320 = vmatprep.subr.bf16.mxu0 0
    %321 = vmatpush1.bf16.msra.mxu0 0
    %322 = vmatprep.subr.bf16.mxu0 0
    %323 = vmatpush1.bf16.msra.mxu0 0
    %324 = vmatprep.subr.bf16.mxu0 0
    %325 = vmatpush1.bf16.msra.mxu0 0
    %326 = vmatprep.subr.bf16.mxu0 %v64
    %327 = vmatpush1.bf16.msra.mxu0 %v63
    %328 = vmatprep.subr.bf16.mxu0 0
    %329 = vmatpush2.bf16.msra.mxu0 0
    %330 = vmatprep.subr.bf16.mxu0 0
    %331 = vmatpush2.bf16.msra.mxu0 0
    %332 = vmatprep.subr.bf16.mxu0 0
    %333 = vmatpush2.bf16.msra.mxu0 0
    %334 = vmatprep.subr.bf16.mxu0 0
    %335 = vmatpush2.bf16.msra.mxu0 0
    %336 = vmatprep.subr.bf16.mxu0 0
    %337 = vmatpush2.bf16.msra.mxu0 0
    %338 = vmatprep.subr.bf16.mxu0 0
    %339 = vmatpush2.bf16.msra.mxu0 0
    %340 = vmatprep.subr.bf16.mxu0 0
    %341 = vmatpush2.bf16.msra.mxu0 0
    %342 = vmatprep.subr.bf16.mxu0 0
    %343 = vmatpush2.bf16.msra.mxu0 0
    %344 = vmatprep.mubr.bf16.mxu0 0
    %345 = vmatmul.mubr.bf16.gmra.mxu0 %v310
    %v346 = vpop.f32.mrf.mxu0
    %v347 = vadd.f32 %v50, %v346
    %v348 = vpop.f32.mrf.mxu0
    %v349 = vadd.f32 %v54, %v348
    %v350 = vpop.f32.mrf.mxu0
    %v351 = vpop.f32.mrf.mxu0
    %352 = vdwg.mxu0
    %v353 = vld [vmem:[%s0 + $0x4] sm:$0x4]
    %v355 = vunpack.c.l.b16 %v353
    %v356 = vpack.c.b16 %v355, %v355
    %v357 = vrot.slane %v356, 2
    %v359 = vsel %vm67, %v357, 0
    %361 = vmatprep.subr.bf16.mxu0 0
    %362 = vmatpush1.bf16.msra.mxu0 0
    %363 = vmatprep.subr.bf16.mxu0 0
    %364 = vmatpush1.bf16.msra.mxu0 0
    %365 = vmatprep.subr.bf16.mxu0 0
    %366 = vmatpush1.bf16.msra.mxu0 0
    %367 = vmatprep.subr.bf16.mxu0 0
    %368 = vmatpush1.bf16.msra.mxu0 0
    %369 = vmatprep.subr.bf16.mxu0 0
    %370 = vmatpush1.bf16.msra.mxu0 0
    %371 = vmatprep.subr.bf16.mxu0 0
    %372 = vmatpush1.bf16.msra.mxu0 0
    %373 = vmatprep.subr.bf16.mxu0 0
    %374 = vmatpush1.bf16.msra.mxu0 0
    %375 = vmatprep.subr.bf16.mxu0 %v64
    %376 = vmatpush1.bf16.msra.mxu0 %v63
    %377 = vmatprep.subr.bf16.mxu0 0
    %378 = vmatpush2.bf16.msra.mxu0 0
    %379 = vmatprep.subr.bf16.mxu0 0
    %380 = vmatpush2.bf16.msra.mxu0 0
    %381 = vmatprep.subr.bf16.mxu0 0
    %382 = vmatpush2.bf16.msra.mxu0 0
    %383 = vmatprep.subr.bf16.mxu0 0
    %384 = vmatpush2.bf16.msra.mxu0 0
    %385 = vmatprep.subr.bf16.mxu0 0
    %386 = vmatpush2.bf16.msra.mxu0 0
    %387 = vmatprep.subr.bf16.mxu0 0
    %388 = vmatpush2.bf16.msra.mxu0 0
    %389 = vmatprep.subr.bf16.mxu0 0
    %390 = vmatpush2.bf16.msra.mxu0 0
    %391 = vmatprep.subr.bf16.mxu0 0
    %392 = vmatpush2.bf16.msra.mxu0 0
    %393 = vmatprep.mubr.bf16.mxu0 0
    %394 = vmatmul.mubr.bf16.gmra.mxu0 %v359
    %v395 = vpop.f32.mrf.mxu0
    %v396 = vadd.f32 %v50, %v395
    %v397 = vpop.f32.mrf.mxu0
    %v398 = vadd.f32 %v54, %v397
    %v399 = vpop.f32.mrf.mxu0
    %v400 = vpop.f32.mrf.mxu0
    %401 = vdwg.mxu0
    %v402 = vld [vmem:[%s0 + $0x4] sm:$0x8]
    %v404 = vunpack.c.l.b16 %v402
    %v405 = vpack.c.b16 %v404, %v404
    %v406 = vrot.slane %v405, 3
    %v408 = vsel %vm67, %v406, 0
    %410 = vmatprep.subr.bf16.mxu0 0
    %411 = vmatpush1.bf16.msra.mxu0 0
    %412 = vmatprep.subr.bf16.mxu0 0
    %413 = vmatpush1.bf16.msra.mxu0 0
    %414 = vmatprep.subr.bf16.mxu0 0
    %415 = vmatpush1.bf16.msra.mxu0 0
    %416 = vmatprep.subr.bf16.mxu0 0
    %417 = vmatpush1.bf16.msra.mxu0 0
    %418 = vmatprep.subr.bf16.mxu0 0
    %419 = vmatpush1.bf16.msra.mxu0 0
    %420 = vmatprep.subr.bf16.mxu0 0
    %421 = vmatpush1.bf16.msra.mxu0 0
    %422 = vmatprep.subr.bf16.mxu0 0
    %423 = vmatpush1.bf16.msra.mxu0 0
    %424 = vmatprep.subr.bf16.mxu0 %v64
    %425 = vmatpush1.bf16.msra.mxu0 %v63
    %426 = vmatprep.subr.bf16.mxu0 0
    %427 = vmatpush2.bf16.msra.mxu0 0
    %428 = vmatprep.subr.bf16.mxu0 0
    %429 = vmatpush2.bf16.msra.mxu0 0
    %430 = vmatprep.subr.bf16.mxu0 0
    %431 = vmatpush2.bf16.msra.mxu0 0
    %432 = vmatprep.subr.bf16.mxu0 0
    %433 = vmatpush2.bf16.msra.mxu0 0
    %434 = vmatprep.subr.bf16.mxu0 0
    %435 = vmatpush2.bf16.msra.mxu0 0
    %436 = vmatprep.subr.bf16.mxu0 0
    %437 = vmatpush2.bf16.msra.mxu0 0
    %438 = vmatprep.subr.bf16.mxu0 0
    %439 = vmatpush2.bf16.msra.mxu0 0
    %440 = vmatprep.subr.bf16.mxu0 0
    %441 = vmatpush2.bf16.msra.mxu0 0
    %442 = vmatprep.mubr.bf16.mxu0 0
    %443 = vmatmul.mubr.bf16.gmra.mxu0 %v408
    %v444 = vpop.f32.mrf.mxu0
    %v445 = vadd.f32 %v50, %v444
    %v446 = vpop.f32.mrf.mxu0
    %v447 = vadd.f32 %v54, %v446
    %v448 = vpop.f32.mrf.mxu0
    %v449 = vpop.f32.mrf.mxu0
    %450 = vdwg.mxu0
    %v459 = vunpack.c.l.b16 %v36
    %v460 = vunpack.c.h.b16 %v36
    %v461 = vunpack.c.l.b16 %v37
    %v462 = vunpack.c.h.b16 %v37
    %v463 = vunpack.c.l.b16 %v38
    %v464 = vunpack.c.h.b16 %v38
    %v465 = vunpack.c.l.b16 %v39
    %v466 = vunpack.c.h.b16 %v39
    %v467 = vunpack.c.l.b16 %v40
    %v468 = vunpack.c.h.b16 %v40
    %v469 = vunpack.c.l.b16 %v41
    %v470 = vunpack.c.h.b16 %v41
    %v471 = vunpack.c.l.b16 %v42
    %v472 = vunpack.c.h.b16 %v42
    %v473 = vunpack.c.l.b16 %v43
    %v474 = vunpack.c.h.b16 %v43
    %v475 = vpack.c.b16 %v461, %v459
    %v476 = vpack.c.b16 %v462, %v460
    %v477 = vpack.c.b16 %v465, %v463
    %v478 = vpack.c.b16 %v466, %v464
    %v479 = vpack.c.b16 %v469, %v467
    %v480 = vpack.c.b16 %v470, %v468
    %v481 = vpack.c.b16 %v473, %v471
    %v482 = vpack.c.b16 %v474, %v472
    %vm491 = vcmask 523264
    %v493 = vsel %vm491, 0, 0
    %495 = vmatprep.subr.bf16.mxu0 0
    %496 = vmatpush1.bf16.msra.mxu0 0
    %497 = vmatprep.subr.bf16.mxu0 0
    %498 = vmatpush1.bf16.msra.mxu0 0
    %499 = vmatprep.subr.bf16.mxu0 0
    %500 = vmatpush1.bf16.msra.mxu0 0
    %501 = vmatprep.subr.bf16.mxu0 0
    %502 = vmatpush1.bf16.msra.mxu0 0
    %503 = vmatprep.subr.bf16.mxu0 %v482
    %504 = vmatpush1.bf16.msra.mxu0 %v481
    %505 = vmatprep.subr.bf16.mxu0 %v480
    %506 = vmatpush1.bf16.msra.mxu0 %v479
    %507 = vmatprep.subr.bf16.mxu0 %v478
    %508 = vmatpush1.bf16.msra.mxu0 %v477
    %509 = vmatprep.subr.bf16.mxu0 %v476
    %510 = vmatpush1.bf16.msra.mxu0 %v475
    %511 = vmatprep.subr.bf16.mxu0 0
    %512 = vmatpush2.bf16.msra.mxu0 0
    %513 = vmatprep.subr.bf16.mxu0 0
    %514 = vmatpush2.bf16.msra.mxu0 0
    %515 = vmatprep.subr.bf16.mxu0 0
    %516 = vmatpush2.bf16.msra.mxu0 0
    %517 = vmatprep.subr.bf16.mxu0 0
    %518 = vmatpush2.bf16.msra.mxu0 0
    %519 = vmatprep.subr.bf16.mxu0 0
    %520 = vmatpush2.bf16.msra.mxu0 0
    %521 = vmatprep.subr.bf16.mxu0 0
    %522 = vmatpush2.bf16.msra.mxu0 0
    %523 = vmatprep.subr.bf16.mxu0 0
    %524 = vmatpush2.bf16.msra.mxu0 0
    %525 = vmatprep.subr.bf16.mxu0 0
    %526 = vmatpush2.bf16.msra.mxu0 0
    %527 = vmatprep.mubr.bf16.mxu0 0
    %528 = vmatmul.mubr.bf16.gmra.mxu0 %v493
    %v529 = vpop.f32.mrf.mxu0
    %v530 = vadd.f32 0.0, %v529
    %v531 = vpop.f32.mrf.mxu0
    %v532 = vadd.f32 0.0, %v531
    %v533 = vpop.f32.mrf.mxu0
    %v534 = vpop.f32.mrf.mxu0
    %535 = vdwg.mxu0
    %v536 = vadd.f32 %v106, %v530
    %v537 = vadd.f32 %v447, %v532
    %v538 = vxor.u32 %v536, 2147483648
    %v539 = vxor.u32 %v537, 2147483648
    %v540 = vmul.f32 %v538, 1.442695
    %v541 = vpow.pop %v540
    %v542 = vmul.f32 %v539, 1.442695
    %v543 = vpow.pop %v542
    %v544 = vadd.f32 %v541, 1.0
    %v545 = vadd.f32 %v543, 1.0
    %v546 = vrcp.pop %v544
    %v547 = vmul.f32 1.0, %v546
    %v548 = vrcp.pop %v545
    %v549 = vmul.f32 1.0, %v548
    %551 = vrot.lane.b32.xlu0 %v549, 32
    %v552 = vpop.permute.xlu0 %551
    %vm554 = vcmask 261120
    %v555 = vsel %vm554, %v547, %v552
    %557 = vrot.lane.b32.xlu0 %v547, 96
    %v558 = vpop.permute.xlu0 %557
    %v560 = vsel %vm554, %v558, %v549
    %561 = vrot.lane.b32.xlu0 %v547, 32
    %v562 = vpop.permute.xlu0 %561
    %564 = vrot.lane.b32.xlu0 %v549, 64
    %v565 = vpop.permute.xlu0 %564
    %v567 = vsel %vm554, %v562, %v565
    %569 = vrot.lane.b32.xlu0 %v536, 64
    %v570 = vpop.permute.xlu0 %569
    %573 = vrot.lane.b32.xlu0 %v537, 96
    %v574 = vpop.permute.xlu0 %573
    %v576 = vsel %vm554, %v570, %v574
    %v577 = vtanh.pop %v576
    %v578 = vmul.f32 %v560, 0.0
    %v579 = vmul.f32 %v555, %v577
    %v580 = vadd.f32 %v578, %v579
    %v581 = vtanh.pop %v580
    %v582 = vmul.f32 %v567, %v581
    %v583 = vpack.c.bf16 %v582, %v582
    %v585 = vsel %vm491, %v583, 0
    %587 = vmatprep.subr.bf16.mxu0 0
    %588 = vmatpush1.bf16.msra.mxu0 0
    %589 = vmatprep.subr.bf16.mxu0 0
    %590 = vmatpush1.bf16.msra.mxu0 0
    %591 = vmatprep.subr.bf16.mxu0 0
    %592 = vmatpush1.bf16.msra.mxu0 0
    %593 = vmatprep.subr.bf16.mxu0 0
    %594 = vmatpush1.bf16.msra.mxu0 0
    %595 = vmatprep.subr.bf16.mxu0 %v482
    %596 = vmatpush1.bf16.msra.mxu0 %v481
    %597 = vmatprep.subr.bf16.mxu0 %v480
    %598 = vmatpush1.bf16.msra.mxu0 %v479
    %599 = vmatprep.subr.bf16.mxu0 %v478
    %600 = vmatpush1.bf16.msra.mxu0 %v477
    %601 = vmatprep.subr.bf16.mxu0 %v476
    %602 = vmatpush1.bf16.msra.mxu0 %v475
    %603 = vmatprep.subr.bf16.mxu0 0
    %604 = vmatpush2.bf16.msra.mxu0 0
    %605 = vmatprep.subr.bf16.mxu0 0
    %606 = vmatpush2.bf16.msra.mxu0 0
    %607 = vmatprep.subr.bf16.mxu0 0
    %608 = vmatpush2.bf16.msra.mxu0 0
    %609 = vmatprep.subr.bf16.mxu0 0
    %610 = vmatpush2.bf16.msra.mxu0 0
    %611 = vmatprep.subr.bf16.mxu0 0
    %612 = vmatpush2.bf16.msra.mxu0 0
    %613 = vmatprep.subr.bf16.mxu0 0
    %614 = vmatpush2.bf16.msra.mxu0 0
    %615 = vmatprep.subr.bf16.mxu0 0
    %616 = vmatpush2.bf16.msra.mxu0 0
    %617 = vmatprep.subr.bf16.mxu0 0
    %618 = vmatpush2.bf16.msra.mxu0 0
    %619 = vmatprep.mubr.bf16.mxu0 0
    %620 = vmatmul.mubr.bf16.gmra.mxu0 %v585
    %v621 = vpop.f32.mrf.mxu0
    %v622 = vadd.f32 0.0, %v621
    %v623 = vpop.f32.mrf.mxu0
    %v624 = vadd.f32 0.0, %v623
    %v625 = vpop.f32.mrf.mxu0
    %v626 = vpop.f32.mrf.mxu0
    %627 = vdwg.mxu0
    %v628 = vadd.f32 %v155, %v622
    %v629 = vadd.f32 %v398, %v624
    %v630 = vxor.u32 %v628, 2147483648
    %v631 = vxor.u32 %v629, 2147483648
    %v632 = vmul.f32 %v630, 1.442695
    %v633 = vpow.pop %v632
    %v634 = vmul.f32 %v631, 1.442695
    %v635 = vpow.pop %v634
    %v636 = vadd.f32 %v633, 1.0
    %v637 = vadd.f32 %v635, 1.0
    %v638 = vrcp.pop %v636
    %v639 = vmul.f32 1.0, %v638
    %v640 = vrcp.pop %v637
    %v641 = vmul.f32 1.0, %v640
    %643 = vrot.lane.b32.xlu0 %v641, 32
    %v644 = vpop.permute.xlu0 %643
    %v646 = vsel %vm554, %v639, %v644
    %648 = vrot.lane.b32.xlu0 %v639, 96
    %v649 = vpop.permute.xlu0 %648
    %v651 = vsel %vm554, %v649, %v641
    %652 = vrot.lane.b32.xlu0 %v639, 32
    %v653 = vpop.permute.xlu0 %652
    %655 = vrot.lane.b32.xlu0 %v641, 64
    %v656 = vpop.permute.xlu0 %655
    %v658 = vsel %vm554, %v653, %v656
    %660 = vrot.lane.b32.xlu0 %v628, 64
    %v661 = vpop.permute.xlu0 %660
    %664 = vrot.lane.b32.xlu0 %v629, 96
    %v665 = vpop.permute.xlu0 %664
    %v667 = vsel %vm554, %v661, %v665
    %v668 = vtanh.pop %v667
    %v669 = vmul.f32 %v651, %v580
    %v670 = vmul.f32 %v646, %v668
    %v671 = vadd.f32 %v669, %v670
    %v672 = vtanh.pop %v671
    %v673 = vmul.f32 %v658, %v672
    %v674 = vpack.c.bf16 %v673, %v673
    %v676 = vsel %vm491, %v674, 0
    %678 = vmatprep.subr.bf16.mxu0 0
    %679 = vmatpush1.bf16.msra.mxu0 0
    %680 = vmatprep.subr.bf16.mxu0 0
    %681 = vmatpush1.bf16.msra.mxu0 0
    %682 = vmatprep.subr.bf16.mxu0 0
    %683 = vmatpush1.bf16.msra.mxu0 0
    %684 = vmatprep.subr.bf16.mxu0 0
    %685 = vmatpush1.bf16.msra.mxu0 0
    %686 = vmatprep.subr.bf16.mxu0 %v482
    %687 = vmatpush1.bf16.msra.mxu0 %v481
    %688 = vmatprep.subr.bf16.mxu0 %v480
    %689 = vmatpush1.bf16.msra.mxu0 %v479
    %690 = vmatprep.subr.bf16.mxu0 %v478
    %691 = vmatpush1.bf16.msra.mxu0 %v477
    %692 = vmatprep.subr.bf16.mxu0 %v476
    %693 = vmatpush1.bf16.msra.mxu0 %v475
    %694 = vmatprep.subr.bf16.mxu0 0
    %695 = vmatpush2.bf16.msra.mxu0 0
    %696 = vmatprep.subr.bf16.mxu0 0
    %697 = vmatpush2.bf16.msra.mxu0 0
    %698 = vmatprep.subr.bf16.mxu0 0
    %699 = vmatpush2.bf16.msra.mxu0 0
    %700 = vmatprep.subr.bf16.mxu0 0
    %701 = vmatpush2.bf16.msra.mxu0 0
    %702 = vmatprep.subr.bf16.mxu0 0
    %703 = vmatpush2.bf16.msra.mxu0 0
    %704 = vmatprep.subr.bf16.mxu0 0
    %705 = vmatpush2.bf16.msra.mxu0 0
    %706 = vmatprep.subr.bf16.mxu0 0
    %707 = vmatpush2.bf16.msra.mxu0 0
    %708 = vmatprep.subr.bf16.mxu0 0
    %709 = vmatpush2.bf16.msra.mxu0 0
    %710 = vmatprep.mubr.bf16.mxu0 0
    %711 = vmatmul.mubr.bf16.gmra.mxu0 %v676
    %v712 = vpop.f32.mrf.mxu0
    %v713 = vadd.f32 0.0, %v712
    %v714 = vpop.f32.mrf.mxu0
    %v715 = vadd.f32 0.0, %v714
    %v716 = vpop.f32.mrf.mxu0
    %v717 = vpop.f32.mrf.mxu0
    %718 = vdwg.mxu0
    %v719 = vadd.f32 %v204, %v713
    %v720 = vadd.f32 %v349, %v715
    %v721 = vxor.u32 %v719, 2147483648
    %v722 = vxor.u32 %v720, 2147483648
    %v723 = vmul.f32 %v721, 1.442695
    %v724 = vpow.pop %v723
    %v725 = vmul.f32 %v722, 1.442695
    %v726 = vpow.pop %v725
    %v727 = vadd.f32 %v724, 1.0
    %v728 = vadd.f32 %v726, 1.0
    %v729 = vrcp.pop %v727
    %v730 = vmul.f32 1.0, %v729
    %v731 = vrcp.pop %v728
    %v732 = vmul.f32 1.0, %v731
    %734 = vrot.lane.b32.xlu0 %v732, 32
    %v735 = vpop.permute.xlu0 %734
    %v737 = vsel %vm554, %v730, %v735
    %739 = vrot.lane.b32.xlu0 %v730, 96
    %v740 = vpop.permute.xlu0 %739
    %v742 = vsel %vm554, %v740, %v732
    %743 = vrot.lane.b32.xlu0 %v730, 32
    %v744 = vpop.permute.xlu0 %743
    %746 = vrot.lane.b32.xlu0 %v732, 64
    %v747 = vpop.permute.xlu0 %746
    %v749 = vsel %vm554, %v744, %v747
    %751 = vrot.lane.b32.xlu0 %v719, 64
    %v752 = vpop.permute.xlu0 %751
    %755 = vrot.lane.b32.xlu0 %v720, 96
    %v756 = vpop.permute.xlu0 %755
    %v758 = vsel %vm554, %v752, %v756
    %v759 = vtanh.pop %v758
    %v760 = vmul.f32 %v742, %v671
    %v761 = vmul.f32 %v737, %v759
    %v762 = vadd.f32 %v760, %v761
    %v763 = vtanh.pop %v762
    %v764 = vmul.f32 %v749, %v763
    %v765 = vpack.c.bf16 %v764, %v764
    %v767 = vsel %vm491, %v765, 0
    %769 = vmatprep.subr.bf16.mxu0 0
    %770 = vmatpush1.bf16.msra.mxu0 0
    %771 = vmatprep.subr.bf16.mxu0 0
    %772 = vmatpush1.bf16.msra.mxu0 0
    %773 = vmatprep.subr.bf16.mxu0 0
    %774 = vmatpush1.bf16.msra.mxu0 0
    %775 = vmatprep.subr.bf16.mxu0 0
    %776 = vmatpush1.bf16.msra.mxu0 0
    %777 = vmatprep.subr.bf16.mxu0 %v482
    %778 = vmatpush1.bf16.msra.mxu0 %v481
    %779 = vmatprep.subr.bf16.mxu0 %v480
    %780 = vmatpush1.bf16.msra.mxu0 %v479
    %781 = vmatprep.subr.bf16.mxu0 %v478
    %782 = vmatpush1.bf16.msra.mxu0 %v477
    %783 = vmatprep.subr.bf16.mxu0 %v476
    %784 = vmatpush1.bf16.msra.mxu0 %v475
    %785 = vmatprep.subr.bf16.mxu0 0
    %786 = vmatpush2.bf16.msra.mxu0 0
    %787 = vmatprep.subr.bf16.mxu0 0
    %788 = vmatpush2.bf16.msra.mxu0 0
    %789 = vmatprep.subr.bf16.mxu0 0
    %790 = vmatpush2.bf16.msra.mxu0 0
    %791 = vmatprep.subr.bf16.mxu0 0
    %792 = vmatpush2.bf16.msra.mxu0 0
    %793 = vmatprep.subr.bf16.mxu0 0
    %794 = vmatpush2.bf16.msra.mxu0 0
    %795 = vmatprep.subr.bf16.mxu0 0
    %796 = vmatpush2.bf16.msra.mxu0 0
    %797 = vmatprep.subr.bf16.mxu0 0
    %798 = vmatpush2.bf16.msra.mxu0 0
    %799 = vmatprep.subr.bf16.mxu0 0
    %800 = vmatpush2.bf16.msra.mxu0 0
    %801 = vmatprep.mubr.bf16.mxu0 0
    %802 = vmatmul.mubr.bf16.gmra.mxu0 %v767
    %v803 = vpop.f32.mrf.mxu0
    %v804 = vadd.f32 0.0, %v803
    %v805 = vpop.f32.mrf.mxu0
    %v806 = vadd.f32 0.0, %v805
    %v807 = vpop.f32.mrf.mxu0
    %v808 = vpop.f32.mrf.mxu0
    %809 = vdwg.mxu0
    %v810 = vadd.f32 %v253, %v804
    %v811 = vadd.f32 %v300, %v806
    %v812 = vxor.u32 %v810, 2147483648
    %v813 = vxor.u32 %v811, 2147483648
    %v814 = vmul.f32 %v812, 1.442695
    %v815 = vpow.pop %v814
    %v816 = vmul.f32 %v813, 1.442695
    %v817 = vpow.pop %v816
    %v818 = vadd.f32 %v815, 1.0
    %v819 = vadd.f32 %v817, 1.0
    %v820 = vrcp.pop %v818
    %v821 = vmul.f32 1.0, %v820
    %v822 = vrcp.pop %v819
    %v823 = vmul.f32 1.0, %v822
    %825 = vrot.lane.b32.xlu0 %v823, 32
    %v826 = vpop.permute.xlu0 %825
    %v828 = vsel %vm554, %v821, %v826
    %830 = vrot.lane.b32.xlu0 %v821, 96
    %v831 = vpop.permute.xlu0 %830
    %v833 = vsel %vm554, %v831, %v823
    %834 = vrot.lane.b32.xlu0 %v821, 32
    %v835 = vpop.permute.xlu0 %834
    %837 = vrot.lane.b32.xlu0 %v823, 64
    %v838 = vpop.permute.xlu0 %837
    %v840 = vsel %vm554, %v835, %v838
    %842 = vrot.lane.b32.xlu0 %v810, 64
    %v843 = vpop.permute.xlu0 %842
    %846 = vrot.lane.b32.xlu0 %v811, 96
    %v847 = vpop.permute.xlu0 %846
    %v849 = vsel %vm554, %v843, %v847
    %v850 = vtanh.pop %v849
    %v851 = vmul.f32 %v833, %v762
    %v852 = vmul.f32 %v828, %v850
    %v853 = vadd.f32 %v851, %v852
    %v854 = vtanh.pop %v853
    %v855 = vmul.f32 %v840, %v854
    %v856 = vpack.c.bf16 %v855, %v855
    %v858 = vsel %vm491, %v856, 0
    %860 = vmatprep.subr.bf16.mxu0 0
    %861 = vmatpush1.bf16.msra.mxu0 0
    %862 = vmatprep.subr.bf16.mxu0 0
    %863 = vmatpush1.bf16.msra.mxu0 0
    %864 = vmatprep.subr.bf16.mxu0 0
    %865 = vmatpush1.bf16.msra.mxu0 0
    %866 = vmatprep.subr.bf16.mxu0 0
    %867 = vmatpush1.bf16.msra.mxu0 0
    %868 = vmatprep.subr.bf16.mxu0 %v482
    %869 = vmatpush1.bf16.msra.mxu0 %v481
    %870 = vmatprep.subr.bf16.mxu0 %v480
    %871 = vmatpush1.bf16.msra.mxu0 %v479
    %872 = vmatprep.subr.bf16.mxu0 %v478
    %873 = vmatpush1.bf16.msra.mxu0 %v477
    %874 = vmatprep.subr.bf16.mxu0 %v476
    %875 = vmatpush1.bf16.msra.mxu0 %v475
    %876 = vmatprep.subr.bf16.mxu0 0
    %877 = vmatpush2.bf16.msra.mxu0 0
    %878 = vmatprep.subr.bf16.mxu0 0
    %879 = vmatpush2.bf16.msra.mxu0 0
    %880 = vmatprep.subr.bf16.mxu0 0
    %881 = vmatpush2.bf16.msra.mxu0 0
    %882 = vmatprep.subr.bf16.mxu0 0
    %883 = vmatpush2.bf16.msra.mxu0 0
    %884 = vmatprep.subr.bf16.mxu0 0
    %885 = vmatpush2.bf16.msra.mxu0 0
    %886 = vmatprep.subr.bf16.mxu0 0
    %887 = vmatpush2.bf16.msra.mxu0 0
    %888 = vmatprep.subr.bf16.mxu0 0
    %889 = vmatpush2.bf16.msra.mxu0 0
    %890 = vmatprep.subr.bf16.mxu0 0
    %891 = vmatpush2.bf16.msra.mxu0 0
    %892 = vmatprep.mubr.bf16.mxu0 0
    %893 = vmatmul.mubr.bf16.gmra.mxu0 %v858
    %v894 = vpop.f32.mrf.mxu0
    %v895 = vadd.f32 0.0, %v894
    %v896 = vpop.f32.mrf.mxu0
    %v897 = vadd.f32 0.0, %v896
    %v898 = vpop.f32.mrf.mxu0
    %v899 = vpop.f32.mrf.mxu0
    %900 = vdwg.mxu0
    %v901 = vadd.f32 %v298, %v895
    %v902 = vadd.f32 %v255, %v897
    %v903 = vxor.u32 %v901, 2147483648
    %v904 = vxor.u32 %v902, 2147483648
    %v905 = vmul.f32 %v903, 1.442695
    %v906 = vpow.pop %v905
    %v907 = vmul.f32 %v904, 1.442695
    %v908 = vpow.pop %v907
    %v909 = vadd.f32 %v906, 1.0
    %v910 = vadd.f32 %v908, 1.0
    %v911 = vrcp.pop %v909
    %v912 = vmul.f32 1.0, %v911
    %v913 = vrcp.pop %v910
    %v914 = vmul.f32 1.0, %v913
    %916 = vrot.lane.b32.xlu0 %v914, 32
    %v917 = vpop.permute.xlu0 %916
    %v919 = vsel %vm554, %v912, %v917
    %921 = vrot.lane.b32.xlu0 %v912, 96
    %v922 = vpop.permute.xlu0 %921
    %v924 = vsel %vm554, %v922, %v914
    %925 = vrot.lane.b32.xlu0 %v912, 32
    %v926 = vpop.permute.xlu0 %925
    %928 = vrot.lane.b32.xlu0 %v914, 64
    %v929 = vpop.permute.xlu0 %928
    %v931 = vsel %vm554, %v926, %v929
    %933 = vrot.lane.b32.xlu0 %v901, 64
    %v934 = vpop.permute.xlu0 %933
    %937 = vrot.lane.b32.xlu0 %v902, 96
    %v938 = vpop.permute.xlu0 %937
    %v940 = vsel %vm554, %v934, %v938
    %v941 = vtanh.pop %v940
    %v942 = vmul.f32 %v924, %v853
    %v943 = vmul.f32 %v919, %v941
    %v944 = vadd.f32 %v942, %v943
    %v945 = vtanh.pop %v944
    %v946 = vmul.f32 %v931, %v945
    %v947 = vpack.c.bf16 %v946, %v946
    %v949 = vsel %vm491, %v947, 0
    %951 = vmatprep.subr.bf16.mxu0 0
    %952 = vmatpush1.bf16.msra.mxu0 0
    %953 = vmatprep.subr.bf16.mxu0 0
    %954 = vmatpush1.bf16.msra.mxu0 0
    %955 = vmatprep.subr.bf16.mxu0 0
    %956 = vmatpush1.bf16.msra.mxu0 0
    %957 = vmatprep.subr.bf16.mxu0 0
    %958 = vmatpush1.bf16.msra.mxu0 0
    %959 = vmatprep.subr.bf16.mxu0 %v482
    %960 = vmatpush1.bf16.msra.mxu0 %v481
    %961 = vmatprep.subr.bf16.mxu0 %v480
    %962 = vmatpush1.bf16.msra.mxu0 %v479
    %963 = vmatprep.subr.bf16.mxu0 %v478
    %964 = vmatpush1.bf16.msra.mxu0 %v477
    %965 = vmatprep.subr.bf16.mxu0 %v476
    %966 = vmatpush1.bf16.msra.mxu0 %v475
    %967 = vmatprep.subr.bf16.mxu0 0
    %968 = vmatpush2.bf16.msra.mxu0 0
    %969 = vmatprep.subr.bf16.mxu0 0
    %970 = vmatpush2.bf16.msra.mxu0 0
    %971 = vmatprep.subr.bf16.mxu0 0
    %972 = vmatpush2.bf16.msra.mxu0 0
    %973 = vmatprep.subr.bf16.mxu0 0
    %974 = vmatpush2.bf16.msra.mxu0 0
    %975 = vmatprep.subr.bf16.mxu0 0
    %976 = vmatpush2.bf16.msra.mxu0 0
    %977 = vmatprep.subr.bf16.mxu0 0
    %978 = vmatpush2.bf16.msra.mxu0 0
    %979 = vmatprep.subr.bf16.mxu0 0
    %980 = vmatpush2.bf16.msra.mxu0 0
    %981 = vmatprep.subr.bf16.mxu0 0
    %982 = vmatpush2.bf16.msra.mxu0 0
    %983 = vmatprep.mubr.bf16.mxu0 0
    %984 = vmatmul.mubr.bf16.gmra.mxu0 %v949
    %v985 = vpop.f32.mrf.mxu0
    %v986 = vadd.f32 0.0, %v985
    %v987 = vpop.f32.mrf.mxu0
    %v988 = vadd.f32 0.0, %v987
    %v989 = vpop.f32.mrf.mxu0
    %v990 = vpop.f32.mrf.mxu0
    %991 = vdwg.mxu0
    %v992 = vadd.f32 %v347, %v986
    %v993 = vadd.f32 %v206, %v988
    %v994 = vxor.u32 %v992, 2147483648
    %v995 = vxor.u32 %v993, 2147483648
    %v996 = vmul.f32 %v994, 1.442695
    %v997 = vpow.pop %v996
    %v998 = vmul.f32 %v995, 1.442695
    %v999 = vpow.pop %v998
    %v1000 = vadd.f32 %v997, 1.0
    %v1001 = vadd.f32 %v999, 1.0
    %v1002 = vrcp.pop %v1000
    %v1003 = vmul.f32 1.0, %v1002
    %v1004 = vrcp.pop %v1001
    %v1005 = vmul.f32 1.0, %v1004
    %1007 = vrot.lane.b32.xlu0 %v1005, 32
    %v1008 = vpop.permute.xlu0 %1007
    %v1010 = vsel %vm554, %v1003, %v1008
    %1012 = vrot.lane.b32.xlu0 %v1003, 96
    %v1013 = vpop.permute.xlu0 %1012
    %v1015 = vsel %vm554, %v1013, %v1005
    %1016 = vrot.lane.b32.xlu0 %v1003, 32
    %v1017 = vpop.permute.xlu0 %1016
    %1019 = vrot.lane.b32.xlu0 %v1005, 64
    %v1020 = vpop.permute.xlu0 %1019
    %v1022 = vsel %vm554, %v1017, %v1020
    %1024 = vrot.lane.b32.xlu0 %v992, 64
    %v1025 = vpop.permute.xlu0 %1024
    %1028 = vrot.lane.b32.xlu0 %v993, 96
    %v1029 = vpop.permute.xlu0 %1028
    %v1031 = vsel %vm554, %v1025, %v1029
    %v1032 = vtanh.pop %v1031
    %v1033 = vmul.f32 %v1015, %v944
    %v1034 = vmul.f32 %v1010, %v1032
    %v1035 = vadd.f32 %v1033, %v1034
    %v1036 = vtanh.pop %v1035
    %v1037 = vmul.f32 %v1022, %v1036
    %v1038 = vpack.c.bf16 %v1037, %v1037
    %v1040 = vsel %vm491, %v1038, 0
    %1042 = vmatprep.subr.bf16.mxu0 0
    %1043 = vmatpush1.bf16.msra.mxu0 0
    %1044 = vmatprep.subr.bf16.mxu0 0
    %1045 = vmatpush1.bf16.msra.mxu0 0
    %1046 = vmatprep.subr.bf16.mxu0 0
    %1047 = vmatpush1.bf16.msra.mxu0 0
    %1048 = vmatprep.subr.bf16.mxu0 0
    %1049 = vmatpush1.bf16.msra.mxu0 0
    %1050 = vmatprep.subr.bf16.mxu0 %v482
    %1051 = vmatpush1.bf16.msra.mxu0 %v481
    %1052 = vmatprep.subr.bf16.mxu0 %v480
    %1053 = vmatpush1.bf16.msra.mxu0 %v479
    %1054 = vmatprep.subr.bf16.mxu0 %v478
    %1055 = vmatpush1.bf16.msra.mxu0 %v477
    %1056 = vmatprep.subr.bf16.mxu0 %v476
    %1057 = vmatpush1.bf16.msra.mxu0 %v475
    %1058 = vmatprep.subr.bf16.mxu0 0
    %1059 = vmatpush2.bf16.msra.mxu0 0
    %1060 = vmatprep.subr.bf16.mxu0 0
    %1061 = vmatpush2.bf16.msra.mxu0 0
    %1062 = vmatprep.subr.bf16.mxu0 0
    %1063 = vmatpush2.bf16.msra.mxu0 0
    %1064 = vmatprep.subr.bf16.mxu0 0
    %1065 = vmatpush2.bf16.msra.mxu0 0
    %1066 = vmatprep.subr.bf16.mxu0 0
    %1067 = vmatpush2.bf16.msra.mxu0 0
    %1068 = vmatprep.subr.bf16.mxu0 0
    %1069 = vmatpush2.bf16.msra.mxu0 0
    %1070 = vmatprep.subr.bf16.mxu0 0
    %1071 = vmatpush2.bf16.msra.mxu0 0
    %1072 = vmatprep.subr.bf16.mxu0 0
    %1073 = vmatpush2.bf16.msra.mxu0 0
    %1074 = vmatprep.mubr.bf16.mxu0 0
    %1075 = vmatmul.mubr.bf16.gmra.mxu0 %v1040
    %v1076 = vpop.f32.mrf.mxu0
    %v1077 = vadd.f32 0.0, %v1076
    %v1078 = vpop.f32.mrf.mxu0
    %v1079 = vadd.f32 0.0, %v1078
    %v1080 = vpop.f32.mrf.mxu0
    %v1081 = vpop.f32.mrf.mxu0
    %1082 = vdwg.mxu0
    %v1083 = vadd.f32 %v396, %v1077
    %v1084 = vadd.f32 %v157, %v1079
    %v1085 = vxor.u32 %v1083, 2147483648
    %v1086 = vxor.u32 %v1084, 2147483648
    %v1087 = vmul.f32 %v1085, 1.442695
    %v1088 = vpow.pop %v1087
    %v1089 = vmul.f32 %v1086, 1.442695
    %v1090 = vpow.pop %v1089
    %v1091 = vadd.f32 %v1088, 1.0
    %v1092 = vadd.f32 %v1090, 1.0
    %v1093 = vrcp.pop %v1091
    %v1094 = vmul.f32 1.0, %v1093
    %v1095 = vrcp.pop %v1092
    %v1096 = vmul.f32 1.0, %v1095
    %1098 = vrot.lane.b32.xlu0 %v1096, 32
    %v1099 = vpop.permute.xlu0 %1098
    %v1101 = vsel %vm554, %v1094, %v1099
    %1103 = vrot.lane.b32.xlu0 %v1094, 96
    %v1104 = vpop.permute.xlu0 %1103
    %v1106 = vsel %vm554, %v1104, %v1096
    %1107 = vrot.lane.b32.xlu0 %v1094, 32
    %v1108 = vpop.permute.xlu0 %1107
    %1110 = vrot.lane.b32.xlu0 %v1096, 64
    %v1111 = vpop.permute.xlu0 %1110
    %v1113 = vsel %vm554, %v1108, %v1111
    %1115 = vrot.lane.b32.xlu0 %v1083, 64
    %v1116 = vpop.permute.xlu0 %1115
    %1119 = vrot.lane.b32.xlu0 %v1084, 96
    %v1120 = vpop.permute.xlu0 %1119
    %v1122 = vsel %vm554, %v1116, %v1120
    %v1123 = vtanh.pop %v1122
    %v1124 = vmul.f32 %v1106, %v1035
    %v1125 = vmul.f32 %v1101, %v1123
    %v1126 = vadd.f32 %v1124, %v1125
    %v1127 = vtanh.pop %v1126
    %v1128 = vmul.f32 %v1113, %v1127
    %v1129 = vpack.c.bf16 %v1128, %v1128
    %v1131 = vsel %vm491, %v1129, 0
    %1133 = vmatprep.subr.bf16.mxu0 0
    %1134 = vmatpush1.bf16.msra.mxu0 0
    %1135 = vmatprep.subr.bf16.mxu0 0
    %1136 = vmatpush1.bf16.msra.mxu0 0
    %1137 = vmatprep.subr.bf16.mxu0 0
    %1138 = vmatpush1.bf16.msra.mxu0 0
    %1139 = vmatprep.subr.bf16.mxu0 0
    %1140 = vmatpush1.bf16.msra.mxu0 0
    %1141 = vmatprep.subr.bf16.mxu0 %v482
    %1142 = vmatpush1.bf16.msra.mxu0 %v481
    %1143 = vmatprep.subr.bf16.mxu0 %v480
    %1144 = vmatpush1.bf16.msra.mxu0 %v479
    %1145 = vmatprep.subr.bf16.mxu0 %v478
    %1146 = vmatpush1.bf16.msra.mxu0 %v477
    %1147 = vmatprep.subr.bf16.mxu0 %v476
    %1148 = vmatpush1.bf16.msra.mxu0 %v475
    %1149 = vmatprep.subr.bf16.mxu0 0
    %1150 = vmatpush2.bf16.msra.mxu0 0
    %1151 = vmatprep.subr.bf16.mxu0 0
    %1152 = vmatpush2.bf16.msra.mxu0 0
    %1153 = vmatprep.subr.bf16.mxu0 0
    %1154 = vmatpush2.bf16.msra.mxu0 0
    %1155 = vmatprep.subr.bf16.mxu0 0
    %1156 = vmatpush2.bf16.msra.mxu0 0
    %1157 = vmatprep.subr.bf16.mxu0 0
    %1158 = vmatpush2.bf16.msra.mxu0 0
    %1159 = vmatprep.subr.bf16.mxu0 0
    %1160 = vmatpush2.bf16.msra.mxu0 0
    %1161 = vmatprep.subr.bf16.mxu0 0
    %1162 = vmatpush2.bf16.msra.mxu0 0
    %1163 = vmatprep.subr.bf16.mxu0 0
    %1164 = vmatpush2.bf16.msra.mxu0 0
    %1165 = vmatprep.mubr.bf16.mxu0 0
    %1166 = vmatmul.mubr.bf16.gmra.mxu0 %v1131
    %v1167 = vpop.f32.mrf.mxu0
    %v1168 = vadd.f32 0.0, %v1167
    %v1169 = vpop.f32.mrf.mxu0
    %v1170 = vadd.f32 0.0, %v1169
    %v1171 = vpop.f32.mrf.mxu0
    %v1172 = vpop.f32.mrf.mxu0
    %1173 = vdwg.mxu0
    %v1174 = vadd.f32 %v445, %v1168
    %v1175 = vadd.f32 %v108, %v1170
    %v1176 = vxor.u32 %v1174, 2147483648
    %v1177 = vxor.u32 %v1175, 2147483648
    %v1178 = vmul.f32 %v1176, 1.442695
    %v1179 = vpow.pop %v1178
    %v1180 = vmul.f32 %v1177, 1.442695
    %v1181 = vpow.pop %v1180
    %v1182 = vadd.f32 %v1179, 1.0
    %v1183 = vadd.f32 %v1181, 1.0
    %v1184 = vrcp.pop %v1182
    %v1185 = vmul.f32 1.0, %v1184
    %v1186 = vrcp.pop %v1183
    %v1187 = vmul.f32 1.0, %v1186
    %1189 = vrot.lane.b32.xlu0 %v1187, 32
    %v1190 = vpop.permute.xlu0 %1189
    %v1192 = vsel %vm554, %v1185, %v1190
    %1194 = vrot.lane.b32.xlu0 %v1185, 96
    %v1195 = vpop.permute.xlu0 %1194
    %v1197 = vsel %vm554, %v1195, %v1187
    %1198 = vrot.lane.b32.xlu0 %v1185, 32
    %v1199 = vpop.permute.xlu0 %1198
    %1201 = vrot.lane.b32.xlu0 %v1187, 64
    %v1202 = vpop.permute.xlu0 %1201
    %v1204 = vsel %vm554, %v1199, %v1202
    %1206 = vrot.lane.b32.xlu0 %v1174, 64
    %v1207 = vpop.permute.xlu0 %1206
    %1210 = vrot.lane.b32.xlu0 %v1175, 96
    %v1211 = vpop.permute.xlu0 %1210
    %v1213 = vsel %vm554, %v1207, %v1211
    %v1214 = vtanh.pop %v1213
    %v1215 = vmul.f32 %v1197, %v1126
    %v1216 = vmul.f32 %v1192, %v1214
    %v1217 = vadd.f32 %v1215, %v1216
    %v1218 = vtanh.pop %v1217
    %v1219 = vmul.f32 %v1204, %v1218
    %v1220 = vld [vmem:[%s4] sm:$0xff]
    %v1221 = vld [vmem:[%s4 + $0x8] sm:$0xff]
    %v1222 = vld [vmem:[%s4 + $0x10] sm:$0xff]
    %v1223 = vld [vmem:[%s4 + $0x18] sm:$0xff]
    %v1224 = vld [vmem:[%s4 + $0x20] sm:$0xff]
    %v1225 = vld [vmem:[%s4 + $0x28] sm:$0xff]
    %v1226 = vld [vmem:[%s4 + $0x30] sm:$0xff]
    %v1227 = vld [vmem:[%s4 + $0x38] sm:$0xff]
    %v1228 = vld [vmem:[%s5] sm:$0xff]
    %v1229 = vld [vmem:[%s5 + $0x8] sm:$0xff]
    %v1230 = vld [vmem:[%s5 + $0x10] sm:$0xff]
    %v1231 = vld [vmem:[%s5 + $0x18] sm:$0xff]
    %v1232 = vld [vmem:[%s5 + $0x20] sm:$0xff]
    %v1233 = vld [vmem:[%s5 + $0x28] sm:$0xff]
    %v1234 = vld [vmem:[%s5 + $0x30] sm:$0xff]
    %v1235 = vld [vmem:[%s5 + $0x38] sm:$0xff]
    %v1236 = vld [vmem:[%s6] sm:$0x3]
    %v1237 = vsel %vm554, %v582, %v1219
    %v1238 = vpack.c.bf16 %v1237, %v1237
    %v1240 = vlaneseq
    %v1241 = vshrl.u32 %v1240, 7
    %v1242 = vsub.s32 0, %v1241
    %v1243 = vrot.slane %v1236, %v1242
    %v1244 = vlaneseq
    %v1245 = vshrl.u32 %v1244, 7
    %v1246 = vsub.s32 1, %v1245
    %v1247 = vrot.slane %v1236, %v1246
    %v1258 = vunpack.c.l.b16 %v1220
    %v1259 = vunpack.c.h.b16 %v1220
    %v1260 = vunpack.c.l.b16 %v1221
    %v1261 = vunpack.c.h.b16 %v1221
    %v1262 = vunpack.c.l.b16 %v1222
    %v1263 = vunpack.c.h.b16 %v1222
    %v1264 = vunpack.c.l.b16 %v1223
    %v1265 = vunpack.c.h.b16 %v1223
    %v1266 = vunpack.c.l.b16 %v1224
    %v1267 = vunpack.c.h.b16 %v1224
    %v1268 = vunpack.c.l.b16 %v1225
    %v1269 = vunpack.c.h.b16 %v1225
    %v1270 = vunpack.c.l.b16 %v1226
    %v1271 = vunpack.c.h.b16 %v1226
    %v1272 = vunpack.c.l.b16 %v1227
    %v1273 = vunpack.c.h.b16 %v1227
    %v1274 = vpack.c.b16 %v1260, %v1258
    %v1275 = vpack.c.b16 %v1261, %v1259
    %v1276 = vpack.c.b16 %v1264, %v1262
    %v1277 = vpack.c.b16 %v1265, %v1263
    %v1278 = vpack.c.b16 %v1268, %v1266
    %v1279 = vpack.c.b16 %v1269, %v1267
    %v1280 = vpack.c.b16 %v1272, %v1270
    %v1281 = vpack.c.b16 %v1273, %v1271
    %v1291 = vsel %vm491, %v1238, 0
    %1293 = vmatprep.subr.bf16.mxu0 0
    %1294 = vmatpush1.bf16.msra.mxu0 0
    %1295 = vmatprep.subr.bf16.mxu0 0
    %1296 = vmatpush1.bf16.msra.mxu0 0
    %1297 = vmatprep.subr.bf16.mxu0 0
    %1298 = vmatpush1.bf16.msra.mxu0 0
    %1299 = vmatprep.subr.bf16.mxu0 0
    %1300 = vmatpush1.bf16.msra.mxu0 0
    %1301 = vmatprep.subr.bf16.mxu0 %v1281
    %1302 = vmatpush1.bf16.msra.mxu0 %v1280
    %1303 = vmatprep.subr.bf16.mxu0 %v1279
    %1304 = vmatpush1.bf16.msra.mxu0 %v1278
    %1305 = vmatprep.subr.bf16.mxu0 %v1277
    %1306 = vmatpush1.bf16.msra.mxu0 %v1276
    %1307 = vmatprep.subr.bf16.mxu0 %v1275
    %1308 = vmatpush1.bf16.msra.mxu0 %v1274
    %1309 = vmatprep.subr.bf16.mxu0 0
    %1310 = vmatpush2.bf16.msra.mxu0 0
    %1311 = vmatprep.subr.bf16.mxu0 0
    %1312 = vmatpush2.bf16.msra.mxu0 0
    %1313 = vmatprep.subr.bf16.mxu0 0
    %1314 = vmatpush2.bf16.msra.mxu0 0
    %1315 = vmatprep.subr.bf16.mxu0 0
    %1316 = vmatpush2.bf16.msra.mxu0 0
    %1317 = vmatprep.subr.bf16.mxu0 0
    %1318 = vmatpush2.bf16.msra.mxu0 0
    %1319 = vmatprep.subr.bf16.mxu0 0
    %1320 = vmatpush2.bf16.msra.mxu0 0
    %1321 = vmatprep.subr.bf16.mxu0 0
    %1322 = vmatpush2.bf16.msra.mxu0 0
    %1323 = vmatprep.subr.bf16.mxu0 0
    %1324 = vmatpush2.bf16.msra.mxu0 0
    %1325 = vmatprep.mubr.bf16.mxu0 0
    %1326 = vmatmul.mubr.bf16.gmra.mxu0 %v1291
    %v1327 = vpop.f32.mrf.mxu0
    %v1328 = vadd.f32 %v1243, %v1327
    %v1329 = vpop.f32.mrf.mxu0
    %v1330 = vadd.f32 %v1247, %v1329
    %v1331 = vpop.f32.mrf.mxu0
    %v1332 = vpop.f32.mrf.mxu0
    %1333 = vdwg.mxu0
    %v1334 = vsel %vm554, %v673, %v1128
    %v1335 = vpack.c.bf16 %v1334, %v1334
    %v1337 = vsel %vm491, %v1335, 0
    %1339 = vmatprep.subr.bf16.mxu0 0
    %1340 = vmatpush1.bf16.msra.mxu0 0
    %1341 = vmatprep.subr.bf16.mxu0 0
    %1342 = vmatpush1.bf16.msra.mxu0 0
    %1343 = vmatprep.subr.bf16.mxu0 0
    %1344 = vmatpush1.bf16.msra.mxu0 0
    %1345 = vmatprep.subr.bf16.mxu0 0
    %1346 = vmatpush1.bf16.msra.mxu0 0
    %1347 = vmatprep.subr.bf16.mxu0 %v1281
    %1348 = vmatpush1.bf16.msra.mxu0 %v1280
    %1349 = vmatprep.subr.bf16.mxu0 %v1279
    %1350 = vmatpush1.bf16.msra.mxu0 %v1278
    %1351 = vmatprep.subr.bf16.mxu0 %v1277
    %1352 = vmatpush1.bf16.msra.mxu0 %v1276
    %1353 = vmatprep.subr.bf16.mxu0 %v1275
    %1354 = vmatpush1.bf16.msra.mxu0 %v1274
    %1355 = vmatprep.subr.bf16.mxu0 0
    %1356 = vmatpush2.bf16.msra.mxu0 0
    %1357 = vmatprep.subr.bf16.mxu0 0
    %1358 = vmatpush2.bf16.msra.mxu0 0
    %1359 = vmatprep.subr.bf16.mxu0 0
    %1360 = vmatpush2.bf16.msra.mxu0 0
    %1361 = vmatprep.subr.bf16.mxu0 0
    %1362 = vmatpush2.bf16.msra.mxu0 0
    %1363 = vmatprep.subr.bf16.mxu0 0
    %1364 = vmatpush2.bf16.msra.mxu0 0
    %1365 = vmatprep.subr.bf16.mxu0 0
    %1366 = vmatpush2.bf16.msra.mxu0 0
    %1367 = vmatprep.subr.bf16.mxu0 0
    %1368 = vmatpush2.bf16.msra.mxu0 0
    %1369 = vmatprep.subr.bf16.mxu0 0
    %1370 = vmatpush2.bf16.msra.mxu0 0
    %1371 = vmatprep.mubr.bf16.mxu0 0
    %1372 = vmatmul.mubr.bf16.gmra.mxu0 %v1337
    %v1373 = vpop.f32.mrf.mxu0
    %v1374 = vadd.f32 %v1243, %v1373
    %v1375 = vpop.f32.mrf.mxu0
    %v1376 = vadd.f32 %v1247, %v1375
    %v1377 = vpop.f32.mrf.mxu0
    %v1378 = vpop.f32.mrf.mxu0
    %1379 = vdwg.mxu0
    %v1380 = vsel %vm554, %v764, %v1037
    %v1381 = vpack.c.bf16 %v1380, %v1380
    %v1383 = vsel %vm491, %v1381, 0
    %1385 = vmatprep.subr.bf16.mxu0 0
    %1386 = vmatpush1.bf16.msra.mxu0 0
    %1387 = vmatprep.subr.bf16.mxu0 0
    %1388 = vmatpush1.bf16.msra.mxu0 0
    %1389 = vmatprep.subr.bf16.mxu0 0
    %1390 = vmatpush1.bf16.msra.mxu0 0
    %1391 = vmatprep.subr.bf16.mxu0 0
    %1392 = vmatpush1.bf16.msra.mxu0 0
    %1393 = vmatprep.subr.bf16.mxu0 %v1281
    %1394 = vmatpush1.bf16.msra.mxu0 %v1280
    %1395 = vmatprep.subr.bf16.mxu0 %v1279
    %1396 = vmatpush1.bf16.msra.mxu0 %v1278
    %1397 = vmatprep.subr.bf16.mxu0 %v1277
    %1398 = vmatpush1.bf16.msra.mxu0 %v1276
    %1399 = vmatprep.subr.bf16.mxu0 %v1275
    %1400 = vmatpush1.bf16.msra.mxu0 %v1274
    %1401 = vmatprep.subr.bf16.mxu0 0
    %1402 = vmatpush2.bf16.msra.mxu0 0
    %1403 = vmatprep.subr.bf16.mxu0 0
    %1404 = vmatpush2.bf16.msra.mxu0 0
    %1405 = vmatprep.subr.bf16.mxu0 0
    %1406 = vmatpush2.bf16.msra.mxu0 0
    %1407 = vmatprep.subr.bf16.mxu0 0
    %1408 = vmatpush2.bf16.msra.mxu0 0
    %1409 = vmatprep.subr.bf16.mxu0 0
    %1410 = vmatpush2.bf16.msra.mxu0 0
    %1411 = vmatprep.subr.bf16.mxu0 0
    %1412 = vmatpush2.bf16.msra.mxu0 0
    %1413 = vmatprep.subr.bf16.mxu0 0
    %1414 = vmatpush2.bf16.msra.mxu0 0
    %1415 = vmatprep.subr.bf16.mxu0 0
    %1416 = vmatpush2.bf16.msra.mxu0 0
    %1417 = vmatprep.mubr.bf16.mxu0 0
    %1418 = vmatmul.mubr.bf16.gmra.mxu0 %v1383
    %v1419 = vpop.f32.mrf.mxu0
    %v1420 = vadd.f32 %v1243, %v1419
    %v1421 = vpop.f32.mrf.mxu0
    %v1422 = vadd.f32 %v1247, %v1421
    %v1423 = vpop.f32.mrf.mxu0
    %v1424 = vpop.f32.mrf.mxu0
    %1425 = vdwg.mxu0
    %v1426 = vsel %vm554, %v855, %v946
    %v1427 = vpack.c.bf16 %v1426, %v1426
    %v1429 = vsel %vm491, %v1427, 0
    %1431 = vmatprep.subr.bf16.mxu0 0
    %1432 = vmatpush1.bf16.msra.mxu0 0
    %1433 = vmatprep.subr.bf16.mxu0 0
    %1434 = vmatpush1.bf16.msra.mxu0 0
    %1435 = vmatprep.subr.bf16.mxu0 0
    %1436 = vmatpush1.bf16.msra.mxu0 0
    %1437 = vmatprep.subr.bf16.mxu0 0
    %1438 = vmatpush1.bf16.msra.mxu0 0
    %1439 = vmatprep.subr.bf16.mxu0 %v1281
    %1440 = vmatpush1.bf16.msra.mxu0 %v1280
    %1441 = vmatprep.subr.bf16.mxu0 %v1279
    %1442 = vmatpush1.bf16.msra.mxu0 %v1278
    %1443 = vmatprep.subr.bf16.mxu0 %v1277
    %1444 = vmatpush1.bf16.msra.mxu0 %v1276
    %1445 = vmatprep.subr.bf16.mxu0 %v1275
    %1446 = vmatpush1.bf16.msra.mxu0 %v1274
    %1447 = vmatprep.subr.bf16.mxu0 0
    %1448 = vmatpush2.bf16.msra.mxu0 0
    %1449 = vmatprep.subr.bf16.mxu0 0
    %1450 = vmatpush2.bf16.msra.mxu0 0
    %1451 = vmatprep.subr.bf16.mxu0 0
    %1452 = vmatpush2.bf16.msra.mxu0 0
    %1453 = vmatprep.subr.bf16.mxu0 0
    %1454 = vmatpush2.bf16.msra.mxu0 0
    %1455 = vmatprep.subr.bf16.mxu0 0
    %1456 = vmatpush2.bf16.msra.mxu0 0
    %1457 = vmatprep.subr.bf16.mxu0 0
    %1458 = vmatpush2.bf16.msra.mxu0 0
    %1459 = vmatprep.subr.bf16.mxu0 0
    %1460 = vmatpush2.bf16.msra.mxu0 0
    %1461 = vmatprep.subr.bf16.mxu0 0
    %1462 = vmatpush2.bf16.msra.mxu0 0
    %1463 = vmatprep.mubr.bf16.mxu0 0
    %1464 = vmatmul.mubr.bf16.gmra.mxu0 %v1429
    %v1465 = vpop.f32.mrf.mxu0
    %v1466 = vadd.f32 %v1243, %v1465
    %v1467 = vpop.f32.mrf.mxu0
    %v1468 = vadd.f32 %v1247, %v1467
    %v1469 = vpop.f32.mrf.mxu0
    %v1470 = vpop.f32.mrf.mxu0
    %1471 = vdwg.mxu0
    %v1472 = vsel %vm554, %v946, %v855
    %v1473 = vpack.c.bf16 %v1472, %v1472
    %v1475 = vsel %vm491, %v1473, 0
    %1477 = vmatprep.subr.bf16.mxu0 0
    %1478 = vmatpush1.bf16.msra.mxu0 0
    %1479 = vmatprep.subr.bf16.mxu0 0
    %1480 = vmatpush1.bf16.msra.mxu0 0
    %1481 = vmatprep.subr.bf16.mxu0 0
    %1482 = vmatpush1.bf16.msra.mxu0 0
    %1483 = vmatprep.subr.bf16.mxu0 0
    %1484 = vmatpush1.bf16.msra.mxu0 0
    %1485 = vmatprep.subr.bf16.mxu0 %v1281
    %1486 = vmatpush1.bf16.msra.mxu0 %v1280
    %1487 = vmatprep.subr.bf16.mxu0 %v1279
    %1488 = vmatpush1.bf16.msra.mxu0 %v1278
    %1489 = vmatprep.subr.bf16.mxu0 %v1277
    %1490 = vmatpush1.bf16.msra.mxu0 %v1276
    %1491 = vmatprep.subr.bf16.mxu0 %v1275
    %1492 = vmatpush1.bf16.msra.mxu0 %v1274
    %1493 = vmatprep.subr.bf16.mxu0 0
    %1494 = vmatpush2.bf16.msra.mxu0 0
    %1495 = vmatprep.subr.bf16.mxu0 0
    %1496 = vmatpush2.bf16.msra.mxu0 0
    %1497 = vmatprep.subr.bf16.mxu0 0
    %1498 = vmatpush2.bf16.msra.mxu0 0
    %1499 = vmatprep.subr.bf16.mxu0 0
    %1500 = vmatpush2.bf16.msra.mxu0 0
    %1501 = vmatprep.subr.bf16.mxu0 0
    %1502 = vmatpush2.bf16.msra.mxu0 0
    %1503 = vmatprep.subr.bf16.mxu0 0
    %1504 = vmatpush2.bf16.msra.mxu0 0
    %1505 = vmatprep.subr.bf16.mxu0 0
    %1506 = vmatpush2.bf16.msra.mxu0 0
    %1507 = vmatprep.subr.bf16.mxu0 0
    %1508 = vmatpush2.bf16.msra.mxu0 0
    %1509 = vmatprep.mubr.bf16.mxu0 0
    %1510 = vmatmul.mubr.bf16.gmra.mxu0 %v1475
    %v1511 = vpop.f32.mrf.mxu0
    %v1512 = vadd.f32 %v1243, %v1511
    %v1513 = vpop.f32.mrf.mxu0
    %v1514 = vadd.f32 %v1247, %v1513
    %v1515 = vpop.f32.mrf.mxu0
    %v1516 = vpop.f32.mrf.mxu0
    %1517 = vdwg.mxu0
    %v1518 = vsel %vm554, %v1037, %v764
    %v1519 = vpack.c.bf16 %v1518, %v1518
    %v1521 = vsel %vm491, %v1519, 0
    %1523 = vmatprep.subr.bf16.mxu0 0
    %1524 = vmatpush1.bf16.msra.mxu0 0
    %1525 = vmatprep.subr.bf16.mxu0 0
    %1526 = vmatpush1.bf16.msra.mxu0 0
    %1527 = vmatprep.subr.bf16.mxu0 0
    %1528 = vmatpush1.bf16.msra.mxu0 0
    %1529 = vmatprep.subr.bf16.mxu0 0
    %1530 = vmatpush1.bf16.msra.mxu0 0
    %1531 = vmatprep.subr.bf16.mxu0 %v1281
    %1532 = vmatpush1.bf16.msra.mxu0 %v1280
    %1533 = vmatprep.subr.bf16.mxu0 %v1279
    %1534 = vmatpush1.bf16.msra.mxu0 %v1278
    %1535 = vmatprep.subr.bf16.mxu0 %v1277
    %1536 = vmatpush1.bf16.msra.mxu0 %v1276
    %1537 = vmatprep.subr.bf16.mxu0 %v1275
    %1538 = vmatpush1.bf16.msra.mxu0 %v1274
    %1539 = vmatprep.subr.bf16.mxu0 0
    %1540 = vmatpush2.bf16.msra.mxu0 0
    %1541 = vmatprep.subr.bf16.mxu0 0
    %1542 = vmatpush2.bf16.msra.mxu0 0
    %1543 = vmatprep.subr.bf16.mxu0 0
    %1544 = vmatpush2.bf16.msra.mxu0 0
    %1545 = vmatprep.subr.bf16.mxu0 0
    %1546 = vmatpush2.bf16.msra.mxu0 0
    %1547 = vmatprep.subr.bf16.mxu0 0
    %1548 = vmatpush2.bf16.msra.mxu0 0
    %1549 = vmatprep.subr.bf16.mxu0 0
    %1550 = vmatpush2.bf16.msra.mxu0 0
    %1551 = vmatprep.subr.bf16.mxu0 0
    %1552 = vmatpush2.bf16.msra.mxu0 0
    %1553 = vmatprep.subr.bf16.mxu0 0
    %1554 = vmatpush2.bf16.msra.mxu0 0
    %1555 = vmatprep.mubr.bf16.mxu0 0
    %1556 = vmatmul.mubr.bf16.gmra.mxu0 %v1521
    %v1557 = vpop.f32.mrf.mxu0
    %v1558 = vadd.f32 %v1243, %v1557
    %v1559 = vpop.f32.mrf.mxu0
    %v1560 = vadd.f32 %v1247, %v1559
    %v1561 = vpop.f32.mrf.mxu0
    %v1562 = vpop.f32.mrf.mxu0
    %1563 = vdwg.mxu0
    %v1564 = vsel %vm554, %v1128, %v673
    %v1565 = vpack.c.bf16 %v1564, %v1564
    %v1567 = vsel %vm491, %v1565, 0
    %1569 = vmatprep.subr.bf16.mxu0 0
    %1570 = vmatpush1.bf16.msra.mxu0 0
    %1571 = vmatprep.subr.bf16.mxu0 0
    %1572 = vmatpush1.bf16.msra.mxu0 0
    %1573 = vmatprep.subr.bf16.mxu0 0
    %1574 = vmatpush1.bf16.msra.mxu0 0
    %1575 = vmatprep.subr.bf16.mxu0 0
    %1576 = vmatpush1.bf16.msra.mxu0 0
    %1577 = vmatprep.subr.bf16.mxu0 %v1281
    %1578 = vmatpush1.bf16.msra.mxu0 %v1280
    %1579 = vmatprep.subr.bf16.mxu0 %v1279
    %1580 = vmatpush1.bf16.msra.mxu0 %v1278
    %1581 = vmatprep.subr.bf16.mxu0 %v1277
    %1582 = vmatpush1.bf16.msra.mxu0 %v1276
    %1583 = vmatprep.subr.bf16.mxu0 %v1275
    %1584 = vmatpush1.bf16.msra.mxu0 %v1274
    %1585 = vmatprep.subr.bf16.mxu0 0
    %1586 = vmatpush2.bf16.msra.mxu0 0
    %1587 = vmatprep.subr.bf16.mxu0 0
    %1588 = vmatpush2.bf16.msra.mxu0 0
    %1589 = vmatprep.subr.bf16.mxu0 0
    %1590 = vmatpush2.bf16.msra.mxu0 0
    %1591 = vmatprep.subr.bf16.mxu0 0
    %1592 = vmatpush2.bf16.msra.mxu0 0
    %1593 = vmatprep.subr.bf16.mxu0 0
    %1594 = vmatpush2.bf16.msra.mxu0 0
    %1595 = vmatprep.subr.bf16.mxu0 0
    %1596 = vmatpush2.bf16.msra.mxu0 0
    %1597 = vmatprep.subr.bf16.mxu0 0
    %1598 = vmatpush2.bf16.msra.mxu0 0
    %1599 = vmatprep.subr.bf16.mxu0 0
    %1600 = vmatpush2.bf16.msra.mxu0 0
    %1601 = vmatprep.mubr.bf16.mxu0 0
    %1602 = vmatmul.mubr.bf16.gmra.mxu0 %v1567
    %v1603 = vpop.f32.mrf.mxu0
    %v1604 = vadd.f32 %v1243, %v1603
    %v1605 = vpop.f32.mrf.mxu0
    %v1606 = vadd.f32 %v1247, %v1605
    %v1607 = vpop.f32.mrf.mxu0
    %v1608 = vpop.f32.mrf.mxu0
    %1609 = vdwg.mxu0
    %v1610 = vsel %vm554, %v1219, %v582
    %v1611 = vpack.c.bf16 %v1610, %v1610
    %v1613 = vsel %vm491, %v1611, 0
    %1615 = vmatprep.subr.bf16.mxu0 0
    %1616 = vmatpush1.bf16.msra.mxu0 0
    %1617 = vmatprep.subr.bf16.mxu0 0
    %1618 = vmatpush1.bf16.msra.mxu0 0
    %1619 = vmatprep.subr.bf16.mxu0 0
    %1620 = vmatpush1.bf16.msra.mxu0 0
    %1621 = vmatprep.subr.bf16.mxu0 0
    %1622 = vmatpush1.bf16.msra.mxu0 0
    %1623 = vmatprep.subr.bf16.mxu0 %v1281
    %1624 = vmatpush1.bf16.msra.mxu0 %v1280
    %1625 = vmatprep.subr.bf16.mxu0 %v1279
    %1626 = vmatpush1.bf16.msra.mxu0 %v1278
    %1627 = vmatprep.subr.bf16.mxu0 %v1277
    %1628 = vmatpush1.bf16.msra.mxu0 %v1276
    %1629 = vmatprep.subr.bf16.mxu0 %v1275
    %1630 = vmatpush1.bf16.msra.mxu0 %v1274
    %1631 = vmatprep.subr.bf16.mxu0 0
    %1632 = vmatpush2.bf16.msra.mxu0 0
    %1633 = vmatprep.subr.bf16.mxu0 0
    %1634 = vmatpush2.bf16.msra.mxu0 0
    %1635 = vmatprep.subr.bf16.mxu0 0
    %1636 = vmatpush2.bf16.msra.mxu0 0
    %1637 = vmatprep.subr.bf16.mxu0 0
    %1638 = vmatpush2.bf16.msra.mxu0 0
    %1639 = vmatprep.subr.bf16.mxu0 0
    %1640 = vmatpush2.bf16.msra.mxu0 0
    %1641 = vmatprep.subr.bf16.mxu0 0
    %1642 = vmatpush2.bf16.msra.mxu0 0
    %1643 = vmatprep.subr.bf16.mxu0 0
    %1644 = vmatpush2.bf16.msra.mxu0 0
    %1645 = vmatprep.subr.bf16.mxu0 0
    %1646 = vmatpush2.bf16.msra.mxu0 0
    %1647 = vmatprep.mubr.bf16.mxu0 0
    %1648 = vmatmul.mubr.bf16.gmra.mxu0 %v1613
    %v1649 = vpop.f32.mrf.mxu0
    %v1650 = vadd.f32 %v1243, %v1649
    %v1651 = vpop.f32.mrf.mxu0
    %v1652 = vadd.f32 %v1247, %v1651
    %v1653 = vpop.f32.mrf.mxu0
    %v1654 = vpop.f32.mrf.mxu0
    %1655 = vdwg.mxu0
    %v1664 = vunpack.c.l.b16 %v1228
    %v1665 = vunpack.c.h.b16 %v1228
    %v1666 = vunpack.c.l.b16 %v1229
    %v1667 = vunpack.c.h.b16 %v1229
    %v1668 = vunpack.c.l.b16 %v1230
    %v1669 = vunpack.c.h.b16 %v1230
    %v1670 = vunpack.c.l.b16 %v1231
    %v1671 = vunpack.c.h.b16 %v1231
    %v1672 = vunpack.c.l.b16 %v1232
    %v1673 = vunpack.c.h.b16 %v1232
    %v1674 = vunpack.c.l.b16 %v1233
    %v1675 = vunpack.c.h.b16 %v1233
    %v1676 = vunpack.c.l.b16 %v1234
    %v1677 = vunpack.c.h.b16 %v1234
    %v1678 = vunpack.c.l.b16 %v1235
    %v1679 = vunpack.c.h.b16 %v1235
    %v1680 = vpack.c.b16 %v1666, %v1664
    %v1681 = vpack.c.b16 %v1667, %v1665
    %v1682 = vpack.c.b16 %v1670, %v1668
    %v1683 = vpack.c.b16 %v1671, %v1669
    %v1684 = vpack.c.b16 %v1674, %v1672
    %v1685 = vpack.c.b16 %v1675, %v1673
    %v1686 = vpack.c.b16 %v1678, %v1676
    %v1687 = vpack.c.b16 %v1679, %v1677
    %1696 = vmatprep.subr.bf16.mxu0 0
    %1697 = vmatpush1.bf16.msra.mxu0 0
    %1698 = vmatprep.subr.bf16.mxu0 0
    %1699 = vmatpush1.bf16.msra.mxu0 0
    %1700 = vmatprep.subr.bf16.mxu0 0
    %1701 = vmatpush1.bf16.msra.mxu0 0
    %1702 = vmatprep.subr.bf16.mxu0 0
    %1703 = vmatpush1.bf16.msra.mxu0 0
    %1704 = vmatprep.subr.bf16.mxu0 %v1687
    %1705 = vmatpush1.bf16.msra.mxu0 %v1686
    %1706 = vmatprep.subr.bf16.mxu0 %v1685
    %1707 = vmatpush1.bf16.msra.mxu0 %v1684
    %1708 = vmatprep.subr.bf16.mxu0 %v1683
    %1709 = vmatpush1.bf16.msra.mxu0 %v1682
    %1710 = vmatprep.subr.bf16.mxu0 %v1681
    %1711 = vmatpush1.bf16.msra.mxu0 %v1680
    %1712 = vmatprep.subr.bf16.mxu0 0
    %1713 = vmatpush2.bf16.msra.mxu0 0
    %1714 = vmatprep.subr.bf16.mxu0 0
    %1715 = vmatpush2.bf16.msra.mxu0 0
    %1716 = vmatprep.subr.bf16.mxu0 0
    %1717 = vmatpush2.bf16.msra.mxu0 0
    %1718 = vmatprep.subr.bf16.mxu0 0
    %1719 = vmatpush2.bf16.msra.mxu0 0
    %1720 = vmatprep.subr.bf16.mxu0 0
    %1721 = vmatpush2.bf16.msra.mxu0 0
    %1722 = vmatprep.subr.bf16.mxu0 0
    %1723 = vmatpush2.bf16.msra.mxu0 0
    %1724 = vmatprep.subr.bf16.mxu0 0
    %1725 = vmatpush2.bf16.msra.mxu0 0
    %1726 = vmatprep.subr.bf16.mxu0 0
    %1727 = vmatpush2.bf16.msra.mxu0 0
    %1728 = vmatprep.mubr.bf16.mxu0 0
    %1729 = vmatmul.mubr.bf16.gmra.mxu0 %v493
    %v1730 = vpop.f32.mrf.mxu0
    %v1731 = vadd.f32 0.0, %v1730
    %v1732 = vpop.f32.mrf.mxu0
    %v1733 = vadd.f32 0.0, %v1732
    %v1734 = vpop.f32.mrf.mxu0
    %v1735 = vpop.f32.mrf.mxu0
    %1736 = vdwg.mxu0
    %v1737 = vadd.f32 %v1328, %v1731
    %v1738 = vadd.f32 %v1652, %v1733
    %v1739 = vxor.u32 %v1737, 2147483648
    %v1740 = vxor.u32 %v1738, 2147483648
    %v1741 = vmul.f32 %v1739, 1.442695
    %v1742 = vpow.pop %v1741
    %v1743 = vmul.f32 %v1740, 1.442695
    %v1744 = vpow.pop %v1743
    %v1745 = vadd.f32 %v1742, 1.0
    %v1746 = vadd.f32 %v1744, 1.0
    %v1747 = vrcp.pop %v1745
    %v1748 = vmul.f32 1.0, %v1747
    %v1749 = vrcp.pop %v1746
    %v1750 = vmul.f32 1.0, %v1749
    %1752 = vrot.lane.b32.xlu0 %v1750, 32
    %v1753 = vpop.permute.xlu0 %1752
    %v1755 = vsel %vm554, %v1748, %v1753
    %1757 = vrot.lane.b32.xlu0 %v1748, 96
    %v1758 = vpop.permute.xlu0 %1757
    %v1760 = vsel %vm554, %v1758, %v1750
    %1761 = vrot.lane.b32.xlu0 %v1748, 32
    %v1762 = vpop.permute.xlu0 %1761
    %1764 = vrot.lane.b32.xlu0 %v1750, 64
    %v1765 = vpop.permute.xlu0 %1764
    %v1767 = vsel %vm554, %v1762, %v1765
    %1769 = vrot.lane.b32.xlu0 %v1737, 64
    %v1770 = vpop.permute.xlu0 %1769
    %1773 = vrot.lane.b32.xlu0 %v1738, 96
    %v1774 = vpop.permute.xlu0 %1773
    %v1776 = vsel %vm554, %v1770, %v1774
    %v1777 = vtanh.pop %v1776
    %v1778 = vmul.f32 %v1760, 0.0
    %v1779 = vmul.f32 %v1755, %v1777
    %v1780 = vadd.f32 %v1778, %v1779
    %v1781 = vtanh.pop %v1780
    %v1782 = vmul.f32 %v1767, %v1781
    %v1783 = vpack.c.bf16 %v1782, %v1782
    %v1785 = vsel %vm491, %v1783, 0
    %1787 = vmatprep.subr.bf16.mxu0 0
    %1788 = vmatpush1.bf16.msra.mxu0 0
    %1789 = vmatprep.subr.bf16.mxu0 0
    %1790 = vmatpush1.bf16.msra.mxu0 0
    %1791 = vmatprep.subr.bf16.mxu0 0
    %1792 = vmatpush1.bf16.msra.mxu0 0
    %1793 = vmatprep.subr.bf16.mxu0 0
    %1794 = vmatpush1.bf16.msra.mxu0 0
    %1795 = vmatprep.subr.bf16.mxu0 %v1687
    %1796 = vmatpush1.bf16.msra.mxu0 %v1686
    %1797 = vmatprep.subr.bf16.mxu0 %v1685
    %1798 = vmatpush1.bf16.msra.mxu0 %v1684
    %1799 = vmatprep.subr.bf16.mxu0 %v1683
    %1800 = vmatpush1.bf16.msra.mxu0 %v1682
    %1801 = vmatprep.subr.bf16.mxu0 %v1681
    %1802 = vmatpush1.bf16.msra.mxu0 %v1680
    %1803 = vmatprep.subr.bf16.mxu0 0
    %1804 = vmatpush2.bf16.msra.mxu0 0
    %1805 = vmatprep.subr.bf16.mxu0 0
    %1806 = vmatpush2.bf16.msra.mxu0 0
    %1807 = vmatprep.subr.bf16.mxu0 0
    %1808 = vmatpush2.bf16.msra.mxu0 0
    %1809 = vmatprep.subr.bf16.mxu0 0
    %1810 = vmatpush2.bf16.msra.mxu0 0
    %1811 = vmatprep.subr.bf16.mxu0 0
    %1812 = vmatpush2.bf16.msra.mxu0 0
    %1813 = vmatprep.subr.bf16.mxu0 0
    %1814 = vmatpush2.bf16.msra.mxu0 0
    %1815 = vmatprep.subr.bf16.mxu0 0
    %1816 = vmatpush2.bf16.msra.mxu0 0
    %1817 = vmatprep.subr.bf16.mxu0 0
    %1818 = vmatpush2.bf16.msra.mxu0 0
    %1819 = vmatprep.mubr.bf16.mxu0 0
    %1820 = vmatmul.mubr.bf16.gmra.mxu0 %v1785
    %v1821 = vpop.f32.mrf.mxu0
    %v1822 = vadd.f32 0.0, %v1821
    %v1823 = vpop.f32.mrf.mxu0
    %v1824 = vadd.f32 0.0, %v1823
    %v1825 = vpop.f32.mrf.mxu0
    %v1826 = vpop.f32.mrf.mxu0
    %1827 = vdwg.mxu0
    %v1828 = vadd.f32 %v1374, %v1822
    %v1829 = vadd.f32 %v1606, %v1824
    %v1830 = vxor.u32 %v1828, 2147483648
    %v1831 = vxor.u32 %v1829, 2147483648
    %v1832 = vmul.f32 %v1830, 1.442695
    %v1833 = vpow.pop %v1832
    %v1834 = vmul.f32 %v1831, 1.442695
    %v1835 = vpow.pop %v1834
    %v1836 = vadd.f32 %v1833, 1.0
    %v1837 = vadd.f32 %v1835, 1.0
    %v1838 = vrcp.pop %v1836
    %v1839 = vmul.f32 1.0, %v1838
    %v1840 = vrcp.pop %v1837
    %v1841 = vmul.f32 1.0, %v1840
    %1843 = vrot.lane.b32.xlu0 %v1841, 32
    %v1844 = vpop.permute.xlu0 %1843
    %v1846 = vsel %vm554, %v1839, %v1844
    %1848 = vrot.lane.b32.xlu0 %v1839, 96
    %v1849 = vpop.permute.xlu0 %1848
    %v1851 = vsel %vm554, %v1849, %v1841
    %1852 = vrot.lane.b32.xlu0 %v1839, 32
    %v1853 = vpop.permute.xlu0 %1852
    %1855 = vrot.lane.b32.xlu0 %v1841, 64
    %v1856 = vpop.permute.xlu0 %1855
    %v1858 = vsel %vm554, %v1853, %v1856
    %1860 = vrot.lane.b32.xlu0 %v1828, 64
    %v1861 = vpop.permute.xlu0 %1860
    %1864 = vrot.lane.b32.xlu0 %v1829, 96
    %v1865 = vpop.permute.xlu0 %1864
    %v1867 = vsel %vm554, %v1861, %v1865
    %v1868 = vtanh.pop %v1867
    %v1869 = vmul.f32 %v1851, %v1780
    %v1870 = vmul.f32 %v1846, %v1868
    %v1871 = vadd.f32 %v1869, %v1870
    %v1872 = vtanh.pop %v1871
    %v1873 = vmul.f32 %v1858, %v1872
    %v1874 = vpack.c.bf16 %v1873, %v1873
    %v1876 = vsel %vm491, %v1874, 0
    %1878 = vmatprep.subr.bf16.mxu0 0
    %1879 = vmatpush1.bf16.msra.mxu0 0
    %1880 = vmatprep.subr.bf16.mxu0 0
    %1881 = vmatpush1.bf16.msra.mxu0 0
    %1882 = vmatprep.subr.bf16.mxu0 0
    %1883 = vmatpush1.bf16.msra.mxu0 0
    %1884 = vmatprep.subr.bf16.mxu0 0
    %1885 = vmatpush1.bf16.msra.mxu0 0
    %1886 = vmatprep.subr.bf16.mxu0 %v1687
    %1887 = vmatpush1.bf16.msra.mxu0 %v1686
    %1888 = vmatprep.subr.bf16.mxu0 %v1685
    %1889 = vmatpush1.bf16.msra.mxu0 %v1684
    %1890 = vmatprep.subr.bf16.mxu0 %v1683
    %1891 = vmatpush1.bf16.msra.mxu0 %v1682
    %1892 = vmatprep.subr.bf16.mxu0 %v1681
    %1893 = vmatpush1.bf16.msra.mxu0 %v1680
    %1894 = vmatprep.subr.bf16.mxu0 0
    %1895 = vmatpush2.bf16.msra.mxu0 0
    %1896 = vmatprep.subr.bf16.mxu0 0
    %1897 = vmatpush2.bf16.msra.mxu0 0
    %1898 = vmatprep.subr.bf16.mxu0 0
    %1899 = vmatpush2.bf16.msra.mxu0 0
    %1900 = vmatprep.subr.bf16.mxu0 0
    %1901 = vmatpush2.bf16.msra.mxu0 0
    %1902 = vmatprep.subr.bf16.mxu0 0
    %1903 = vmatpush2.bf16.msra.mxu0 0
    %1904 = vmatprep.subr.bf16.mxu0 0
    %1905 = vmatpush2.bf16.msra.mxu0 0
    %1906 = vmatprep.subr.bf16.mxu0 0
    %1907 = vmatpush2.bf16.msra.mxu0 0
    %1908 = vmatprep.subr.bf16.mxu0 0
    %1909 = vmatpush2.bf16.msra.mxu0 0
    %1910 = vmatprep.mubr.bf16.mxu0 0
    %1911 = vmatmul.mubr.bf16.gmra.mxu0 %v1876
    %v1912 = vpop.f32.mrf.mxu0
    %v1913 = vadd.f32 0.0, %v1912
    %v1914 = vpop.f32.mrf.mxu0
    %v1915 = vadd.f32 0.0, %v1914
    %v1916 = vpop.f32.mrf.mxu0
    %v1917 = vpop.f32.mrf.mxu0
    %1918 = vdwg.mxu0
    %v1919 = vadd.f32 %v1420, %v1913
    %v1920 = vadd.f32 %v1560, %v1915
    %v1921 = vxor.u32 %v1919, 2147483648
    %v1922 = vxor.u32 %v1920, 2147483648
    %v1923 = vmul.f32 %v1921, 1.442695
    %v1924 = vpow.pop %v1923
    %v1925 = vmul.f32 %v1922, 1.442695
    %v1926 = vpow.pop %v1925
    %v1927 = vadd.f32 %v1924, 1.0
    %v1928 = vadd.f32 %v1926, 1.0
    %v1929 = vrcp.pop %v1927
    %v1930 = vmul.f32 1.0, %v1929
    %v1931 = vrcp.pop %v1928
    %v1932 = vmul.f32 1.0, %v1931
    %1934 = vrot.lane.b32.xlu0 %v1932, 32
    %v1935 = vpop.permute.xlu0 %1934
    %v1937 = vsel %vm554, %v1930, %v1935
    %1939 = vrot.lane.b32.xlu0 %v1930, 96
    %v1940 = vpop.permute.xlu0 %1939
    %v1942 = vsel %vm554, %v1940, %v1932
    %1943 = vrot.lane.b32.xlu0 %v1930, 32
    %v1944 = vpop.permute.xlu0 %1943
    %1946 = vrot.lane.b32.xlu0 %v1932, 64
    %v1947 = vpop.permute.xlu0 %1946
    %v1949 = vsel %vm554, %v1944, %v1947
    %1951 = vrot.lane.b32.xlu0 %v1919, 64
    %v1952 = vpop.permute.xlu0 %1951
    %1955 = vrot.lane.b32.xlu0 %v1920, 96
    %v1956 = vpop.permute.xlu0 %1955
    %v1958 = vsel %vm554, %v1952, %v1956
    %v1959 = vtanh.pop %v1958
    %v1960 = vmul.f32 %v1942, %v1871
    %v1961 = vmul.f32 %v1937, %v1959
    %v1962 = vadd.f32 %v1960, %v1961
    %v1963 = vtanh.pop %v1962
    %v1964 = vmul.f32 %v1949, %v1963
    %v1965 = vpack.c.bf16 %v1964, %v1964
    %v1967 = vsel %vm491, %v1965, 0
    %1969 = vmatprep.subr.bf16.mxu0 0
    %1970 = vmatpush1.bf16.msra.mxu0 0
    %1971 = vmatprep.subr.bf16.mxu0 0
    %1972 = vmatpush1.bf16.msra.mxu0 0
    %1973 = vmatprep.subr.bf16.mxu0 0
    %1974 = vmatpush1.bf16.msra.mxu0 0
    %1975 = vmatprep.subr.bf16.mxu0 0
    %1976 = vmatpush1.bf16.msra.mxu0 0
    %1977 = vmatprep.subr.bf16.mxu0 %v1687
    %1978 = vmatpush1.bf16.msra.mxu0 %v1686
    %1979 = vmatprep.subr.bf16.mxu0 %v1685
    %1980 = vmatpush1.bf16.msra.mxu0 %v1684
    %1981 = vmatprep.subr.bf16.mxu0 %v1683
    %1982 = vmatpush1.bf16.msra.mxu0 %v1682
    %1983 = vmatprep.subr.bf16.mxu0 %v1681
    %1984 = vmatpush1.bf16.msra.mxu0 %v1680
    %1985 = vmatprep.subr.bf16.mxu0 0
    %1986 = vmatpush2.bf16.msra.mxu0 0
    %1987 = vmatprep.subr.bf16.mxu0 0
    %1988 = vmatpush2.bf16.msra.mxu0 0
    %1989 = vmatprep.subr.bf16.mxu0 0
    %1990 = vmatpush2.bf16.msra.mxu0 0
    %1991 = vmatprep.subr.bf16.mxu0 0
    %1992 = vmatpush2.bf16.msra.mxu0 0
    %1993 = vmatprep.subr.bf16.mxu0 0
    %1994 = vmatpush2.bf16.msra.mxu0 0
    %1995 = vmatprep.subr.bf16.mxu0 0
    %1996 = vmatpush2.bf16.msra.mxu0 0
    %1997 = vmatprep.subr.bf16.mxu0 0
    %1998 = vmatpush2.bf16.msra.mxu0 0
    %1999 = vmatprep.subr.bf16.mxu0 0
    %2000 = vmatpush2.bf16.msra.mxu0 0
    %2001 = vmatprep.mubr.bf16.mxu0 0
    %2002 = vmatmul.mubr.bf16.gmra.mxu0 %v1967
    %v2003 = vpop.f32.mrf.mxu0
    %v2004 = vadd.f32 0.0, %v2003
    %v2005 = vpop.f32.mrf.mxu0
    %v2006 = vadd.f32 0.0, %v2005
    %v2007 = vpop.f32.mrf.mxu0
    %v2008 = vpop.f32.mrf.mxu0
    %2009 = vdwg.mxu0
    %v2010 = vadd.f32 %v1466, %v2004
    %v2011 = vadd.f32 %v1514, %v2006
    %v2012 = vxor.u32 %v2010, 2147483648
    %v2013 = vxor.u32 %v2011, 2147483648
    %v2014 = vmul.f32 %v2012, 1.442695
    %v2015 = vpow.pop %v2014
    %v2016 = vmul.f32 %v2013, 1.442695
    %v2017 = vpow.pop %v2016
    %v2018 = vadd.f32 %v2015, 1.0
    %v2019 = vadd.f32 %v2017, 1.0
    %v2020 = vrcp.pop %v2018
    %v2021 = vmul.f32 1.0, %v2020
    %v2022 = vrcp.pop %v2019
    %v2023 = vmul.f32 1.0, %v2022
    %2025 = vrot.lane.b32.xlu0 %v2023, 32
    %v2026 = vpop.permute.xlu0 %2025
    %v2028 = vsel %vm554, %v2021, %v2026
    %2030 = vrot.lane.b32.xlu0 %v2021, 96
    %v2031 = vpop.permute.xlu0 %2030
    %v2033 = vsel %vm554, %v2031, %v2023
    %2034 = vrot.lane.b32.xlu0 %v2021, 32
    %v2035 = vpop.permute.xlu0 %2034
    %2037 = vrot.lane.b32.xlu0 %v2023, 64
    %v2038 = vpop.permute.xlu0 %2037
    %v2040 = vsel %vm554, %v2035, %v2038
    %2042 = vrot.lane.b32.xlu0 %v2010, 64
    %v2043 = vpop.permute.xlu0 %2042
    %2046 = vrot.lane.b32.xlu0 %v2011, 96
    %v2047 = vpop.permute.xlu0 %2046
    %v2049 = vsel %vm554, %v2043, %v2047
    %v2050 = vtanh.pop %v2049
    %v2051 = vmul.f32 %v2033, %v1962
    %v2052 = vmul.f32 %v2028, %v2050
    %v2053 = vadd.f32 %v2051, %v2052
    %v2054 = vtanh.pop %v2053
    %v2055 = vmul.f32 %v2040, %v2054
    %v2056 = vpack.c.bf16 %v2055, %v2055
    %v2058 = vsel %vm491, %v2056, 0
    %2060 = vmatprep.subr.bf16.mxu0 0
    %2061 = vmatpush1.bf16.msra.mxu0 0
    %2062 = vmatprep.subr.bf16.mxu0 0
    %2063 = vmatpush1.bf16.msra.mxu0 0
    %2064 = vmatprep.subr.bf16.mxu0 0
    %2065 = vmatpush1.bf16.msra.mxu0 0
    %2066 = vmatprep.subr.bf16.mxu0 0
    %2067 = vmatpush1.bf16.msra.mxu0 0
    %2068 = vmatprep.subr.bf16.mxu0 %v1687
    %2069 = vmatpush1.bf16.msra.mxu0 %v1686
    %2070 = vmatprep.subr.bf16.mxu0 %v1685
    %2071 = vmatpush1.bf16.msra.mxu0 %v1684
    %2072 = vmatprep.subr.bf16.mxu0 %v1683
    %2073 = vmatpush1.bf16.msra.mxu0 %v1682
    %2074 = vmatprep.subr.bf16.mxu0 %v1681
    %2075 = vmatpush1.bf16.msra.mxu0 %v1680
    %2076 = vmatprep.subr.bf16.mxu0 0
    %2077 = vmatpush2.bf16.msra.mxu0 0
    %2078 = vmatprep.subr.bf16.mxu0 0
    %2079 = vmatpush2.bf16.msra.mxu0 0
    %2080 = vmatprep.subr.bf16.mxu0 0
    %2081 = vmatpush2.bf16.msra.mxu0 0
    %2082 = vmatprep.subr.bf16.mxu0 0
    %2083 = vmatpush2.bf16.msra.mxu0 0
    %2084 = vmatprep.subr.bf16.mxu0 0
    %2085 = vmatpush2.bf16.msra.mxu0 0
    %2086 = vmatprep.subr.bf16.mxu0 0
    %2087 = vmatpush2.bf16.msra.mxu0 0
    %2088 = vmatprep.subr.bf16.mxu0 0
    %2089 = vmatpush2.bf16.msra.mxu0 0
    %2090 = vmatprep.subr.bf16.mxu0 0
    %2091 = vmatpush2.bf16.msra.mxu0 0
    %2092 = vmatprep.mubr.bf16.mxu0 0
    %2093 = vmatmul.mubr.bf16.gmra.mxu0 %v2058
    %v2094 = vpop.f32.mrf.mxu0
    %v2095 = vadd.f32 0.0, %v2094
    %v2096 = vpop.f32.mrf.mxu0
    %v2097 = vadd.f32 0.0, %v2096
    %v2098 = vpop.f32.mrf.mxu0
    %v2099 = vpop.f32.mrf.mxu0
    %2100 = vdwg.mxu0
    %v2101 = vadd.f32 %v1512, %v2095
    %v2102 = vadd.f32 %v1468, %v2097
    %v2103 = vxor.u32 %v2101, 2147483648
    %v2104 = vxor.u32 %v2102, 2147483648
    %v2105 = vmul.f32 %v2103, 1.442695
    %v2106 = vpow.pop %v2105
    %v2107 = vmul.f32 %v2104, 1.442695
    %v2108 = vpow.pop %v2107
    %v2109 = vadd.f32 %v2106, 1.0
    %v2110 = vadd.f32 %v2108, 1.0
    %v2111 = vrcp.pop %v2109
    %v2112 = vmul.f32 1.0, %v2111
    %v2113 = vrcp.pop %v2110
    %v2114 = vmul.f32 1.0, %v2113
    %2116 = vrot.lane.b32.xlu0 %v2114, 32
    %v2117 = vpop.permute.xlu0 %2116
    %v2119 = vsel %vm554, %v2112, %v2117
    %2121 = vrot.lane.b32.xlu0 %v2112, 96
    %v2122 = vpop.permute.xlu0 %2121
    %v2124 = vsel %vm554, %v2122, %v2114
    %2125 = vrot.lane.b32.xlu0 %v2112, 32
    %v2126 = vpop.permute.xlu0 %2125
    %2128 = vrot.lane.b32.xlu0 %v2114, 64
    %v2129 = vpop.permute.xlu0 %2128
    %v2131 = vsel %vm554, %v2126, %v2129
    %2133 = vrot.lane.b32.xlu0 %v2101, 64
    %v2134 = vpop.permute.xlu0 %2133
    %2137 = vrot.lane.b32.xlu0 %v2102, 96
    %v2138 = vpop.permute.xlu0 %2137
    %v2140 = vsel %vm554, %v2134, %v2138
    %v2141 = vtanh.pop %v2140
    %v2142 = vmul.f32 %v2124, %v2053
    %v2143 = vmul.f32 %v2119, %v2141
    %v2144 = vadd.f32 %v2142, %v2143
    %v2145 = vtanh.pop %v2144
    %v2146 = vmul.f32 %v2131, %v2145
    %v2147 = vpack.c.bf16 %v2146, %v2146
    %v2149 = vsel %vm491, %v2147, 0
    %2151 = vmatprep.subr.bf16.mxu0 0
    %2152 = vmatpush1.bf16.msra.mxu0 0
    %2153 = vmatprep.subr.bf16.mxu0 0
    %2154 = vmatpush1.bf16.msra.mxu0 0
    %2155 = vmatprep.subr.bf16.mxu0 0
    %2156 = vmatpush1.bf16.msra.mxu0 0
    %2157 = vmatprep.subr.bf16.mxu0 0
    %2158 = vmatpush1.bf16.msra.mxu0 0
    %2159 = vmatprep.subr.bf16.mxu0 %v1687
    %2160 = vmatpush1.bf16.msra.mxu0 %v1686
    %2161 = vmatprep.subr.bf16.mxu0 %v1685
    %2162 = vmatpush1.bf16.msra.mxu0 %v1684
    %2163 = vmatprep.subr.bf16.mxu0 %v1683
    %2164 = vmatpush1.bf16.msra.mxu0 %v1682
    %2165 = vmatprep.subr.bf16.mxu0 %v1681
    %2166 = vmatpush1.bf16.msra.mxu0 %v1680
    %2167 = vmatprep.subr.bf16.mxu0 0
    %2168 = vmatpush2.bf16.msra.mxu0 0
    %2169 = vmatprep.subr.bf16.mxu0 0
    %2170 = vmatpush2.bf16.msra.mxu0 0
    %2171 = vmatprep.subr.bf16.mxu0 0
    %2172 = vmatpush2.bf16.msra.mxu0 0
    %2173 = vmatprep.subr.bf16.mxu0 0
    %2174 = vmatpush2.bf16.msra.mxu0 0
    %2175 = vmatprep.subr.bf16.mxu0 0
    %2176 = vmatpush2.bf16.msra.mxu0 0
    %2177 = vmatprep.subr.bf16.mxu0 0
    %2178 = vmatpush2.bf16.msra.mxu0 0
    %2179 = vmatprep.subr.bf16.mxu0 0
    %2180 = vmatpush2.bf16.msra.mxu0 0
    %2181 = vmatprep.subr.bf16.mxu0 0
    %2182 = vmatpush2.bf16.msra.mxu0 0
    %2183 = vmatprep.mubr.bf16.mxu0 0
    %2184 = vmatmul.mubr.bf16.gmra.mxu0 %v2149
    %v2185 = vpop.f32.mrf.mxu0
    %v2186 = vadd.f32 0.0, %v2185
    %v2187 = vpop.f32.mrf.mxu0
    %v2188 = vadd.f32 0.0, %v2187
    %v2189 = vpop.f32.mrf.mxu0
    %v2190 = vpop.f32.mrf.mxu0
    %2191 = vdwg.mxu0
    %v2192 = vadd.f32 %v1558, %v2186
    %v2193 = vadd.f32 %v1422, %v2188
    %v2194 = vxor.u32 %v2192, 2147483648
    %v2195 = vxor.u32 %v2193, 2147483648
    %v2196 = vmul.f32 %v2194, 1.442695
    %v2197 = vpow.pop %v2196
    %v2198 = vmul.f32 %v2195, 1.442695
    %v2199 = vpow.pop %v2198
    %v2200 = vadd.f32 %v2197, 1.0
    %v2201 = vadd.f32 %v2199, 1.0
    %v2202 = vrcp.pop %v2200
    %v2203 = vmul.f32 1.0, %v2202
    %v2204 = vrcp.pop %v2201
    %v2205 = vmul.f32 1.0, %v2204
    %2207 = vrot.lane.b32.xlu0 %v2205, 32
    %v2208 = vpop.permute.xlu0 %2207
    %v2210 = vsel %vm554, %v2203, %v2208
    %2212 = vrot.lane.b32.xlu0 %v2203, 96
    %v2213 = vpop.permute.xlu0 %2212
    %v2215 = vsel %vm554, %v2213, %v2205
    %2216 = vrot.lane.b32.xlu0 %v2203, 32
    %v2217 = vpop.permute.xlu0 %2216
    %2219 = vrot.lane.b32.xlu0 %v2205, 64
    %v2220 = vpop.permute.xlu0 %2219
    %v2222 = vsel %vm554, %v2217, %v2220
    %2224 = vrot.lane.b32.xlu0 %v2192, 64
    %v2225 = vpop.permute.xlu0 %2224
    %2228 = vrot.lane.b32.xlu0 %v2193, 96
    %v2229 = vpop.permute.xlu0 %2228
    %v2231 = vsel %vm554, %v2225, %v2229
    %v2232 = vtanh.pop %v2231
    %v2233 = vmul.f32 %v2215, %v2144
    %v2234 = vmul.f32 %v2210, %v2232
    %v2235 = vadd.f32 %v2233, %v2234
    %v2236 = vtanh.pop %v2235
    %v2237 = vmul.f32 %v2222, %v2236
    %v2238 = vpack.c.bf16 %v2237, %v2237
    %v2240 = vsel %vm491, %v2238, 0
    %2242 = vmatprep.subr.bf16.mxu0 0
    %2243 = vmatpush1.bf16.msra.mxu0 0
    %2244 = vmatprep.subr.bf16.mxu0 0
    %2245 = vmatpush1.bf16.msra.mxu0 0
    %2246 = vmatprep.subr.bf16.mxu0 0
    %2247 = vmatpush1.bf16.msra.mxu0 0
    %2248 = vmatprep.subr.bf16.mxu0 0
    %2249 = vmatpush1.bf16.msra.mxu0 0
    %2250 = vmatprep.subr.bf16.mxu0 %v1687
    %2251 = vmatpush1.bf16.msra.mxu0 %v1686
    %2252 = vmatprep.subr.bf16.mxu0 %v1685
    %2253 = vmatpush1.bf16.msra.mxu0 %v1684
    %2254 = vmatprep.subr.bf16.mxu0 %v1683
    %2255 = vmatpush1.bf16.msra.mxu0 %v1682
    %2256 = vmatprep.subr.bf16.mxu0 %v1681
    %2257 = vmatpush1.bf16.msra.mxu0 %v1680
    %2258 = vmatprep.subr.bf16.mxu0 0
    %2259 = vmatpush2.bf16.msra.mxu0 0
    %2260 = vmatprep.subr.bf16.mxu0 0
    %2261 = vmatpush2.bf16.msra.mxu0 0
    %2262 = vmatprep.subr.bf16.mxu0 0
    %2263 = vmatpush2.bf16.msra.mxu0 0
    %2264 = vmatprep.subr.bf16.mxu0 0
    %2265 = vmatpush2.bf16.msra.mxu0 0
    %2266 = vmatprep.subr.bf16.mxu0 0
    %2267 = vmatpush2.bf16.msra.mxu0 0
    %2268 = vmatprep.subr.bf16.mxu0 0
    %2269 = vmatpush2.bf16.msra.mxu0 0
    %2270 = vmatprep.subr.bf16.mxu0 0
    %2271 = vmatpush2.bf16.msra.mxu0 0
    %2272 = vmatprep.subr.bf16.mxu0 0
    %2273 = vmatpush2.bf16.msra.mxu0 0
    %2274 = vmatprep.mubr.bf16.mxu0 0
    %2275 = vmatmul.mubr.bf16.gmra.mxu0 %v2240
    %v2276 = vpop.f32.mrf.mxu0
    %v2277 = vadd.f32 0.0, %v2276
    %v2278 = vpop.f32.mrf.mxu0
    %v2279 = vadd.f32 0.0, %v2278
    %v2280 = vpop.f32.mrf.mxu0
    %v2281 = vpop.f32.mrf.mxu0
    %2282 = vdwg.mxu0
    %v2283 = vadd.f32 %v1604, %v2277
    %v2284 = vadd.f32 %v1376, %v2279
    %v2285 = vxor.u32 %v2283, 2147483648
    %v2286 = vxor.u32 %v2284, 2147483648
    %v2287 = vmul.f32 %v2285, 1.442695
    %v2288 = vpow.pop %v2287
    %v2289 = vmul.f32 %v2286, 1.442695
    %v2290 = vpow.pop %v2289
    %v2291 = vadd.f32 %v2288, 1.0
    %v2292 = vadd.f32 %v2290, 1.0
    %v2293 = vrcp.pop %v2291
    %v2294 = vmul.f32 1.0, %v2293
    %v2295 = vrcp.pop %v2292
    %v2296 = vmul.f32 1.0, %v2295
    %2298 = vrot.lane.b32.xlu0 %v2296, 32
    %v2299 = vpop.permute.xlu0 %2298
    %v2301 = vsel %vm554, %v2294, %v2299
    %2303 = vrot.lane.b32.xlu0 %v2294, 96
    %v2304 = vpop.permute.xlu0 %2303
    %v2306 = vsel %vm554, %v2304, %v2296
    %2307 = vrot.lane.b32.xlu0 %v2294, 32
    %v2308 = vpop.permute.xlu0 %2307
    %2310 = vrot.lane.b32.xlu0 %v2296, 64
    %v2311 = vpop.permute.xlu0 %2310
    %v2313 = vsel %vm554, %v2308, %v2311
    %2315 = vrot.lane.b32.xlu0 %v2283, 64
    %v2316 = vpop.permute.xlu0 %2315
    %2319 = vrot.lane.b32.xlu0 %v2284, 96
    %v2320 = vpop.permute.xlu0 %2319
    %v2322 = vsel %vm554, %v2316, %v2320
    %v2323 = vtanh.pop %v2322
    %v2324 = vmul.f32 %v2306, %v2235
    %v2325 = vmul.f32 %v2301, %v2323
    %v2326 = vadd.f32 %v2324, %v2325
    %v2327 = vtanh.pop %v2326
    %v2328 = vmul.f32 %v2313, %v2327
    %v2329 = vpack.c.bf16 %v2328, %v2328
    %v2331 = vsel %vm491, %v2329, 0
    %2333 = vmatprep.subr.bf16.mxu0 0
    %2334 = vmatpush1.bf16.msra.mxu0 0
    %2335 = vmatprep.subr.bf16.mxu0 0
    %2336 = vmatpush1.bf16.msra.mxu0 0
    %2337 = vmatprep.subr.bf16.mxu0 0
    %2338 = vmatpush1.bf16.msra.mxu0 0
    %2339 = vmatprep.subr.bf16.mxu0 0
    %2340 = vmatpush1.bf16.msra.mxu0 0
    %2341 = vmatprep.subr.bf16.mxu0 %v1687
    %2342 = vmatpush1.bf16.msra.mxu0 %v1686
    %2343 = vmatprep.subr.bf16.mxu0 %v1685
    %2344 = vmatpush1.bf16.msra.mxu0 %v1684
    %2345 = vmatprep.subr.bf16.mxu0 %v1683
    %2346 = vmatpush1.bf16.msra.mxu0 %v1682
    %2347 = vmatprep.subr.bf16.mxu0 %v1681
    %2348 = vmatpush1.bf16.msra.mxu0 %v1680
    %2349 = vmatprep.subr.bf16.mxu0 0
    %2350 = vmatpush2.bf16.msra.mxu0 0
    %2351 = vmatprep.subr.bf16.mxu0 0
    %2352 = vmatpush2.bf16.msra.mxu0 0
    %2353 = vmatprep.subr.bf16.mxu0 0
    %2354 = vmatpush2.bf16.msra.mxu0 0
    %2355 = vmatprep.subr.bf16.mxu0 0
    %2356 = vmatpush2.bf16.msra.mxu0 0
    %2357 = vmatprep.subr.bf16.mxu0 0
    %2358 = vmatpush2.bf16.msra.mxu0 0
    %2359 = vmatprep.subr.bf16.mxu0 0
    %2360 = vmatpush2.bf16.msra.mxu0 0
    %2361 = vmatprep.subr.bf16.mxu0 0
    %2362 = vmatpush2.bf16.msra.mxu0 0
    %2363 = vmatprep.subr.bf16.mxu0 0
    %2364 = vmatpush2.bf16.msra.mxu0 0
    %2365 = vmatprep.mubr.bf16.mxu0 0
    %2366 = vmatmul.mubr.bf16.gmra.mxu0 %v2331
    %v2367 = vpop.f32.mrf.mxu0
    %v2368 = vadd.f32 0.0, %v2367
    %v2369 = vpop.f32.mrf.mxu0
    %v2370 = vadd.f32 0.0, %v2369
    %v2371 = vpop.f32.mrf.mxu0
    %v2372 = vpop.f32.mrf.mxu0
    %2373 = vdwg.mxu0
    %v2374 = vadd.f32 %v1650, %v2368
    %v2375 = vadd.f32 %v1330, %v2370
    %v2376 = vxor.u32 %v2374, 2147483648
    %v2377 = vxor.u32 %v2375, 2147483648
    %v2378 = vmul.f32 %v2376, 1.442695
    %v2379 = vpow.pop %v2378
    %v2380 = vmul.f32 %v2377, 1.442695
    %v2381 = vpow.pop %v2380
    %v2382 = vadd.f32 %v2379, 1.0
    %v2383 = vadd.f32 %v2381, 1.0
    %v2384 = vrcp.pop %v2382
    %v2385 = vmul.f32 1.0, %v2384
    %v2386 = vrcp.pop %v2383
    %v2387 = vmul.f32 1.0, %v2386
    %2389 = vrot.lane.b32.xlu0 %v2387, 32
    %v2390 = vpop.permute.xlu0 %2389
    %v2392 = vsel %vm554, %v2385, %v2390
    %2394 = vrot.lane.b32.xlu0 %v2385, 96
    %v2395 = vpop.permute.xlu0 %2394
    %v2397 = vsel %vm554, %v2395, %v2387
    %2398 = vrot.lane.b32.xlu0 %v2385, 32
    %v2399 = vpop.permute.xlu0 %2398
    %2401 = vrot.lane.b32.xlu0 %v2387, 64
    %v2402 = vpop.permute.xlu0 %2401
    %v2404 = vsel %vm554, %v2399, %v2402
    %2406 = vrot.lane.b32.xlu0 %v2374, 64
    %v2407 = vpop.permute.xlu0 %2406
    %2410 = vrot.lane.b32.xlu0 %v2375, 96
    %v2411 = vpop.permute.xlu0 %2410
    %v2413 = vsel %vm554, %v2407, %v2411
    %v2414 = vtanh.pop %v2413
    %v2415 = vmul.f32 %v2397, %v2326
    %v2416 = vmul.f32 %v2392, %v2414
    %v2417 = vadd.f32 %v2415, %v2416
    %v2418 = vtanh.pop %v2417
    %v2419 = vmul.f32 %v2404, %v2418
    %v2420 = vld [vmem:[%s7] sm:$0xff]
    %v2421 = vld [vmem:[%s7 + $0x8] sm:$0xff]
    %v2422 = vld [vmem:[%s7 + $0x10] sm:$0xff]
    %v2423 = vld [vmem:[%s7 + $0x18] sm:$0xff]
    %v2424 = vld [vmem:[%s7 + $0x20] sm:$0xff]
    %v2425 = vld [vmem:[%s7 + $0x28] sm:$0xff]
    %v2426 = vld [vmem:[%s7 + $0x30] sm:$0xff]
    %v2427 = vld [vmem:[%s7 + $0x38] sm:$0xff]
    %v2428 = vld [vmem:[%s8] sm:$0x1]
    %v2430 = vlaneseq
    %v2431 = vshrl.u32 %v2430, 7
    %v2432 = vsub.s32 0, %v2431
    %v2433 = vrot.slane %v2428, %v2432
    %v2436 = vsel %vm491, %v2419, 0
    %2438 = vmatprep.subr.mxu0 0.0
    %2439 = vmatpush1.msra.mxu0 0.0
    %2440 = vmatprep.subr.mxu0 0.0
    %2441 = vmatpush1.msra.mxu0 0.0
    %2442 = vmatprep.subr.mxu0 0.0
    %2443 = vmatpush1.msra.mxu0 0.0
    %2444 = vmatprep.subr.mxu0 0.0
    %2445 = vmatpush1.msra.mxu0 0.0
    %2446 = vmatprep.subr.mxu0 0.0
    %2447 = vmatpush1.msra.mxu0 0.0
    %2448 = vmatprep.subr.mxu0 0.0
    %2449 = vmatpush1.msra.mxu0 0.0
    %2450 = vmatprep.subr.mxu0 0.0
    %2451 = vmatpush1.msra.mxu0 0.0
    %2452 = vmatprep.subr.mxu0 0.0
    %2453 = vmatpush1.msra.mxu0 0.0
    %2454 = vmatprep.subr.mxu0 0.0
    %2455 = vmatpush1.msra.mxu0 %v2427
    %2456 = vmatprep.subr.mxu0 0.0
    %2457 = vmatpush1.msra.mxu0 %v2426
    %2458 = vmatprep.subr.mxu0 0.0
    %2459 = vmatpush1.msra.mxu0 %v2425
    %2460 = vmatprep.subr.mxu0 0.0
    %2461 = vmatpush1.msra.mxu0 %v2424
    %2462 = vmatprep.subr.mxu0 0.0
    %2463 = vmatpush1.msra.mxu0 %v2423
    %2464 = vmatprep.subr.mxu0 0.0
    %2465 = vmatpush1.msra.mxu0 %v2422
    %2466 = vmatprep.subr.mxu0 0.0
    %2467 = vmatpush1.msra.mxu0 %v2421
    %2468 = vmatprep.subr.mxu0 0.0
    %2469 = vmatpush1.msra.mxu0 %v2420
    %2470 = vmatprep.subr.mxu0 0.0
    %2471 = vmatpush2.msra.mxu0 0.0
    %2472 = vmatprep.subr.mxu0 0.0
    %2473 = vmatpush2.msra.mxu0 0.0
    %2474 = vmatprep.subr.mxu0 0.0
    %2475 = vmatpush2.msra.mxu0 0.0
    %2476 = vmatprep.subr.mxu0 0.0
    %2477 = vmatpush2.msra.mxu0 0.0
    %2478 = vmatprep.subr.mxu0 0.0
    %2479 = vmatpush2.msra.mxu0 0.0
    %2480 = vmatprep.subr.mxu0 0.0
    %2481 = vmatpush2.msra.mxu0 0.0
    %2482 = vmatprep.subr.mxu0 0.0
    %2483 = vmatpush2.msra.mxu0 0.0
    %2484 = vmatprep.subr.mxu0 0.0
    %2485 = vmatpush2.msra.mxu0 0.0
    %2486 = vmatprep.subr.mxu0 0.0
    %2487 = vmatpush2.msra.mxu0 0.0
    %2488 = vmatprep.subr.mxu0 0.0
    %2489 = vmatpush2.msra.mxu0 0.0
    %2490 = vmatprep.subr.mxu0 0.0
    %2491 = vmatpush2.msra.mxu0 0.0
    %2492 = vmatprep.subr.mxu0 0.0
    %2493 = vmatpush2.msra.mxu0 0.0
    %2494 = vmatprep.subr.mxu0 0.0
    %2495 = vmatpush2.msra.mxu0 0.0
    %2496 = vmatprep.subr.mxu0 0.0
    %2497 = vmatpush2.msra.mxu0 0.0
    %2498 = vmatprep.subr.mxu0 0.0
    %2499 = vmatpush2.msra.mxu0 0.0
    %2500 = vmatprep.subr.mxu0 0.0
    %2501 = vmatpush2.msra.mxu0 0.0
    %2502 = vmatprep.mubr.f32.mxu0 0.0
    %2503 = vmatmul.mubr.f32.gmra.mxu0 %v2436
    %v2504 = vpop.f32.mrf.mxu0
    %v2505 = vadd.f32 %v2433, %v2504
    %v2506 = vpop.f32.mrf.mxu0
    %2507 = vdwg.mxu0
    %2508 = vst [vmem:[#allocation2] sm:$0x3] %v2505
    // Predicated region
    $region38: #{bilstm_forward.1} parent=1 // pred_check
      _
    $region39: #{bilstm_forward.1} parent=1 // pred_check_branch
      %2510 = sbr.rel (0) target = $region41
    $region40: #{bilstm_forward.1} parent=1 // pred_region
      %s2512 = ssub.s32 32, 32
      %2513 = vsyncadd [#allocation3], %s2512
      %s2515 = sshll.u32 [#allocation2], 4
      %s2516 = int_to_ptr.vmem [resolvable:$true] %s2515
      %2518 = dma.vmem_to_hbm [thread:$0]  %s2516, 32, %s9, [#allocation3]
    $region41: #{bilstm_forward.1} parent=1 // pred_fallthru
      _
    // Predicated region
    $region42: #{bilstm_forward.1} parent=1 // pred_check
      _
    $region43: #{bilstm_forward.1} parent=1 // pred_check_branch
      %2520 = sbr.rel (0) target = $region45
    $region44: #{bilstm_forward.1} parent=1 // pred_region
      %2521 = dma.done [#allocation3], 32
    $region45: #{bilstm_forward.1} parent=1 // pred_fallthru
      _
    %2522 = vsyncpa [#allocation3], 1

</llo_original>
